<compile_context>
chip_gen: v7x
topology: tpu7x:2x2x1
jax: 0.10.0
libtpu: 0.0.40
codegen_flags: <defaults>
</compile_context>

<pallas_src>
import functools

import jax
import jax.numpy as jnp
from jax import lax
from jax.experimental import pallas as pl
from jax.experimental.pallas import tpu as pltpu

EPS = 1e-5          # torch BatchNorm1d default eps
LEAKY_SLOPE = 0.01  # torch F.leaky_relu default negative_slope
LANE = 128


# ------------------------------ in-kernel math ------------------------------

def _softplus(x):
    # matches torch.nn.Softplus(beta=1), numerically stable
    return jnp.maximum(x, 0.0) + jnp.log(1.0 + jnp.exp(-jnp.abs(x)))


def _gather_rows_take(src, idx_col):
    """out[n, :] = src[idx_col[n, 0], :] via the TPU dynamic (sublane) gather."""
    n, c = src.shape
    return jnp.take_along_axis(src, jnp.broadcast_to(idx_col, (n, c)), axis=0)


def _gather_rows_onehot(src, idx_col):
    """Fallback row gather as an exact one-hot f32 matmul (used only if the
    dynamic-gather lowering is unavailable on this jax/libtpu combination)."""
    n, _ = src.shape
    col = lax.broadcasted_iota(jnp.int32, (n, n), 1)
    onehot = (col == idx_col).astype(jnp.float32)
    return jnp.dot(onehot, src, preferred_element_type=jnp.float32)


_GATHERS = {"take": _gather_rows_take, "onehot": _gather_rows_onehot}


# --------------------------------- kernel -----------------------------------

def cgcnn_kernel(atom_in_ref, bond_ref, idx_ref, pool_ref,
                 emb_w_ref, w_self_ref, w_nbr_ref, w_bond_ref,
                 fc_w_ref, out_w_ref, wide_ref, narrow_ref, fc_b_ref, scal_ref,
                 o_ref, *, N, M, Ap, Bp, gather):
    """Fused: Linear embed -> ConvLayer (attention variant) -> mean pool ->
    softplus -> conv_to_fc -> softplus -> fc_out.  All feature dims padded."""
    f32, bf16 = jnp.float32, jnp.bfloat16
    MN = float(M * N)
    A2 = 2 * Ap

    # ------------------------- packed parameters ---------------------------
    b_full = wide_ref[0:1, :]       # (1, 2Ap) fc_full bias
    w_attn = wide_ref[1:2, :]       # (1, 2Ap) attn_fc weight (no bias)
    bn1_g = wide_ref[2:3, :]        # (1, 2Ap)
    bn1_b = wide_ref[3:4, :]        # (1, 2Ap)
    emb_b = narrow_ref[0:1, :]      # (1, Ap)
    bn2_g = narrow_ref[1:2, :]      # (1, Ap)
    bn2_b = narrow_ref[2:3, :]      # (1, Ap)
    fc_b = fc_b_ref[...]            # (1, Hp)
    bn3_g = scal_ref[0]             # SMEM scalars
    bn3_b = scal_ref[1]
    out_b = scal_ref[2]

    idx = idx_ref[...]              # (N, M) int32
    w_bond = w_bond_ref[...]        # (Bp, 2Ap) bf16

    # ------------------------------ embedding ------------------------------
    atom = jnp.dot(atom_in_ref[...], emb_w_ref[...],
                   preferred_element_type=f32) + emb_b            # (N, Ap) f32
    atom_bf = atom.astype(bf16)

    # Hoisted fc_full projections shared by all M neighbour slabs.
    self_g = jnp.dot(atom_bf, w_self_ref[...],
                     preferred_element_type=f32) + b_full         # (N, 2Ap)
    nbr_proj = jnp.dot(atom_bf, w_nbr_ref[...],
                       preferred_element_type=f32)                # (N, 2Ap)

    def slab(m, cols):
        """Raw gated feature of neighbour slot m, restricted to `cols` columns."""
        bond_m = bond_ref[:, m * Bp:(m + 1) * Bp]                 # (N, Bp) bf16
        return (self_g[:, :cols]
                + gather(nbr_proj[:, :cols], idx[:, m:m + 1])
                + jnp.dot(bond_m, w_bond[:, :cols],
                          preferred_element_type=f32))

    # ---- pass 1: bn1 batch statistics in one pass (sum / sum of squares) ---
    s1 = jnp.zeros((1, A2), f32)
    ss1 = jnp.zeros((1, A2), f32)
    for m in range(M):
        g_m = slab(m, A2)
        s1 = s1 + jnp.sum(g_m, axis=0, keepdims=True)
        ss1 = ss1 + jnp.sum(g_m * g_m, axis=0, keepdims=True)
    mean1 = s1 / MN
    var1 = jnp.maximum(ss1 / MN - mean1 * mean1, 0.0)
    inv1 = lax.rsqrt(var1 + EPS) * bn1_g
    shift1 = bn1_b - mean1 * inv1

    # ---- pass 2: attention logits a = attn_fc(bn1(g)); keep only (N, M) ----
    a_cols = []
    s3 = jnp.zeros((), f32)
    ss3 = jnp.zeros((), f32)
    for m in range(M):
        g_n = slab(m, A2) * inv1 + shift1                         # (N, 2Ap)
        a_m = jnp.sum(g_n * w_attn, axis=1, keepdims=True)        # (N, 1)
        a_cols.append(a_m)
        s3 = s3 + jnp.sum(a_m)
        ss3 = ss3 + jnp.sum(a_m * a_m)
    a = jnp.concatenate(a_cols, axis=1)                           # (N, M)

    # bn3 (single feature, training-mode biased stats), leaky_relu, softmax.
    mean3 = s3 / MN
    var3 = jnp.maximum(ss3 / MN - mean3 * mean3, 0.0)
    a_n = (a - mean3) * (lax.rsqrt(var3 + EPS) * bn3_g) + bn3_b
    e = jnp.where(a_n > 0, a_n, LEAKY_SLOPE * a_n)
    p = jnp.exp(e - jnp.max(e, axis=1, keepdims=True))
    alpha = p / jnp.sum(p, axis=1, keepdims=True)                 # (N, M) exact

    # ---- pass 3: alpha-weighted sum of the bn1-normalised first chunk ------
    acc = jnp.zeros((N, Ap), f32)
    inv1_1 = inv1[:, :Ap]
    shift1_1 = shift1[:, :Ap]
    for m in range(M):
        g1_n = slab(m, Ap) * inv1_1 + shift1_1                    # (N, Ap)
        acc = acc + alpha[:, m:m + 1] * g1_n

    # ---- bn2 over the N atoms, then sigmoid ---------------------------------
    mean2 = jnp.mean(acc, axis=0, keepdims=True)
    var2 = jnp.maximum(jnp.mean(acc * acc, axis=0, keepdims=True)
                       - mean2 * mean2, 0.0)
    out = (acc - mean2) * lax.rsqrt(var2 + EPS) * bn2_g + bn2_b
    atom_out = 1.0 / (1.0 + jnp.exp(-out))                        # (N, Ap)

    # ---- pooling + MLP head -------------------------------------------------
    crys = jnp.dot(pool_ref[...], atom_out.astype(bf16),
                   preferred_element_type=f32)                    # (N0, Ap)
    h = _softplus(crys)
    h = jnp.dot(h.astype(bf16), fc_w_ref[...],
                preferred_element_type=f32) + fc_b                # (N0, Hp)
    h = _softplus(h)
    o_ref[...] = (jnp.dot(h.astype(bf16), out_w_ref[...],
                          preferred_element_type=f32) + out_b)    # (N0, 128)


# ------------------------------ pallas wrapper -------------------------------

def _forward_impl(pp, atom_fea, nbr_fea, nbr_fea_idx, pool_mat, gather_mode):
    N, orig = atom_fea.shape
    _, M, B = nbr_fea.shape
    Op, Ap = pp["emb_w"].shape
    Bp = pp["w_bond"].shape[0]
    N0 = pool_mat.shape[0]
    bf16 = jnp.bfloat16

    # lane-dense, zero-padded inputs (padding is inert: padded weight rows = 0)
    atom_in = jnp.zeros((N, Op), bf16).at[:, :orig].set(atom_fea.astype(bf16))
    bond = jnp.zeros((N, M, Bp), bf16).at[:, :, :B].set(nbr_fea.astype(bf16))
    bond2d = bond.reshape(N, M * Bp)
    idx2d = nbr_fea_idx.astype(jnp.int32)
    pool = pool_mat.astype(bf16)

    kern = functools.partial(cgcnn_kernel, N=N, M=M, Ap=Ap, Bp=Bp,
                             gather=_GATHERS[gather_mode])

    vmem = pl.BlockSpec(memory_space=pltpu.MemorySpace.VMEM)
    smem = pl.BlockSpec(memory_space=pltpu.MemorySpace.SMEM)
    args = (atom_in, bond2d, idx2d, pool,
            pp["emb_w"], pp["w_self"], pp["w_nbr"], pp["w_bond"],
            pp["fc_w"], pp["out_w"], pp["wide"], pp["narrow"],
            pp["fc_b"], pp["scal"])

    out = pl.pallas_call(
        kern,
        out_shape=jax.ShapeDtypeStruct((N0, LANE), jnp.float32),
        in_specs=[vmem] * 13 + [smem],
        out_specs=vmem,
        compiler_params=pltpu.CompilerParams(
            vmem_limit_bytes=48 * 1024 * 1024),
    )(*args)
    return out[:, :1]          # real prediction lives in lane 0


@functools.partial(jax.jit, static_argnames=("gather_mode",))
def _cgcnn_forward_jit(pp, atom_fea, nbr_fea, nbr_fea_idx, pool_mat,
                       gather_mode):
    return _forward_impl(pp, atom_fea, nbr_fea, nbr_fea_idx, pool_mat,
                         gather_mode)


_GATHER_MODE = None


def cgcnn_forward(pp, atom_fea, nbr_fea, nbr_fea_idx, pool_mat):
    """Probe the dynamic-gather lowering once; fall back to one-hot if absent."""
    global _GATHER_MODE
    if _GATHER_MODE is None:
        try:
            _cgcnn_forward_jit.lower(pp, atom_fea, nbr_fea, nbr_fea_idx,
                                     pool_mat, gather_mode="take").compile()
            _GATHER_MODE = "take"
        except Exception:
            _GATHER_MODE = "onehot"
    return _cgcnn_forward_jit(pp, atom_fea, nbr_fea, nbr_fea_idx, pool_mat,
                              gather_mode=_GATHER_MODE)


# ------------------------------ parameter init -------------------------------

def init_params(key, orig, B, A, H):
    keys = jax.random.split(key, 5)

    def xavier(k, shape, gain=1.0):
        fan_in, fan_out = shape
        std = gain * (2.0 / (fan_in + fan_out)) ** 0.5
        return (std * jax.random.normal(k, shape)).astype(jnp.float32)

    relu_gain = 2.0 ** 0.5
    p = {}
    p["emb_w"] = xavier(keys[0], (orig, A))
    p["emb_b"] = jnp.zeros((1, A), jnp.float32)

    w_full = xavier(keys[1], (2 * A + B, 2 * A), gain=relu_gain)
    p["w_self"] = w_full[:A]
    p["w_nbr"] = w_full[A:2 * A]
    p["w_bond"] = w_full[2 * A:]
    p["b_full"] = jnp.zeros((1, 2 * A), jnp.float32)
    p["w_attn"] = xavier(keys[2], (1, 2 * A), gain=relu_gain)

    p["bn1_g"] = jnp.ones((1, 2 * A), jnp.float32)
    p["bn1_b"] = jnp.zeros((1, 2 * A), jnp.float32)
    p["bn2_g"] = jnp.ones((1, A), jnp.float32)
    p["bn2_b"] = jnp.zeros((1, A), jnp.float32)
    p["bn3_g"] = jnp.ones((1, 1), jnp.float32)
    p["bn3_b"] = jnp.zeros((1, 1), jnp.float32)

    p["fc_w"] = xavier(keys[3], (A, H))
    p["fc_b"] = jnp.zeros((1, H), jnp.float32)
    p["out_w"] = xavier(keys[4], (H, 1))
    p["out_b"] = jnp.zeros((1, 1), jnp.float32)
    return p


def _pad2(x, rows, cols):
    return jnp.zeros((rows, cols), x.dtype).at[:x.shape[0], :x.shape[1]].set(x)


def _chunk_pad_cols(x, A, Ap):
    """(R, 2A) -> (R, 2Ap): chunk1 -> cols [0,A), chunk2 -> cols [Ap,Ap+A)."""
    r = x.shape[0]
    out = jnp.zeros((r, 2 * Ap), x.dtype)
    out = out.at[:, :A].set(x[:, :A])
    out = out.at[:, Ap:Ap + A].set(x[:, A:])
    return out


def pack_params(p, lane=LANE):
    """One-time packing: lane-dense (multiple-of-128) zero-padded feature dims,
    bf16 MXU weights, tiny vectors consolidated, scalars destined for SMEM."""
    bf16 = jnp.bfloat16
    orig, A = p["emb_w"].shape
    B = p["w_bond"].shape[0]
    H = p["fc_w"].shape[1]
    rup = lambda v: ((v + lane - 1) // lane) * lane
    Op, Ap, Bp, Hp = rup(orig), rup(A), rup(B), rup(H)

    wide = jnp.concatenate([
        _chunk_pad_cols(p["b_full"], A, Ap),
        _chunk_pad_cols(p["w_attn"], A, Ap),
        _chunk_pad_cols(p["bn1_g"], A, Ap),
        _chunk_pad_cols(p["bn1_b"], A, Ap)], axis=0)              # (4, 2Ap) f32
    narrow = jnp.concatenate([
        _pad2(p["emb_b"], 1, Ap),
        _pad2(p["bn2_g"], 1, Ap),
        _pad2(p["bn2_b"], 1, Ap)], axis=0)                        # (3, Ap) f32
    scal = jnp.array([p["bn3_g"][0, 0], p["bn3_b"][0, 0],
                      p["out_b"][0, 0]], jnp.float32)             # (3,) SMEM

    return {
        "emb_w": _pad2(p["emb_w"], Op, Ap).astype(bf16),
        "w_self": _chunk_pad_cols(_pad2(p["w_self"], Ap, 2 * A), A, Ap).astype(bf16),
        "w_nbr": _chunk_pad_cols(_pad2(p["w_nbr"], Ap, 2 * A), A, Ap).astype(bf16),
        "w_bond": _chunk_pad_cols(_pad2(p["w_bond"], Bp, 2 * A), A, Ap).astype(bf16),
        "fc_w": _pad2(p["fc_w"], Ap, Hp).astype(bf16),
        "out_w": _pad2(p["out_w"], Hp, lane).astype(bf16),
        "wide": wide,
        "narrow": narrow,
        "fc_b": _pad2(p["fc_b"], 1, Hp),
        "scal": scal,
    }


# ---------------------- pure-JAX reference (f32) -----------------------------

def cgcnn_ref(p, atom_fea, nbr_fea, nbr_fea_idx, pool_mat):
    atom = atom_fea @ p["emb_w"] + p["emb_b"]
    N, M = nbr_fea_idx.shape
    A = atom.shape[1]
    nbr_atom = atom[nbr_fea_idx]                                  # (N, M, A)
    total = jnp.concatenate(
        [jnp.broadcast_to(atom[:, None, :], (N, M, A)), nbr_atom, nbr_fea],
        axis=2)
    w_full = jnp.concatenate([p["w_self"], p["w_nbr"], p["w_bond"]], axis=0)
    gated = total.reshape(N * M, -1) @ w_full + p["b_full"]       # (N*M, 2A)
    mean1 = gated.mean(axis=0)
    var1 = ((gated - mean1) ** 2).mean(axis=0)
    gated = (gated - mean1) / jnp.sqrt(var1 + EPS) * p["bn1_g"] + p["bn1_b"]
    a = gated @ p["w_attn"].T                                     # (N*M, 1)
    mean3 = a.mean()
    var3 = ((a - mean3) ** 2).mean()
    a = (a - mean3) / jnp.sqrt(var3 + EPS) * p["bn3_g"] + p["bn3_b"]
    e = jnp.where(a > 0, a, LEAKY_SLOPE * a).reshape(N, M)
    alpha = jax.nn.softmax(e, axis=1)
    g1 = gated.reshape(N, M, 2 * A)[..., :A]
    out = jnp.sum(alpha[..., None] * g1, axis=1)                  # (N, A)
    mean2 = out.mean(axis=0)
    var2 = ((out - mean2) ** 2).mean(axis=0)
    out = (out - mean2) / jnp.sqrt(var2 + EPS) * p["bn2_g"] + p["bn2_b"]
    atom_out = jax.nn.sigmoid(out)
    crys = pool_mat @ atom_out
    sp = lambda x: jnp.logaddexp(x, 0.0)
    h = sp(crys) @ p["fc_w"] + p["fc_b"]
    h = sp(h)
    return h @ p["out_w"] + p["out_b"]


# ----------------------------------- main ------------------------------------

if __name__ == "__main__":
    # small shapes consistent with the module's forward: N atoms, M neighbors,
    # N0 crystals.
    N, M = 8, 4
    ORIG_FEA, NBR_FEA = 16, 16      # orig_atom_fea_len, nbr_fea_len
    ATOM_FEA, H_FEA = 32, 128       # atom_fea_len, h_fea_len (n_conv=1, n_h=1)

    key = jax.random.PRNGKey(0)
    k1, k2, k3, kp = jax.random.split(key, 4)

    atom_fea = jax.random.normal(k1, (N, ORIG_FEA), jnp.float32)
    nbr_fea = jax.random.normal(k2, (N, M, NBR_FEA), jnp.float32)
    nbr_fea_idx = jax.random.randint(k3, (N, M), 0, N)

    # crystal_atom_idx: 2 crystals of 4 atoms each -> mean-pooling matrix
    crystal_atom_idx = [jnp.arange(0, 4), jnp.arange(4, 8)]
    N0 = len(crystal_atom_idx)
    pool_mat = jnp.zeros((N0, N), jnp.float32)
    for c, idx_map in enumerate(crystal_atom_idx):
        pool_mat = pool_mat.at[c, idx_map].set(1.0 / idx_map.shape[0])

    raw = init_params(kp, ORIG_FEA, NBR_FEA, ATOM_FEA, H_FEA)
    packed = pack_params(raw)

    out = cgcnn_forward(packed, atom_fea, nbr_fea, nbr_fea_idx, pool_mat)
    out = jax.block_until_ready(out)

    ref = cgcnn_ref(raw, atom_fea, nbr_fea, nbr_fea_idx, pool_mat)

    assert out.shape == (N0, 1)
    assert bool(jnp.all(jnp.isfinite(out)))
    # loose tolerance: kernel uses bf16 MXU operands vs the f32 reference
    assert bool(jnp.allclose(out, ref, rtol=1e-1, atol=1e-1)), (out, ref)
    print("KERNEL_OK")
</pallas_src>

<mosaic_0001>
module attributes {stable_mosaic.version = 11 : i64} {
  func.func @cgcnn_kernel(%arg0: memref<8x128xbf16, #tpu.memory_space<vmem>>, %arg1: memref<8x512xbf16, #tpu.memory_space<vmem>>, %arg2: memref<8x4xi32, #tpu.memory_space<vmem>>, %arg3: memref<2x8xbf16, #tpu.memory_space<vmem>>, %arg4: memref<128x128xbf16, #tpu.memory_space<vmem>>, %arg5: memref<128x256xbf16, #tpu.memory_space<vmem>>, %arg6: memref<128x256xbf16, #tpu.memory_space<vmem>>, %arg7: memref<128x256xbf16, #tpu.memory_space<vmem>>, %arg8: memref<128x128xbf16, #tpu.memory_space<vmem>>, %arg9: memref<128x128xbf16, #tpu.memory_space<vmem>>, %arg10: memref<4x256xf32, #tpu.memory_space<vmem>>, %arg11: memref<3x128xf32, #tpu.memory_space<vmem>>, %arg12: memref<1x128xf32, #tpu.memory_space<vmem>>, %arg13: memref<3xf32, #tpu.memory_space<smem>>, %arg14: memref<2x128xf32, #tpu.memory_space<vmem>>) attributes {dimension_semantics = [], scalar_prefetch = 0 : i64, scratch_operands = 0 : i64, tpu.core_type = #tpu.core_type<tc>} {
    %c0 = arith.constant 0 : index
    %c0_0 = arith.constant 0 : index
    %0 = vector.load %arg10[%c0, %c0_0] : memref<4x256xf32, #tpu.memory_space<vmem>>, vector<1x256xf32>
    %c1 = arith.constant 1 : index
    %c0_1 = arith.constant 0 : index
    %1 = vector.load %arg10[%c1, %c0_1] : memref<4x256xf32, #tpu.memory_space<vmem>>, vector<1x256xf32>
    %c2 = arith.constant 2 : index
    %c0_2 = arith.constant 0 : index
    %2 = vector.load %arg10[%c2, %c0_2] : memref<4x256xf32, #tpu.memory_space<vmem>>, vector<1x256xf32>
    %c3 = arith.constant 3 : index
    %c0_3 = arith.constant 0 : index
    %3 = vector.load %arg10[%c3, %c0_3] : memref<4x256xf32, #tpu.memory_space<vmem>>, vector<1x256xf32>
    %c0_4 = arith.constant 0 : index
    %c0_5 = arith.constant 0 : index
    %4 = vector.load %arg11[%c0_4, %c0_5] : memref<3x128xf32, #tpu.memory_space<vmem>>, vector<1x128xf32>
    %c1_6 = arith.constant 1 : index
    %c0_7 = arith.constant 0 : index
    %5 = vector.load %arg11[%c1_6, %c0_7] : memref<3x128xf32, #tpu.memory_space<vmem>>, vector<1x128xf32>
    %c2_8 = arith.constant 2 : index
    %c0_9 = arith.constant 0 : index
    %6 = vector.load %arg11[%c2_8, %c0_9] : memref<3x128xf32, #tpu.memory_space<vmem>>, vector<1x128xf32>
    %c0_10 = arith.constant 0 : index
    %c0_11 = arith.constant 0 : index
    %7 = vector.load %arg12[%c0_10, %c0_11] : memref<1x128xf32, #tpu.memory_space<vmem>>, vector<1x128xf32>
    %c0_12 = arith.constant 0 : index
    %8 = memref.load %arg13[%c0_12] : memref<3xf32, #tpu.memory_space<smem>>
    %c1_13 = arith.constant 1 : index
    %9 = memref.load %arg13[%c1_13] : memref<3xf32, #tpu.memory_space<smem>>
    %c2_14 = arith.constant 2 : index
    %10 = memref.load %arg13[%c2_14] : memref<3xf32, #tpu.memory_space<smem>>
    %c0_15 = arith.constant 0 : index
    %c0_16 = arith.constant 0 : index
    %11 = vector.load %arg2[%c0_15, %c0_16] : memref<8x4xi32, #tpu.memory_space<vmem>>, vector<8x4xi32>
    %c0_17 = arith.constant 0 : index
    %c0_18 = arith.constant 0 : index
    %12 = vector.load %arg7[%c0_17, %c0_18] : memref<128x256xbf16, #tpu.memory_space<vmem>>, vector<128x256xbf16>
    %c0_19 = arith.constant 0 : index
    %c0_20 = arith.constant 0 : index
    %13 = vector.load %arg0[%c0_19, %c0_20] : memref<8x128xbf16, #tpu.memory_space<vmem>>, vector<8x128xbf16>
    %c0_21 = arith.constant 0 : index
    %c0_22 = arith.constant 0 : index
    %14 = vector.load %arg4[%c0_21, %c0_22] : memref<128x128xbf16, #tpu.memory_space<vmem>>, vector<128x128xbf16>
    %cst = arith.constant dense<0.000000e+00> : vector<8x128xf32>
    %15 = tpu.matmul %13, %14, %cst {dimension_numbers = #tpu.dot_dimension_numbers<[1], [0], [0], [1], [0, 0, 1, 1], [], []>} : vector<8x128xbf16>, vector<128x128xbf16>, vector<8x128xf32> -> vector<8x128xf32>
    %16 = vector.broadcast %4 : vector<1x128xf32> to vector<8x128xf32>
    %17 = arith.addf %15, %16 : vector<8x128xf32>
    %18 = arith.truncf %17 : vector<8x128xf32> to vector<8x128xbf16>
    %c0_23 = arith.constant 0 : index
    %c0_24 = arith.constant 0 : index
    %19 = vector.load %arg5[%c0_23, %c0_24] : memref<128x256xbf16, #tpu.memory_space<vmem>>, vector<128x256xbf16>
    %cst_25 = arith.constant dense<0.000000e+00> : vector<8x256xf32>
    %20 = tpu.matmul %18, %19, %cst_25 {dimension_numbers = #tpu.dot_dimension_numbers<[1], [0], [0], [1], [0, 0, 1, 1], [], []>} : vector<8x128xbf16>, vector<128x256xbf16>, vector<8x256xf32> -> vector<8x256xf32>
    %21 = vector.broadcast %0 : vector<1x256xf32> to vector<8x256xf32>
    %22 = arith.addf %20, %21 : vector<8x256xf32>
    %c0_26 = arith.constant 0 : index
    %c0_27 = arith.constant 0 : index
    %23 = vector.load %arg6[%c0_26, %c0_27] : memref<128x256xbf16, #tpu.memory_space<vmem>>, vector<128x256xbf16>
    %cst_28 = arith.constant dense<0.000000e+00> : vector<8x256xf32>
    %24 = tpu.matmul %18, %23, %cst_28 {dimension_numbers = #tpu.dot_dimension_numbers<[1], [0], [0], [1], [0, 0, 1, 1], [], []>} : vector<8x128xbf16>, vector<128x256xbf16>, vector<8x256xf32> -> vector<8x256xf32>
    %cst_29 = arith.constant 0.000000e+00 : f32
    %25 = vector.broadcast %cst_29 : f32 to vector<1x256xf32>
    %cst_30 = arith.constant 0.000000e+00 : f32
    %26 = vector.broadcast %cst_30 : f32 to vector<1x256xf32>
    %c0_31 = arith.constant 0 : index
    %c0_32 = arith.constant 0 : index
    %27 = vector.load %arg1[%c0_31, %c0_32] : memref<8x512xbf16, #tpu.memory_space<vmem>>, vector<8x128xbf16>
    %28 = vector.extract_strided_slice %11 {offsets = [0, 0], sizes = [8, 1], strides = [1, 1]} : vector<8x4xi32> to vector<8x1xi32>
    %29 = tpu.iota {dimensions = array<i32: 1>} : vector<8x8xi32>
    %30 = vector.broadcast %28 : vector<8x1xi32> to vector<8x8xi32>
    %31 = arith.cmpi eq, %29, %30 : vector<8x8xi32>
    %32 = arith.extui %31 : vector<8x8xi1> to vector<8x8xi32>
    %33 = arith.sitofp %32 : vector<8x8xi32> to vector<8x8xf32>
    %cst_33 = arith.constant dense<0.000000e+00> : vector<8x256xf32>
    %34 = tpu.matmul %33, %24, %cst_33 {dimension_numbers = #tpu.dot_dimension_numbers<[1], [0], [0], [1], [0, 0, 1, 1], [], []>} : vector<8x8xf32>, vector<8x256xf32>, vector<8x256xf32> -> vector<8x256xf32>
    %35 = arith.addf %22, %34 : vector<8x256xf32>
    %cst_34 = arith.constant dense<0.000000e+00> : vector<8x256xf32>
    %36 = tpu.matmul %27, %12, %cst_34 {dimension_numbers = #tpu.dot_dimension_numbers<[1], [0], [0], [1], [0, 0, 1, 1], [], []>} : vector<8x128xbf16>, vector<128x256xbf16>, vector<8x256xf32> -> vector<8x256xf32>
    %37 = arith.addf %35, %36 : vector<8x256xf32>
    %cst_35 = arith.constant dense<0.000000e+00> : vector<256xf32>
    %38 = vector.multi_reduction <add>, %37, %cst_35 [0] : vector<8x256xf32> to vector<256xf32>
    %39 = vector.shape_cast %38 : vector<256xf32> to vector<1x256xf32>
    %40 = arith.addf %25, %39 : vector<1x256xf32>
    %41 = arith.mulf %37, %37 : vector<8x256xf32>
    %cst_36 = arith.constant dense<0.000000e+00> : vector<256xf32>
    %42 = vector.multi_reduction <add>, %41, %cst_36 [0] : vector<8x256xf32> to vector<256xf32>
    %43 = vector.shape_cast %42 : vector<256xf32> to vector<1x256xf32>
    %44 = arith.addf %26, %43 : vector<1x256xf32>
    %c0_37 = arith.constant 0 : index
    %c128 = arith.constant 128 : index
    %45 = vector.load %arg1[%c0_37, %c128] : memref<8x512xbf16, #tpu.memory_space<vmem>>, vector<8x128xbf16>
    %46 = vector.extract_strided_slice %11 {offsets = [0, 1], sizes = [8, 1], strides = [1, 1]} : vector<8x4xi32> to vector<8x1xi32>
    %47 = tpu.iota {dimensions = array<i32: 1>} : vector<8x8xi32>
    %48 = vector.broadcast %46 : vector<8x1xi32> to vector<8x8xi32>
    %49 = arith.cmpi eq, %47, %48 : vector<8x8xi32>
    %50 = arith.extui %49 : vector<8x8xi1> to vector<8x8xi32>
    %51 = arith.sitofp %50 : vector<8x8xi32> to vector<8x8xf32>
    %cst_38 = arith.constant dense<0.000000e+00> : vector<8x256xf32>
    %52 = tpu.matmul %51, %24, %cst_38 {dimension_numbers = #tpu.dot_dimension_numbers<[1], [0], [0], [1], [0, 0, 1, 1], [], []>} : vector<8x8xf32>, vector<8x256xf32>, vector<8x256xf32> -> vector<8x256xf32>
    %53 = arith.addf %22, %52 : vector<8x256xf32>
    %cst_39 = arith.constant dense<0.000000e+00> : vector<8x256xf32>
    %54 = tpu.matmul %45, %12, %cst_39 {dimension_numbers = #tpu.dot_dimension_numbers<[1], [0], [0], [1], [0, 0, 1, 1], [], []>} : vector<8x128xbf16>, vector<128x256xbf16>, vector<8x256xf32> -> vector<8x256xf32>
    %55 = arith.addf %53, %54 : vector<8x256xf32>
    %cst_40 = arith.constant dense<0.000000e+00> : vector<256xf32>
    %56 = vector.multi_reduction <add>, %55, %cst_40 [0] : vector<8x256xf32> to vector<256xf32>
    %57 = vector.shape_cast %56 : vector<256xf32> to vector<1x256xf32>
    %58 = arith.addf %40, %57 : vector<1x256xf32>
    %59 = arith.mulf %55, %55 : vector<8x256xf32>
    %cst_41 = arith.constant dense<0.000000e+00> : vector<256xf32>
    %60 = vector.multi_reduction <add>, %59, %cst_41 [0] : vector<8x256xf32> to vector<256xf32>
    %61 = vector.shape_cast %60 : vector<256xf32> to vector<1x256xf32>
    %62 = arith.addf %44, %61 : vector<1x256xf32>
    %c0_42 = arith.constant 0 : index
    %c256 = arith.constant 256 : index
    %63 = vector.load %arg1[%c0_42, %c256] : memref<8x512xbf16, #tpu.memory_space<vmem>>, vector<8x128xbf16>
    %64 = vector.extract_strided_slice %11 {offsets = [0, 2], sizes = [8, 1], strides = [1, 1]} : vector<8x4xi32> to vector<8x1xi32>
    %65 = tpu.iota {dimensions = array<i32: 1>} : vector<8x8xi32>
    %66 = vector.broadcast %64 : vector<8x1xi32> to vector<8x8xi32>
    %67 = arith.cmpi eq, %65, %66 : vector<8x8xi32>
    %68 = arith.extui %67 : vector<8x8xi1> to vector<8x8xi32>
    %69 = arith.sitofp %68 : vector<8x8xi32> to vector<8x8xf32>
    %cst_43 = arith.constant dense<0.000000e+00> : vector<8x256xf32>
    %70 = tpu.matmul %69, %24, %cst_43 {dimension_numbers = #tpu.dot_dimension_numbers<[1], [0], [0], [1], [0, 0, 1, 1], [], []>} : vector<8x8xf32>, vector<8x256xf32>, vector<8x256xf32> -> vector<8x256xf32>
    %71 = arith.addf %22, %70 : vector<8x256xf32>
    %cst_44 = arith.constant dense<0.000000e+00> : vector<8x256xf32>
    %72 = tpu.matmul %63, %12, %cst_44 {dimension_numbers = #tpu.dot_dimension_numbers<[1], [0], [0], [1], [0, 0, 1, 1], [], []>} : vector<8x128xbf16>, vector<128x256xbf16>, vector<8x256xf32> -> vector<8x256xf32>
    %73 = arith.addf %71, %72 : vector<8x256xf32>
    %cst_45 = arith.constant dense<0.000000e+00> : vector<256xf32>
    %74 = vector.multi_reduction <add>, %73, %cst_45 [0] : vector<8x256xf32> to vector<256xf32>
    %75 = vector.shape_cast %74 : vector<256xf32> to vector<1x256xf32>
    %76 = arith.addf %58, %75 : vector<1x256xf32>
    %77 = arith.mulf %73, %73 : vector<8x256xf32>
    %cst_46 = arith.constant dense<0.000000e+00> : vector<256xf32>
    %78 = vector.multi_reduction <add>, %77, %cst_46 [0] : vector<8x256xf32> to vector<256xf32>
    %79 = vector.shape_cast %78 : vector<256xf32> to vector<1x256xf32>
    %80 = arith.addf %62, %79 : vector<1x256xf32>
    %c0_47 = arith.constant 0 : index
    %c384 = arith.constant 384 : index
    %81 = vector.load %arg1[%c0_47, %c384] : memref<8x512xbf16, #tpu.memory_space<vmem>>, vector<8x128xbf16>
    %82 = vector.extract_strided_slice %11 {offsets = [0, 3], sizes = [8, 1], strides = [1, 1]} : vector<8x4xi32> to vector<8x1xi32>
    %83 = tpu.iota {dimensions = array<i32: 1>} : vector<8x8xi32>
    %84 = vector.broadcast %82 : vector<8x1xi32> to vector<8x8xi32>
    %85 = arith.cmpi eq, %83, %84 : vector<8x8xi32>
    %86 = arith.extui %85 : vector<8x8xi1> to vector<8x8xi32>
    %87 = arith.sitofp %86 : vector<8x8xi32> to vector<8x8xf32>
    %cst_48 = arith.constant dense<0.000000e+00> : vector<8x256xf32>
    %88 = tpu.matmul %87, %24, %cst_48 {dimension_numbers = #tpu.dot_dimension_numbers<[1], [0], [0], [1], [0, 0, 1, 1], [], []>} : vector<8x8xf32>, vector<8x256xf32>, vector<8x256xf32> -> vector<8x256xf32>
    %89 = arith.addf %22, %88 : vector<8x256xf32>
    %cst_49 = arith.constant dense<0.000000e+00> : vector<8x256xf32>
    %90 = tpu.matmul %81, %12, %cst_49 {dimension_numbers = #tpu.dot_dimension_numbers<[1], [0], [0], [1], [0, 0, 1, 1], [], []>} : vector<8x128xbf16>, vector<128x256xbf16>, vector<8x256xf32> -> vector<8x256xf32>
    %91 = arith.addf %89, %90 : vector<8x256xf32>
    %cst_50 = arith.constant dense<0.000000e+00> : vector<256xf32>
    %92 = vector.multi_reduction <add>, %91, %cst_50 [0] : vector<8x256xf32> to vector<256xf32>
    %93 = vector.shape_cast %92 : vector<256xf32> to vector<1x256xf32>
    %94 = arith.addf %76, %93 : vector<1x256xf32>
    %95 = arith.mulf %91, %91 : vector<8x256xf32>
    %cst_51 = arith.constant dense<0.000000e+00> : vector<256xf32>
    %96 = vector.multi_reduction <add>, %95, %cst_51 [0] : vector<8x256xf32> to vector<256xf32>
    %97 = vector.shape_cast %96 : vector<256xf32> to vector<1x256xf32>
    %98 = arith.addf %80, %97 : vector<1x256xf32>
    %cst_52 = arith.constant 3.200000e+01 : f32
    %99 = vector.broadcast %cst_52 : f32 to vector<1x256xf32>
    %100 = arith.divf %94, %99 : vector<1x256xf32>
    %cst_53 = arith.constant 3.200000e+01 : f32
    %101 = vector.broadcast %cst_53 : f32 to vector<1x256xf32>
    %102 = arith.divf %98, %101 : vector<1x256xf32>
    %103 = arith.mulf %100, %100 : vector<1x256xf32>
    %104 = arith.subf %102, %103 : vector<1x256xf32>
    %cst_54 = arith.constant 0.000000e+00 : f32
    %105 = vector.broadcast %cst_54 : f32 to vector<1x256xf32>
    %106 = arith.maximumf %104, %105 : vector<1x256xf32>
    %cst_55 = arith.constant 9.99999974E-6 : f32
    %107 = vector.broadcast %cst_55 : f32 to vector<1x256xf32>
    %108 = arith.addf %106, %107 : vector<1x256xf32>
    %109 = math.rsqrt %108 : vector<1x256xf32>
    %110 = arith.mulf %109, %2 : vector<1x256xf32>
    %111 = arith.mulf %100, %110 : vector<1x256xf32>
    %112 = arith.subf %3, %111 : vector<1x256xf32>
    %c0_56 = arith.constant 0 : index
    %c0_57 = arith.constant 0 : index
    %113 = vector.load %arg1[%c0_56, %c0_57] : memref<8x512xbf16, #tpu.memory_space<vmem>>, vector<8x128xbf16>
    %114 = vector.extract_strided_slice %11 {offsets = [0, 0], sizes = [8, 1], strides = [1, 1]} : vector<8x4xi32> to vector<8x1xi32>
    %115 = tpu.iota {dimensions = array<i32: 1>} : vector<8x8xi32>
    %116 = vector.broadcast %114 : vector<8x1xi32> to vector<8x8xi32>
    %117 = arith.cmpi eq, %115, %116 : vector<8x8xi32>
    %118 = arith.extui %117 : vector<8x8xi1> to vector<8x8xi32>
    %119 = arith.sitofp %118 : vector<8x8xi32> to vector<8x8xf32>
    %cst_58 = arith.constant dense<0.000000e+00> : vector<8x256xf32>
    %120 = tpu.matmul %119, %24, %cst_58 {dimension_numbers = #tpu.dot_dimension_numbers<[1], [0], [0], [1], [0, 0, 1, 1], [], []>} : vector<8x8xf32>, vector<8x256xf32>, vector<8x256xf32> -> vector<8x256xf32>
    %121 = arith.addf %22, %120 : vector<8x256xf32>
    %cst_59 = arith.constant dense<0.000000e+00> : vector<8x256xf32>
    %122 = tpu.matmul %113, %12, %cst_59 {dimension_numbers = #tpu.dot_dimension_numbers<[1], [0], [0], [1], [0, 0, 1, 1], [], []>} : vector<8x128xbf16>, vector<128x256xbf16>, vector<8x256xf32> -> vector<8x256xf32>
    %123 = arith.addf %121, %122 : vector<8x256xf32>
    %124 = vector.broadcast %110 : vector<1x256xf32> to vector<8x256xf32>
    %125 = arith.mulf %123, %124 : vector<8x256xf32>
    %126 = vector.broadcast %112 : vector<1x256xf32> to vector<8x256xf32>
    %127 = arith.addf %125, %126 : vector<8x256xf32>
    %128 = vector.broadcast %1 : vector<1x256xf32> to vector<8x256xf32>
    %129 = arith.mulf %127, %128 : vector<8x256xf32>
    %cst_60 = arith.constant dense<0.000000e+00> : vector<8xf32>
    %130 = vector.multi_reduction <add>, %129, %cst_60 [1] : vector<8x256xf32> to vector<8xf32>
    %131 = vector.shape_cast %130 : vector<8xf32> to vector<8x1xf32>
    %132 = vector.shape_cast %131 : vector<8x1xf32> to vector<1x8x1xf32>
    %cst_61 = arith.constant dense<0.000000e+00> : vector<1xf32>
    %133 = vector.multi_reduction <add>, %132, %cst_61 [1, 2] : vector<1x8x1xf32> to vector<1xf32>
    %134 = vector.shape_cast %133 : vector<1xf32> to vector<1x1x1xf32>
    %135 = vector.extract %134[0, 0, 0] : f32 from vector<1x1x1xf32>
    %cst_62 = arith.constant 0.000000e+00 : f32
    %136 = arith.addf %cst_62, %135 : f32
    %137 = arith.mulf %131, %131 : vector<8x1xf32>
    %138 = vector.shape_cast %137 : vector<8x1xf32> to vector<1x8x1xf32>
    %cst_63 = arith.constant dense<0.000000e+00> : vector<1xf32>
    %139 = vector.multi_reduction <add>, %138, %cst_63 [1, 2] : vector<1x8x1xf32> to vector<1xf32>
    %140 = vector.shape_cast %139 : vector<1xf32> to vector<1x1x1xf32>
    %141 = vector.extract %140[0, 0, 0] : f32 from vector<1x1x1xf32>
    %cst_64 = arith.constant 0.000000e+00 : f32
    %142 = arith.addf %cst_64, %141 : f32
    %c0_65 = arith.constant 0 : index
    %c128_66 = arith.constant 128 : index
    %143 = vector.load %arg1[%c0_65, %c128_66] : memref<8x512xbf16, #tpu.memory_space<vmem>>, vector<8x128xbf16>
    %144 = vector.extract_strided_slice %11 {offsets = [0, 1], sizes = [8, 1], strides = [1, 1]} : vector<8x4xi32> to vector<8x1xi32>
    %145 = tpu.iota {dimensions = array<i32: 1>} : vector<8x8xi32>
    %146 = vector.broadcast %144 : vector<8x1xi32> to vector<8x8xi32>
    %147 = arith.cmpi eq, %145, %146 : vector<8x8xi32>
    %148 = arith.extui %147 : vector<8x8xi1> to vector<8x8xi32>
    %149 = arith.sitofp %148 : vector<8x8xi32> to vector<8x8xf32>
    %cst_67 = arith.constant dense<0.000000e+00> : vector<8x256xf32>
    %150 = tpu.matmul %149, %24, %cst_67 {dimension_numbers = #tpu.dot_dimension_numbers<[1], [0], [0], [1], [0, 0, 1, 1], [], []>} : vector<8x8xf32>, vector<8x256xf32>, vector<8x256xf32> -> vector<8x256xf32>
    %151 = arith.addf %22, %150 : vector<8x256xf32>
    %cst_68 = arith.constant dense<0.000000e+00> : vector<8x256xf32>
    %152 = tpu.matmul %143, %12, %cst_68 {dimension_numbers = #tpu.dot_dimension_numbers<[1], [0], [0], [1], [0, 0, 1, 1], [], []>} : vector<8x128xbf16>, vector<128x256xbf16>, vector<8x256xf32> -> vector<8x256xf32>
    %153 = arith.addf %151, %152 : vector<8x256xf32>
    %154 = vector.broadcast %110 : vector<1x256xf32> to vector<8x256xf32>
    %155 = arith.mulf %153, %154 : vector<8x256xf32>
    %156 = vector.broadcast %112 : vector<1x256xf32> to vector<8x256xf32>
    %157 = arith.addf %155, %156 : vector<8x256xf32>
    %158 = vector.broadcast %1 : vector<1x256xf32> to vector<8x256xf32>
    %159 = arith.mulf %157, %158 : vector<8x256xf32>
    %cst_69 = arith.constant dense<0.000000e+00> : vector<8xf32>
    %160 = vector.multi_reduction <add>, %159, %cst_69 [1] : vector<8x256xf32> to vector<8xf32>
    %161 = vector.shape_cast %160 : vector<8xf32> to vector<8x1xf32>
    %162 = vector.shape_cast %161 : vector<8x1xf32> to vector<1x8x1xf32>
    %cst_70 = arith.constant dense<0.000000e+00> : vector<1xf32>
    %163 = vector.multi_reduction <add>, %162, %cst_70 [1, 2] : vector<1x8x1xf32> to vector<1xf32>
    %164 = vector.shape_cast %163 : vector<1xf32> to vector<1x1x1xf32>
    %165 = vector.extract %164[0, 0, 0] : f32 from vector<1x1x1xf32>
    %166 = arith.addf %136, %165 : f32
    %167 = arith.mulf %161, %161 : vector<8x1xf32>
    %168 = vector.shape_cast %167 : vector<8x1xf32> to vector<1x8x1xf32>
    %cst_71 = arith.constant dense<0.000000e+00> : vector<1xf32>
    %169 = vector.multi_reduction <add>, %168, %cst_71 [1, 2] : vector<1x8x1xf32> to vector<1xf32>
    %170 = vector.shape_cast %169 : vector<1xf32> to vector<1x1x1xf32>
    %171 = vector.extract %170[0, 0, 0] : f32 from vector<1x1x1xf32>
    %172 = arith.addf %142, %171 : f32
    %c0_72 = arith.constant 0 : index
    %c256_73 = arith.constant 256 : index
    %173 = vector.load %arg1[%c0_72, %c256_73] : memref<8x512xbf16, #tpu.memory_space<vmem>>, vector<8x128xbf16>
    %174 = vector.extract_strided_slice %11 {offsets = [0, 2], sizes = [8, 1], strides = [1, 1]} : vector<8x4xi32> to vector<8x1xi32>
    %175 = tpu.iota {dimensions = array<i32: 1>} : vector<8x8xi32>
    %176 = vector.broadcast %174 : vector<8x1xi32> to vector<8x8xi32>
    %177 = arith.cmpi eq, %175, %176 : vector<8x8xi32>
    %178 = arith.extui %177 : vector<8x8xi1> to vector<8x8xi32>
    %179 = arith.sitofp %178 : vector<8x8xi32> to vector<8x8xf32>
    %cst_74 = arith.constant dense<0.000000e+00> : vector<8x256xf32>
    %180 = tpu.matmul %179, %24, %cst_74 {dimension_numbers = #tpu.dot_dimension_numbers<[1], [0], [0], [1], [0, 0, 1, 1], [], []>} : vector<8x8xf32>, vector<8x256xf32>, vector<8x256xf32> -> vector<8x256xf32>
    %181 = arith.addf %22, %180 : vector<8x256xf32>
    %cst_75 = arith.constant dense<0.000000e+00> : vector<8x256xf32>
    %182 = tpu.matmul %173, %12, %cst_75 {dimension_numbers = #tpu.dot_dimension_numbers<[1], [0], [0], [1], [0, 0, 1, 1], [], []>} : vector<8x128xbf16>, vector<128x256xbf16>, vector<8x256xf32> -> vector<8x256xf32>
    %183 = arith.addf %181, %182 : vector<8x256xf32>
    %184 = vector.broadcast %110 : vector<1x256xf32> to vector<8x256xf32>
    %185 = arith.mulf %183, %184 : vector<8x256xf32>
    %186 = vector.broadcast %112 : vector<1x256xf32> to vector<8x256xf32>
    %187 = arith.addf %185, %186 : vector<8x256xf32>
    %188 = vector.broadcast %1 : vector<1x256xf32> to vector<8x256xf32>
    %189 = arith.mulf %187, %188 : vector<8x256xf32>
    %cst_76 = arith.constant dense<0.000000e+00> : vector<8xf32>
    %190 = vector.multi_reduction <add>, %189, %cst_76 [1] : vector<8x256xf32> to vector<8xf32>
    %191 = vector.shape_cast %190 : vector<8xf32> to vector<8x1xf32>
    %192 = vector.shape_cast %191 : vector<8x1xf32> to vector<1x8x1xf32>
    %cst_77 = arith.constant dense<0.000000e+00> : vector<1xf32>
    %193 = vector.multi_reduction <add>, %192, %cst_77 [1, 2] : vector<1x8x1xf32> to vector<1xf32>
    %194 = vector.shape_cast %193 : vector<1xf32> to vector<1x1x1xf32>
    %195 = vector.extract %194[0, 0, 0] : f32 from vector<1x1x1xf32>
    %196 = arith.addf %166, %195 : f32
    %197 = arith.mulf %191, %191 : vector<8x1xf32>
    %198 = vector.shape_cast %197 : vector<8x1xf32> to vector<1x8x1xf32>
    %cst_78 = arith.constant dense<0.000000e+00> : vector<1xf32>
    %199 = vector.multi_reduction <add>, %198, %cst_78 [1, 2] : vector<1x8x1xf32> to vector<1xf32>
    %200 = vector.shape_cast %199 : vector<1xf32> to vector<1x1x1xf32>
    %201 = vector.extract %200[0, 0, 0] : f32 from vector<1x1x1xf32>
    %202 = arith.addf %172, %201 : f32
    %c0_79 = arith.constant 0 : index
    %c384_80 = arith.constant 384 : index
    %203 = vector.load %arg1[%c0_79, %c384_80] : memref<8x512xbf16, #tpu.memory_space<vmem>>, vector<8x128xbf16>
    %204 = vector.extract_strided_slice %11 {offsets = [0, 3], sizes = [8, 1], strides = [1, 1]} : vector<8x4xi32> to vector<8x1xi32>
    %205 = tpu.iota {dimensions = array<i32: 1>} : vector<8x8xi32>
    %206 = vector.broadcast %204 : vector<8x1xi32> to vector<8x8xi32>
    %207 = arith.cmpi eq, %205, %206 : vector<8x8xi32>
    %208 = arith.extui %207 : vector<8x8xi1> to vector<8x8xi32>
    %209 = arith.sitofp %208 : vector<8x8xi32> to vector<8x8xf32>
    %cst_81 = arith.constant dense<0.000000e+00> : vector<8x256xf32>
    %210 = tpu.matmul %209, %24, %cst_81 {dimension_numbers = #tpu.dot_dimension_numbers<[1], [0], [0], [1], [0, 0, 1, 1], [], []>} : vector<8x8xf32>, vector<8x256xf32>, vector<8x256xf32> -> vector<8x256xf32>
    %211 = arith.addf %22, %210 : vector<8x256xf32>
    %cst_82 = arith.constant dense<0.000000e+00> : vector<8x256xf32>
    %212 = tpu.matmul %203, %12, %cst_82 {dimension_numbers = #tpu.dot_dimension_numbers<[1], [0], [0], [1], [0, 0, 1, 1], [], []>} : vector<8x128xbf16>, vector<128x256xbf16>, vector<8x256xf32> -> vector<8x256xf32>
    %213 = arith.addf %211, %212 : vector<8x256xf32>
    %214 = vector.broadcast %110 : vector<1x256xf32> to vector<8x256xf32>
    %215 = arith.mulf %213, %214 : vector<8x256xf32>
    %216 = vector.broadcast %112 : vector<1x256xf32> to vector<8x256xf32>
    %217 = arith.addf %215, %216 : vector<8x256xf32>
    %218 = vector.broadcast %1 : vector<1x256xf32> to vector<8x256xf32>
    %219 = arith.mulf %217, %218 : vector<8x256xf32>
    %cst_83 = arith.constant dense<0.000000e+00> : vector<8xf32>
    %220 = vector.multi_reduction <add>, %219, %cst_83 [1] : vector<8x256xf32> to vector<8xf32>
    %221 = vector.shape_cast %220 : vector<8xf32> to vector<8x1xf32>
    %222 = vector.shape_cast %221 : vector<8x1xf32> to vector<1x8x1xf32>
    %cst_84 = arith.constant dense<0.000000e+00> : vector<1xf32>
    %223 = vector.multi_reduction <add>, %222, %cst_84 [1, 2] : vector<1x8x1xf32> to vector<1xf32>
    %224 = vector.shape_cast %223 : vector<1xf32> to vector<1x1x1xf32>
    %225 = vector.extract %224[0, 0, 0] : f32 from vector<1x1x1xf32>
    %226 = arith.addf %196, %225 : f32
    %227 = arith.mulf %221, %221 : vector<8x1xf32>
    %228 = vector.shape_cast %227 : vector<8x1xf32> to vector<1x8x1xf32>
    %cst_85 = arith.constant dense<0.000000e+00> : vector<1xf32>
    %229 = vector.multi_reduction <add>, %228, %cst_85 [1, 2] : vector<1x8x1xf32> to vector<1xf32>
    %230 = vector.shape_cast %229 : vector<1xf32> to vector<1x1x1xf32>
    %231 = vector.extract %230[0, 0, 0] : f32 from vector<1x1x1xf32>
    %232 = arith.addf %202, %231 : f32
    %233 = tpu.concatenate %131, %161, %191, %221 in 1 : vector<8x1xf32>, vector<8x1xf32>, vector<8x1xf32>, vector<8x1xf32> -> vector<8x4xf32>
    %cst_86 = arith.constant 3.200000e+01 : f32
    %234 = arith.divf %226, %cst_86 : f32
    %cst_87 = arith.constant 3.200000e+01 : f32
    %235 = arith.divf %232, %cst_87 : f32
    %236 = arith.mulf %234, %234 : f32
    %237 = arith.subf %235, %236 : f32
    %cst_88 = arith.constant 0.000000e+00 : f32
    %238 = arith.maximumf %237, %cst_88 : f32
    %239 = vector.broadcast %234 : f32 to vector<8x4xf32>
    %240 = arith.subf %233, %239 : vector<8x4xf32>
    %cst_89 = arith.constant 9.99999974E-6 : f32
    %241 = arith.addf %238, %cst_89 : f32
    %242 = math.rsqrt %241 : f32
    %243 = arith.mulf %242, %8 : f32
    %244 = vector.broadcast %243 : f32 to vector<8x4xf32>
    %245 = arith.mulf %240, %244 : vector<8x4xf32>
    %246 = vector.broadcast %9 : f32 to vector<8x4xf32>
    %247 = arith.addf %245, %246 : vector<8x4xf32>
    %cst_90 = arith.constant 0.000000e+00 : f32
    %248 = vector.broadcast %cst_90 : f32 to vector<8x4xf32>
    %249 = arith.cmpf ogt, %247, %248 : vector<8x4xf32>
    %cst_91 = arith.constant 0.00999999977 : f32
    %250 = vector.broadcast %cst_91 : f32 to vector<8x4xf32>
    %251 = arith.mulf %250, %247 : vector<8x4xf32>
    %252 = arith.select %249, %247, %251 : vector<8x4xi1>, vector<8x4xf32>
    %cst_92 = arith.constant dense<0xFF800000> : vector<8xf32>
    %253 = vector.multi_reduction <maximumf>, %252, %cst_92 [1] : vector<8x4xf32> to vector<8xf32>
    %254 = vector.shape_cast %253 : vector<8xf32> to vector<8x1xf32>
    %255 = vector.broadcast %254 : vector<8x1xf32> to vector<8x4xf32>
    %256 = arith.subf %252, %255 : vector<8x4xf32>
    %257 = math.exp %256 : vector<8x4xf32>
    %cst_93 = arith.constant dense<0.000000e+00> : vector<8xf32>
    %258 = vector.multi_reduction <add>, %257, %cst_93 [1] : vector<8x4xf32> to vector<8xf32>
    %259 = vector.shape_cast %258 : vector<8xf32> to vector<8x1xf32>
    %260 = vector.broadcast %259 : vector<8x1xf32> to vector<8x4xf32>
    %261 = arith.divf %257, %260 : vector<8x4xf32>
    %cst_94 = arith.constant 0.000000e+00 : f32
    %262 = vector.broadcast %cst_94 : f32 to vector<8x128xf32>
    %263 = vector.extract_strided_slice %110 {offsets = [0, 0], sizes = [1, 128], strides = [1, 1]} : vector<1x256xf32> to vector<1x128xf32>
    %264 = vector.extract_strided_slice %112 {offsets = [0, 0], sizes = [1, 128], strides = [1, 1]} : vector<1x256xf32> to vector<1x128xf32>
    %c0_95 = arith.constant 0 : index
    %c0_96 = arith.constant 0 : index
    %265 = vector.load %arg1[%c0_95, %c0_96] : memref<8x512xbf16, #tpu.memory_space<vmem>>, vector<8x128xbf16>
    %266 = vector.extract_strided_slice %22 {offsets = [0, 0], sizes = [8, 128], strides = [1, 1]} : vector<8x256xf32> to vector<8x128xf32>
    %267 = vector.extract_strided_slice %24 {offsets = [0, 0], sizes = [8, 128], strides = [1, 1]} : vector<8x256xf32> to vector<8x128xf32>
    %268 = vector.extract_strided_slice %11 {offsets = [0, 0], sizes = [8, 1], strides = [1, 1]} : vector<8x4xi32> to vector<8x1xi32>
    %269 = tpu.iota {dimensions = array<i32: 1>} : vector<8x8xi32>
    %270 = vector.broadcast %268 : vector<8x1xi32> to vector<8x8xi32>
    %271 = arith.cmpi eq, %269, %270 : vector<8x8xi32>
    %272 = arith.extui %271 : vector<8x8xi1> to vector<8x8xi32>
    %273 = arith.sitofp %272 : vector<8x8xi32> to vector<8x8xf32>
    %cst_97 = arith.constant dense<0.000000e+00> : vector<8x128xf32>
    %274 = tpu.matmul %273, %267, %cst_97 {dimension_numbers = #tpu.dot_dimension_numbers<[1], [0], [0], [1], [0, 0, 1, 1], [], []>} : vector<8x8xf32>, vector<8x128xf32>, vector<8x128xf32> -> vector<8x128xf32>
    %275 = arith.addf %266, %274 : vector<8x128xf32>
    %276 = vector.extract_strided_slice %12 {offsets = [0, 0], sizes = [128, 128], strides = [1, 1]} : vector<128x256xbf16> to vector<128x128xbf16>
    %cst_98 = arith.constant dense<0.000000e+00> : vector<8x128xf32>
    %277 = tpu.matmul %265, %276, %cst_98 {dimension_numbers = #tpu.dot_dimension_numbers<[1], [0], [0], [1], [0, 0, 1, 1], [], []>} : vector<8x128xbf16>, vector<128x128xbf16>, vector<8x128xf32> -> vector<8x128xf32>
    %278 = arith.addf %275, %277 : vector<8x128xf32>
    %279 = vector.broadcast %263 : vector<1x128xf32> to vector<8x128xf32>
    %280 = arith.mulf %278, %279 : vector<8x128xf32>
    %281 = vector.broadcast %264 : vector<1x128xf32> to vector<8x128xf32>
    %282 = arith.addf %280, %281 : vector<8x128xf32>
    %283 = vector.extract_strided_slice %261 {offsets = [0, 0], sizes = [8, 1], strides = [1, 1]} : vector<8x4xf32> to vector<8x1xf32>
    %284 = vector.broadcast %283 : vector<8x1xf32> to vector<8x128xf32>
    %285 = arith.mulf %284, %282 : vector<8x128xf32>
    %286 = arith.addf %262, %285 : vector<8x128xf32>
    %c0_99 = arith.constant 0 : index
    %c128_100 = arith.constant 128 : index
    %287 = vector.load %arg1[%c0_99, %c128_100] : memref<8x512xbf16, #tpu.memory_space<vmem>>, vector<8x128xbf16>
    %288 = vector.extract_strided_slice %22 {offsets = [0, 0], sizes = [8, 128], strides = [1, 1]} : vector<8x256xf32> to vector<8x128xf32>
    %289 = vector.extract_strided_slice %24 {offsets = [0, 0], sizes = [8, 128], strides = [1, 1]} : vector<8x256xf32> to vector<8x128xf32>
    %290 = vector.extract_strided_slice %11 {offsets = [0, 1], sizes = [8, 1], strides = [1, 1]} : vector<8x4xi32> to vector<8x1xi32>
    %291 = tpu.iota {dimensions = array<i32: 1>} : vector<8x8xi32>
    %292 = vector.broadcast %290 : vector<8x1xi32> to vector<8x8xi32>
    %293 = arith.cmpi eq, %291, %292 : vector<8x8xi32>
    %294 = arith.extui %293 : vector<8x8xi1> to vector<8x8xi32>
    %295 = arith.sitofp %294 : vector<8x8xi32> to vector<8x8xf32>
    %cst_101 = arith.constant dense<0.000000e+00> : vector<8x128xf32>
    %296 = tpu.matmul %295, %289, %cst_101 {dimension_numbers = #tpu.dot_dimension_numbers<[1], [0], [0], [1], [0, 0, 1, 1], [], []>} : vector<8x8xf32>, vector<8x128xf32>, vector<8x128xf32> -> vector<8x128xf32>
    %297 = arith.addf %288, %296 : vector<8x128xf32>
    %298 = vector.extract_strided_slice %12 {offsets = [0, 0], sizes = [128, 128], strides = [1, 1]} : vector<128x256xbf16> to vector<128x128xbf16>
    %cst_102 = arith.constant dense<0.000000e+00> : vector<8x128xf32>
    %299 = tpu.matmul %287, %298, %cst_102 {dimension_numbers = #tpu.dot_dimension_numbers<[1], [0], [0], [1], [0, 0, 1, 1], [], []>} : vector<8x128xbf16>, vector<128x128xbf16>, vector<8x128xf32> -> vector<8x128xf32>
    %300 = arith.addf %297, %299 : vector<8x128xf32>
    %301 = vector.broadcast %263 : vector<1x128xf32> to vector<8x128xf32>
    %302 = arith.mulf %300, %301 : vector<8x128xf32>
    %303 = vector.broadcast %264 : vector<1x128xf32> to vector<8x128xf32>
    %304 = arith.addf %302, %303 : vector<8x128xf32>
    %305 = vector.extract_strided_slice %261 {offsets = [0, 1], sizes = [8, 1], strides = [1, 1]} : vector<8x4xf32> to vector<8x1xf32>
    %306 = vector.broadcast %305 : vector<8x1xf32> to vector<8x128xf32>
    %307 = arith.mulf %306, %304 : vector<8x128xf32>
    %308 = arith.addf %286, %307 : vector<8x128xf32>
    %c0_103 = arith.constant 0 : index
    %c256_104 = arith.constant 256 : index
    %309 = vector.load %arg1[%c0_103, %c256_104] : memref<8x512xbf16, #tpu.memory_space<vmem>>, vector<8x128xbf16>
    %310 = vector.extract_strided_slice %22 {offsets = [0, 0], sizes = [8, 128], strides = [1, 1]} : vector<8x256xf32> to vector<8x128xf32>
    %311 = vector.extract_strided_slice %24 {offsets = [0, 0], sizes = [8, 128], strides = [1, 1]} : vector<8x256xf32> to vector<8x128xf32>
    %312 = vector.extract_strided_slice %11 {offsets = [0, 2], sizes = [8, 1], strides = [1, 1]} : vector<8x4xi32> to vector<8x1xi32>
    %313 = tpu.iota {dimensions = array<i32: 1>} : vector<8x8xi32>
    %314 = vector.broadcast %312 : vector<8x1xi32> to vector<8x8xi32>
    %315 = arith.cmpi eq, %313, %314 : vector<8x8xi32>
    %316 = arith.extui %315 : vector<8x8xi1> to vector<8x8xi32>
    %317 = arith.sitofp %316 : vector<8x8xi32> to vector<8x8xf32>
    %cst_105 = arith.constant dense<0.000000e+00> : vector<8x128xf32>
    %318 = tpu.matmul %317, %311, %cst_105 {dimension_numbers = #tpu.dot_dimension_numbers<[1], [0], [0], [1], [0, 0, 1, 1], [], []>} : vector<8x8xf32>, vector<8x128xf32>, vector<8x128xf32> -> vector<8x128xf32>
    %319 = arith.addf %310, %318 : vector<8x128xf32>
    %320 = vector.extract_strided_slice %12 {offsets = [0, 0], sizes = [128, 128], strides = [1, 1]} : vector<128x256xbf16> to vector<128x128xbf16>
    %cst_106 = arith.constant dense<0.000000e+00> : vector<8x128xf32>
    %321 = tpu.matmul %309, %320, %cst_106 {dimension_numbers = #tpu.dot_dimension_numbers<[1], [0], [0], [1], [0, 0, 1, 1], [], []>} : vector<8x128xbf16>, vector<128x128xbf16>, vector<8x128xf32> -> vector<8x128xf32>
    %322 = arith.addf %319, %321 : vector<8x128xf32>
    %323 = vector.broadcast %263 : vector<1x128xf32> to vector<8x128xf32>
    %324 = arith.mulf %322, %323 : vector<8x128xf32>
    %325 = vector.broadcast %264 : vector<1x128xf32> to vector<8x128xf32>
    %326 = arith.addf %324, %325 : vector<8x128xf32>
    %327 = vector.extract_strided_slice %261 {offsets = [0, 2], sizes = [8, 1], strides = [1, 1]} : vector<8x4xf32> to vector<8x1xf32>
    %328 = vector.broadcast %327 : vector<8x1xf32> to vector<8x128xf32>
    %329 = arith.mulf %328, %326 : vector<8x128xf32>
    %330 = arith.addf %308, %329 : vector<8x128xf32>
    %c0_107 = arith.constant 0 : index
    %c384_108 = arith.constant 384 : index
    %331 = vector.load %arg1[%c0_107, %c384_108] : memref<8x512xbf16, #tpu.memory_space<vmem>>, vector<8x128xbf16>
    %332 = vector.extract_strided_slice %22 {offsets = [0, 0], sizes = [8, 128], strides = [1, 1]} : vector<8x256xf32> to vector<8x128xf32>
    %333 = vector.extract_strided_slice %24 {offsets = [0, 0], sizes = [8, 128], strides = [1, 1]} : vector<8x256xf32> to vector<8x128xf32>
    %334 = vector.extract_strided_slice %11 {offsets = [0, 3], sizes = [8, 1], strides = [1, 1]} : vector<8x4xi32> to vector<8x1xi32>
    %335 = tpu.iota {dimensions = array<i32: 1>} : vector<8x8xi32>
    %336 = vector.broadcast %334 : vector<8x1xi32> to vector<8x8xi32>
    %337 = arith.cmpi eq, %335, %336 : vector<8x8xi32>
    %338 = arith.extui %337 : vector<8x8xi1> to vector<8x8xi32>
    %339 = arith.sitofp %338 : vector<8x8xi32> to vector<8x8xf32>
    %cst_109 = arith.constant dense<0.000000e+00> : vector<8x128xf32>
    %340 = tpu.matmul %339, %333, %cst_109 {dimension_numbers = #tpu.dot_dimension_numbers<[1], [0], [0], [1], [0, 0, 1, 1], [], []>} : vector<8x8xf32>, vector<8x128xf32>, vector<8x128xf32> -> vector<8x128xf32>
    %341 = arith.addf %332, %340 : vector<8x128xf32>
    %342 = vector.extract_strided_slice %12 {offsets = [0, 0], sizes = [128, 128], strides = [1, 1]} : vector<128x256xbf16> to vector<128x128xbf16>
    %cst_110 = arith.constant dense<0.000000e+00> : vector<8x128xf32>
    %343 = tpu.matmul %331, %342, %cst_110 {dimension_numbers = #tpu.dot_dimension_numbers<[1], [0], [0], [1], [0, 0, 1, 1], [], []>} : vector<8x128xbf16>, vector<128x128xbf16>, vector<8x128xf32> -> vector<8x128xf32>
    %344 = arith.addf %341, %343 : vector<8x128xf32>
    %345 = vector.broadcast %263 : vector<1x128xf32> to vector<8x128xf32>
    %346 = arith.mulf %344, %345 : vector<8x128xf32>
    %347 = vector.broadcast %264 : vector<1x128xf32> to vector<8x128xf32>
    %348 = arith.addf %346, %347 : vector<8x128xf32>
    %349 = vector.extract_strided_slice %261 {offsets = [0, 3], sizes = [8, 1], strides = [1, 1]} : vector<8x4xf32> to vector<8x1xf32>
    %350 = vector.broadcast %349 : vector<8x1xf32> to vector<8x128xf32>
    %351 = arith.mulf %350, %348 : vector<8x128xf32>
    %352 = arith.addf %330, %351 : vector<8x128xf32>
    %cst_111 = arith.constant dense<0.000000e+00> : vector<128xf32>
    %353 = vector.multi_reduction <add>, %352, %cst_111 [0] : vector<8x128xf32> to vector<128xf32>
    %354 = vector.shape_cast %353 : vector<128xf32> to vector<1x128xf32>
    %cst_112 = arith.constant 8.000000e+00 : f32
    %355 = vector.broadcast %cst_112 : f32 to vector<1x128xf32>
    %356 = arith.divf %354, %355 : vector<1x128xf32>
    %357 = arith.mulf %352, %352 : vector<8x128xf32>
    %cst_113 = arith.constant dense<0.000000e+00> : vector<128xf32>
    %358 = vector.multi_reduction <add>, %357, %cst_113 [0] : vector<8x128xf32> to vector<128xf32>
    %359 = vector.shape_cast %358 : vector<128xf32> to vector<1x128xf32>
    %cst_114 = arith.constant 8.000000e+00 : f32
    %360 = vector.broadcast %cst_114 : f32 to vector<1x128xf32>
    %361 = arith.divf %359, %360 : vector<1x128xf32>
    %362 = arith.mulf %356, %356 : vector<1x128xf32>
    %363 = arith.subf %361, %362 : vector<1x128xf32>
    %cst_115 = arith.constant 0.000000e+00 : f32
    %364 = vector.broadcast %cst_115 : f32 to vector<1x128xf32>
    %365 = arith.maximumf %363, %364 : vector<1x128xf32>
    %366 = vector.broadcast %356 : vector<1x128xf32> to vector<8x128xf32>
    %367 = arith.subf %352, %366 : vector<8x128xf32>
    %cst_116 = arith.constant 9.99999974E-6 : f32
    %368 = vector.broadcast %cst_116 : f32 to vector<1x128xf32>
    %369 = arith.addf %365, %368 : vector<1x128xf32>
    %370 = math.rsqrt %369 : vector<1x128xf32>
    %371 = vector.broadcast %370 : vector<1x128xf32> to vector<8x128xf32>
    %372 = arith.mulf %367, %371 : vector<8x128xf32>
    %373 = vector.broadcast %5 : vector<1x128xf32> to vector<8x128xf32>
    %374 = arith.mulf %372, %373 : vector<8x128xf32>
    %375 = vector.broadcast %6 : vector<1x128xf32> to vector<8x128xf32>
    %376 = arith.addf %374, %375 : vector<8x128xf32>
    %cst_117 = arith.constant 0.000000e+00 : f32
    %377 = vector.broadcast %cst_117 : f32 to vector<8x128xf32>
    %378 = arith.subf %377, %376 : vector<8x128xf32>
    %379 = math.exp %378 : vector<8x128xf32>
    %cst_118 = arith.constant 1.000000e+00 : f32
    %380 = vector.broadcast %cst_118 : f32 to vector<8x128xf32>
    %381 = arith.addf %380, %379 : vector<8x128xf32>
    %cst_119 = arith.constant 1.000000e+00 : f32
    %382 = vector.broadcast %cst_119 : f32 to vector<8x128xf32>
    %383 = arith.divf %382, %381 : vector<8x128xf32>
    %c0_120 = arith.constant 0 : index
    %c0_121 = arith.constant 0 : index
    %384 = vector.load %arg3[%c0_120, %c0_121] : memref<2x8xbf16, #tpu.memory_space<vmem>>, vector<2x8xbf16>
    %385 = arith.truncf %383 : vector<8x128xf32> to vector<8x128xbf16>
    %cst_122 = arith.constant dense<0.000000e+00> : vector<2x128xf32>
    %386 = tpu.matmul %384, %385, %cst_122 {dimension_numbers = #tpu.dot_dimension_numbers<[1], [0], [0], [1], [0, 0, 1, 1], [], []>} : vector<2x8xbf16>, vector<8x128xbf16>, vector<2x128xf32> -> vector<2x128xf32>
    %cst_123 = arith.constant 0.000000e+00 : f32
    %387 = vector.broadcast %cst_123 : f32 to vector<2x128xf32>
    %388 = arith.maximumf %386, %387 : vector<2x128xf32>
    %389 = math.absf %386 : vector<2x128xf32>
    %cst_124 = arith.constant 0.000000e+00 : f32
    %390 = vector.broadcast %cst_124 : f32 to vector<2x128xf32>
    %391 = arith.subf %390, %389 : vector<2x128xf32>
    %392 = math.exp %391 : vector<2x128xf32>
    %cst_125 = arith.constant 1.000000e+00 : f32
    %393 = vector.broadcast %cst_125 : f32 to vector<2x128xf32>
    %394 = arith.addf %393, %392 : vector<2x128xf32>
    %395 = math.log %394 : vector<2x128xf32>
    %396 = arith.addf %388, %395 : vector<2x128xf32>
    %397 = arith.truncf %396 : vector<2x128xf32> to vector<2x128xbf16>
    %c0_126 = arith.constant 0 : index
    %c0_127 = arith.constant 0 : index
    %398 = vector.load %arg8[%c0_126, %c0_127] : memref<128x128xbf16, #tpu.memory_space<vmem>>, vector<128x128xbf16>
    %cst_128 = arith.constant dense<0.000000e+00> : vector<2x128xf32>
    %399 = tpu.matmul %397, %398, %cst_128 {dimension_numbers = #tpu.dot_dimension_numbers<[1], [0], [0], [1], [0, 0, 1, 1], [], []>} : vector<2x128xbf16>, vector<128x128xbf16>, vector<2x128xf32> -> vector<2x128xf32>
    %400 = vector.broadcast %7 : vector<1x128xf32> to vector<2x128xf32>
    %401 = arith.addf %399, %400 : vector<2x128xf32>
    %cst_129 = arith.constant 0.000000e+00 : f32
    %402 = vector.broadcast %cst_129 : f32 to vector<2x128xf32>
    %403 = arith.maximumf %401, %402 : vector<2x128xf32>
    %404 = math.absf %401 : vector<2x128xf32>
    %cst_130 = arith.constant 0.000000e+00 : f32
    %405 = vector.broadcast %cst_130 : f32 to vector<2x128xf32>
    %406 = arith.subf %405, %404 : vector<2x128xf32>
    %407 = math.exp %406 : vector<2x128xf32>
    %cst_131 = arith.constant 1.000000e+00 : f32
    %408 = vector.broadcast %cst_131 : f32 to vector<2x128xf32>
    %409 = arith.addf %408, %407 : vector<2x128xf32>
    %410 = math.log %409 : vector<2x128xf32>
    %411 = arith.addf %403, %410 : vector<2x128xf32>
    %412 = arith.truncf %411 : vector<2x128xf32> to vector<2x128xbf16>
    %c0_132 = arith.constant 0 : index
    %c0_133 = arith.constant 0 : index
    %413 = vector.load %arg9[%c0_132, %c0_133] : memref<128x128xbf16, #tpu.memory_space<vmem>>, vector<128x128xbf16>
    %cst_134 = arith.constant dense<0.000000e+00> : vector<2x128xf32>
    %414 = tpu.matmul %412, %413, %cst_134 {dimension_numbers = #tpu.dot_dimension_numbers<[1], [0], [0], [1], [0, 0, 1, 1], [], []>} : vector<2x128xbf16>, vector<128x128xbf16>, vector<2x128xf32> -> vector<2x128xf32>
    %415 = vector.broadcast %10 : f32 to vector<2x128xf32>
    %416 = arith.addf %414, %415 : vector<2x128xf32>
    %c0_135 = arith.constant 0 : index
    %c0_136 = arith.constant 0 : index
    %417 = vector.load %arg14[%c0_135, %c0_136] : memref<2x128xf32, #tpu.memory_space<vmem>>, vector<2x128xf32>
    tpu.vector_store %arg14[%c0_135, %c0_136], %416 {strides = array<i32>} : memref<2x128xf32, #tpu.memory_space<vmem>>, vector<2x128xf32>,
    return
  }
}

</mosaic_0001>

<llo_original>
// kernel: _cgcnn_forward_jit.1
$region0: #{_cgcnn_forward_jit.1}
  #allocation0 [shape = 'u32[]', space=smem, size = 0x4, offset = 0x4, fixed_abs, tag = 'smem constant byte address 0x4 - core index']
  #allocation1 [shape = 'u32[144,128]{1,0:T(1,128)}', space=vmem, size = 0x12000, scoped, tag = 'internal scratch']
  %s0 = inlined_call_operand.vmem [shape: bf16[8,128], index: 0, kind: input, shape index: {}]
  %s1 = inlined_call_operand.vmem [shape: bf16[8,512], index: 1, kind: input, shape index: {}]
  %s2 = inlined_call_operand.vmem [shape: s32[8,4], index: 2, kind: input, shape index: {}]
  %s3 = inlined_call_operand.vmem [shape: bf16[2,8], index: 3, kind: input, shape index: {}]
  %s4 = inlined_call_operand.hbm [shape: bf16[128,128], index: 4, kind: input, shape index: {}]
  %s5 = inlined_call_operand.vmem [shape: bf16[128,256], index: 5, kind: input, shape index: {}]
  %s6 = inlined_call_operand.hbm [shape: bf16[128,256], index: 6, kind: input, shape index: {}]
  %s7 = inlined_call_operand.hbm [shape: bf16[128,256], index: 7, kind: input, shape index: {}]
  %s8 = inlined_call_operand.hbm [shape: bf16[128,128], index: 8, kind: input, shape index: {}]
  %s9 = inlined_call_operand.hbm [shape: bf16[128,128], index: 9, kind: input, shape index: {}]
  %s10 = inlined_call_operand.vmem [shape: f32[4,256], index: 10, kind: input, shape index: {}]
  %s11 = inlined_call_operand.vmem [shape: f32[3,128], index: 11, kind: input, shape index: {}]
  %s12 = inlined_call_operand.vmem [shape: f32[1,128], index: 12, kind: input, shape index: {}]
  %s13 = inlined_call_operand.vmem [shape: f32[3], index: 13, kind: input, shape index: {}]
  %s14 = inlined_call_operand.vmem [shape: f32[2,128], index: 14, kind: output, shape index: {}]
  %s15 = sld [smem:[#allocation0]]
  $region90: #{_cgcnn_forward_jit.1} parent=0
    _
  %s17 = ssub.s32 1, %s15
  %s18 = scalar_select 0, %s17, %s15
  $region1: #{_cgcnn_forward_jit.1} parent=0
    #allocation2 [shape = 'u8[32768]{0}', space=vmem, size = 0x8000, scoped, tag = 'input window, operand 4, single buffered']
    #allocation3 [shape = 's32[1]{0}', space=sflag, size = 0x4, scoped, tag = 'scoped memory for _cgcnn_forward_jit.1']
    #allocation4 [shape = 's32[1]{0}', space=sflag, size = 0x4, scoped, tag = 'scoped memory for _cgcnn_forward_jit.1']
    #allocation5 [shape = 'u8[65536]{0}', space=vmem, size = 0x10000, scoped, tag = 'input window, operand 6, single buffered']
    #allocation6 [shape = 's32[1]{0}', space=sflag, size = 0x4, scoped, tag = 'scoped memory for _cgcnn_forward_jit.1']
    #allocation7 [shape = 'u8[65536]{0}', space=vmem, size = 0x10000, scoped, tag = 'input window, operand 7, single buffered']
    #allocation8 [shape = 'u8[32768]{0}', space=vmem, size = 0x8000, scoped, tag = 'input window, operand 8, single buffered']
    #allocation9 [shape = 's32[1]{0}', space=sflag, size = 0x4, scoped, tag = 'scoped memory for _cgcnn_forward_jit.1']
    #allocation10 [shape = 'u8[32768]{0}', space=vmem, size = 0x8000, scoped, tag = 'input window, operand 9, single buffered']
    #allocation11 [shape = 'u8[512]{0}', space=smem, size = 0x200, scoped, tag = 'input window, operand 13, single buffered']
    %19 = vsyncpa [#allocation3], 0
    %20 = vsyncpa [#allocation6], 0
    %21 = vsyncpa [#allocation9], 0
    %22 = vsyncpa [#allocation4], 0
    // Predicated region
    $region2: #{_cgcnn_forward_jit.1} parent=1 // pred_check
      _
    $region3: #{_cgcnn_forward_jit.1} parent=1 // pred_check_branch
      %24 = sbr.rel (0) target = $region5
    $region4: #{_cgcnn_forward_jit.1} parent=1 // pred_region
      _
    $region5: #{_cgcnn_forward_jit.1} parent=1 // pred_fallthru
      _
    // Predicated region
    $region6: #{_cgcnn_forward_jit.1} parent=1 // pred_check
      _
    $region7: #{_cgcnn_forward_jit.1} parent=1 // pred_check_branch
      %26 = sbr.rel (0) target = $region9
    $region8: #{_cgcnn_forward_jit.1} parent=1 // pred_region
      _
    $region9: #{_cgcnn_forward_jit.1} parent=1 // pred_fallthru
      _
    // Predicated region
    $region10: #{_cgcnn_forward_jit.1} parent=1 // pred_check
      _
    $region11: #{_cgcnn_forward_jit.1} parent=1 // pred_check_branch
      %28 = sbr.rel (0) target = $region13
    $region12: #{_cgcnn_forward_jit.1} parent=1 // pred_region
      _
    $region13: #{_cgcnn_forward_jit.1} parent=1 // pred_fallthru
      _
    // Predicated region
    $region14: #{_cgcnn_forward_jit.1} parent=1 // pred_check
      _
    $region15: #{_cgcnn_forward_jit.1} parent=1 // pred_check_branch
      %30 = sbr.rel (0) target = $region17
    $region16: #{_cgcnn_forward_jit.1} parent=1 // pred_region
      _
    $region17: #{_cgcnn_forward_jit.1} parent=1 // pred_fallthru
      _
    // Predicated region
    $region18: #{_cgcnn_forward_jit.1} parent=1 // pred_check
      _
    $region19: #{_cgcnn_forward_jit.1} parent=1 // pred_check_branch
      %32 = sbr.rel (0) target = $region21
    $region20: #{_cgcnn_forward_jit.1} parent=1 // pred_region
      %s34 = ssub.s32 1024, 1024
      %35 = vsyncadd [#allocation3], %s34
      %s36 = sshll.u32 [#allocation2], 4
      %s37 = int_to_ptr.vmem [resolvable:$true] %s36
      %42 = dma.hbm_to_vmem [thread:$0]  %s4, 1024, %s37, [#allocation3], 64, 64, 4
    $region21: #{_cgcnn_forward_jit.1} parent=1 // pred_fallthru
      _
    // Predicated region
    $region22: #{_cgcnn_forward_jit.1} parent=1 // pred_check
      _
    $region23: #{_cgcnn_forward_jit.1} parent=1 // pred_check_branch
      %44 = sbr.rel (0) target = $region25
    $region24: #{_cgcnn_forward_jit.1} parent=1 // pred_region
      _
    $region25: #{_cgcnn_forward_jit.1} parent=1 // pred_fallthru
      _
    // Predicated region
    $region26: #{_cgcnn_forward_jit.1} parent=1 // pred_check
      _
    $region27: #{_cgcnn_forward_jit.1} parent=1 // pred_check_branch
      %46 = sbr.rel (0) target = $region29
    $region28: #{_cgcnn_forward_jit.1} parent=1 // pred_region
      %s48 = ssub.s32 2048, 2048
      %49 = vsyncadd [#allocation6], %s48
      %s50 = sshll.u32 [#allocation5], 4
      %s51 = int_to_ptr.vmem [resolvable:$true] %s50
      %56 = dma.hbm_to_vmem [thread:$0]  %s6, 2048, %s51, [#allocation6], 128, 128, 8
    $region29: #{_cgcnn_forward_jit.1} parent=1 // pred_fallthru
      _
    // Predicated region
    $region30: #{_cgcnn_forward_jit.1} parent=1 // pred_check
      _
    $region31: #{_cgcnn_forward_jit.1} parent=1 // pred_check_branch
      %58 = sbr.rel (0) target = $region33
    $region32: #{_cgcnn_forward_jit.1} parent=1 // pred_region
      %s60 = ssub.s32 2048, 2048
      %61 = vsyncadd [#allocation6], %s60
      %s62 = sshll.u32 [#allocation7], 4
      %s63 = int_to_ptr.vmem [resolvable:$true] %s62
      %68 = dma.hbm_to_vmem [thread:$0]  %s7, 2048, %s63, [#allocation6], 128, 128, 8
    $region33: #{_cgcnn_forward_jit.1} parent=1 // pred_fallthru
      _
    // Predicated region
    $region34: #{_cgcnn_forward_jit.1} parent=1 // pred_check
      _
    $region35: #{_cgcnn_forward_jit.1} parent=1 // pred_check_branch
      %70 = sbr.rel (0) target = $region37
    $region36: #{_cgcnn_forward_jit.1} parent=1 // pred_region
      %s72 = ssub.s32 1024, 1024
      %73 = vsyncadd [#allocation9], %s72
      %s74 = sshll.u32 [#allocation8], 4
      %s75 = int_to_ptr.vmem [resolvable:$true] %s74
      %80 = dma.hbm_to_vmem [thread:$0]  %s8, 1024, %s75, [#allocation9], 64, 64, 4
    $region37: #{_cgcnn_forward_jit.1} parent=1 // pred_fallthru
      _
    // Predicated region
    $region38: #{_cgcnn_forward_jit.1} parent=1 // pred_check
      _
    $region39: #{_cgcnn_forward_jit.1} parent=1 // pred_check_branch
      %82 = sbr.rel (0) target = $region41
    $region40: #{_cgcnn_forward_jit.1} parent=1 // pred_region
      %s84 = ssub.s32 1024, 1024
      %85 = vsyncadd [#allocation9], %s84
      %s86 = sshll.u32 [#allocation10], 4
      %s87 = int_to_ptr.vmem [resolvable:$true] %s86
      %92 = dma.hbm_to_vmem [thread:$0]  %s9, 1024, %s87, [#allocation9], 64, 64, 4
    $region41: #{_cgcnn_forward_jit.1} parent=1 // pred_fallthru
      _
    // Predicated region
    $region42: #{_cgcnn_forward_jit.1} parent=1 // pred_check
      _
    $region43: #{_cgcnn_forward_jit.1} parent=1 // pred_check_branch
      %94 = sbr.rel (0) target = $region45
    $region44: #{_cgcnn_forward_jit.1} parent=1 // pred_region
      _
    $region45: #{_cgcnn_forward_jit.1} parent=1 // pred_fallthru
      _
    // Predicated region
    $region46: #{_cgcnn_forward_jit.1} parent=1 // pred_check
      _
    $region47: #{_cgcnn_forward_jit.1} parent=1 // pred_check_branch
      %96 = sbr.rel (0) target = $region49
    $region48: #{_cgcnn_forward_jit.1} parent=1 // pred_region
      _
    $region49: #{_cgcnn_forward_jit.1} parent=1 // pred_fallthru
      _
    // Predicated region
    $region50: #{_cgcnn_forward_jit.1} parent=1 // pred_check
      _
    $region51: #{_cgcnn_forward_jit.1} parent=1 // pred_check_branch
      %98 = sbr.rel (0) target = $region53
    $region52: #{_cgcnn_forward_jit.1} parent=1 // pred_region
      _
    $region53: #{_cgcnn_forward_jit.1} parent=1 // pred_fallthru
      _
    // Predicated region
    $region54: #{_cgcnn_forward_jit.1} parent=1 // pred_check
      _
    $region55: #{_cgcnn_forward_jit.1} parent=1 // pred_check_branch
      %100 = sbr.rel (0) target = $region57
    $region56: #{_cgcnn_forward_jit.1} parent=1 // pred_region
      %s102 = ssub.s32 16, 16
      %103 = vsyncadd [#allocation4], %s102
      %s105 = sshll.u32 %s13, 4
      %s106 = int_to_ptr.vmem [resolvable:$true] %s105
      %108 = dma.vmem_to_smem %s106, 16, [#allocation11], [#allocation4]
    $region57: #{_cgcnn_forward_jit.1} parent=1 // pred_fallthru
      _
    // Predicated region
    $region58: #{_cgcnn_forward_jit.1} parent=1 // pred_check
      _
    $region59: #{_cgcnn_forward_jit.1} parent=1 // pred_check_branch
      %110 = sbr.rel (0) target = $region61
    $region60: #{_cgcnn_forward_jit.1} parent=1 // pred_region
      %111 = dma.done [#allocation3], 1024
    $region61: #{_cgcnn_forward_jit.1} parent=1 // pred_fallthru
      _
    // Predicated region
    $region62: #{_cgcnn_forward_jit.1} parent=1 // pred_check
      _
    $region63: #{_cgcnn_forward_jit.1} parent=1 // pred_check_branch
      %113 = sbr.rel (0) target = $region65
    $region64: #{_cgcnn_forward_jit.1} parent=1 // pred_region
      %114 = dma.done [#allocation6], 2048
    $region65: #{_cgcnn_forward_jit.1} parent=1 // pred_fallthru
      _
    // Predicated region
    $region66: #{_cgcnn_forward_jit.1} parent=1 // pred_check
      _
    $region67: #{_cgcnn_forward_jit.1} parent=1 // pred_check_branch
      %116 = sbr.rel (0) target = $region69
    $region68: #{_cgcnn_forward_jit.1} parent=1 // pred_region
      %117 = dma.done [#allocation6], 2048
    $region69: #{_cgcnn_forward_jit.1} parent=1 // pred_fallthru
      _
    // Predicated region
    $region70: #{_cgcnn_forward_jit.1} parent=1 // pred_check
      _
    $region71: #{_cgcnn_forward_jit.1} parent=1 // pred_check_branch
      %119 = sbr.rel (0) target = $region73
    $region72: #{_cgcnn_forward_jit.1} parent=1 // pred_region
      %120 = dma.done [#allocation9], 1024
    $region73: #{_cgcnn_forward_jit.1} parent=1 // pred_fallthru
      _
    // Predicated region
    $region74: #{_cgcnn_forward_jit.1} parent=1 // pred_check
      _
    $region75: #{_cgcnn_forward_jit.1} parent=1 // pred_check_branch
      %122 = sbr.rel (0) target = $region77
    $region76: #{_cgcnn_forward_jit.1} parent=1 // pred_region
      %123 = dma.done [#allocation9], 1024
    $region77: #{_cgcnn_forward_jit.1} parent=1 // pred_fallthru
      _
    // Predicated region
    $region78: #{_cgcnn_forward_jit.1} parent=1 // pred_check
      _
    $region79: #{_cgcnn_forward_jit.1} parent=1 // pred_check_branch
      %125 = sbr.rel (0) target = $region81
    $region80: #{_cgcnn_forward_jit.1} parent=1 // pred_region
      %126 = dma.done [#allocation4], 16
    $region81: #{_cgcnn_forward_jit.1} parent=1 // pred_fallthru
      _
    %127 = sfence
    %v129 = vld [vmem:[%s10] ss:$4 sm:$0x3]
    %s130 = scalar_lea.vmem %s10, 1
    %v131 = vld [vmem:[%s130] ss:$4 sm:$0x3]
    %s132 = scalar_lea.vmem %s10, 2
    %v133 = vld [vmem:[%s132] ss:$4 sm:$0x3]
    %s134 = scalar_lea.vmem %s10, 3
    %v135 = vld [vmem:[%s134] ss:$4 sm:$0x3]
    %v136 = vld [vmem:[%s11] sm:$0x1]
    %v137 = vld [vmem:[%s11 + $0x1] sm:$0x1]
    %v138 = vld [vmem:[%s11 + $0x2] sm:$0x1]
    %v139 = vld [vmem:[%s12] sm:$0x1]
    %s140 = sld [smem:[#allocation11]]
    %s141 = sld [smem:[#allocation11 + $0x1]]
    %s142 = sld [smem:[#allocation11 + $0x2]]
    %v143 = vld [vmem:[%s2] sm:$0xff]
    %v144 = vld [vmem:[#allocation7] sm:$0xff]
    %v145 = vld [vmem:[#allocation7 + $0x8] sm:$0xff]
    %v146 = vld [vmem:[#allocation7 + $0x10] sm:$0xff]
    %v147 = vld [vmem:[#allocation7 + $0x18] sm:$0xff]
    %v148 = vld [vmem:[#allocation7 + $0x20] sm:$0xff]
    %v149 = vld [vmem:[#allocation7 + $0x28] sm:$0xff]
    %v150 = vld [vmem:[#allocation7 + $0x30] sm:$0xff]
    %v151 = vld [vmem:[#allocation7 + $0x38] sm:$0xff]
    %v152 = vld [vmem:[#allocation7 + $0x40] sm:$0xff]
    %v153 = vld [vmem:[#allocation7 + $0x48] sm:$0xff]
    %v154 = vld [vmem:[#allocation7 + $0x50] sm:$0xff]
    %v155 = vld [vmem:[#allocation7 + $0x58] sm:$0xff]
    %v156 = vld [vmem:[#allocation7 + $0x60] sm:$0xff]
    %v157 = vld [vmem:[#allocation7 + $0x68] sm:$0xff]
    %v158 = vld [vmem:[#allocation7 + $0x70] sm:$0xff]
    %v159 = vld [vmem:[#allocation7 + $0x78] sm:$0xff]
    %v160 = vld [vmem:[%s0] sm:$0xf]
    %v161 = vld [vmem:[#allocation2] sm:$0xf]
    %v162 = vld [vmem:[#allocation2 + $0x4] sm:$0xf]
    %v163 = vld [vmem:[#allocation2 + $0x8] sm:$0xf]
    %v164 = vld [vmem:[#allocation2 + $0xc] sm:$0xf]
    %v165 = vld [vmem:[#allocation2 + $0x10] sm:$0xf]
    %v166 = vld [vmem:[#allocation2 + $0x14] sm:$0xf]
    %v167 = vld [vmem:[#allocation2 + $0x18] sm:$0xf]
    %v168 = vld [vmem:[#allocation2 + $0x1c] sm:$0xf]
    %v169 = vld [vmem:[#allocation2 + $0x20] sm:$0xf]
    %v170 = vld [vmem:[#allocation2 + $0x24] sm:$0xf]
    %v171 = vld [vmem:[#allocation2 + $0x28] sm:$0xf]
    %v172 = vld [vmem:[#allocation2 + $0x2c] sm:$0xf]
    %v173 = vld [vmem:[#allocation2 + $0x30] sm:$0xf]
    %v174 = vld [vmem:[#allocation2 + $0x34] sm:$0xf]
    %v175 = vld [vmem:[#allocation2 + $0x38] sm:$0xf]
    %v176 = vld [vmem:[#allocation2 + $0x3c] sm:$0xf]
    %v177 = vlaneseq
    %v178 = vshrl.u32 %v177, 7
    %v179 = vsub.s32 0, %v178
    %v180 = vrot.slane %v136, %v179
    %v197 = vunpack.c.l.b16 %v161
    %v198 = vunpack.c.l.b16 %v162
    %v199 = vunpack.c.l.b16 %v163
    %v200 = vunpack.c.l.b16 %v164
    %v201 = vunpack.c.l.b16 %v165
    %v202 = vunpack.c.l.b16 %v166
    %v203 = vunpack.c.l.b16 %v167
    %v204 = vunpack.c.l.b16 %v168
    %v205 = vunpack.c.l.b16 %v169
    %v206 = vunpack.c.l.b16 %v170
    %v207 = vunpack.c.l.b16 %v171
    %v208 = vunpack.c.l.b16 %v172
    %v209 = vunpack.c.l.b16 %v173
    %v210 = vunpack.c.l.b16 %v174
    %v211 = vunpack.c.l.b16 %v175
    %v212 = vunpack.c.l.b16 %v176
    %v213 = vpack.c.b16 %v198, %v197
    %v214 = vpack.c.b16 %v200, %v199
    %v215 = vpack.c.b16 %v202, %v201
    %v216 = vpack.c.b16 %v204, %v203
    %v217 = vpack.c.b16 %v206, %v205
    %v218 = vpack.c.b16 %v208, %v207
    %v219 = vpack.c.b16 %v210, %v209
    %v220 = vpack.c.b16 %v212, %v211
    %229 = vmatprep.subr.bf16.mxu0 0
    %230 = vmatpush1.bf16.msra.mxu0 %v213
    %231 = vmatprep.subr.bf16.mxu0 0
    %232 = vmatpush1.bf16.msra.mxu0 %v214
    %233 = vmatprep.subr.bf16.mxu0 0
    %234 = vmatpush1.bf16.msra.mxu0 %v215
    %235 = vmatprep.subr.bf16.mxu0 0
    %236 = vmatpush1.bf16.msra.mxu0 %v216
    %237 = vmatprep.subr.bf16.mxu0 0
    %238 = vmatpush1.bf16.msra.mxu0 %v217
    %239 = vmatprep.subr.bf16.mxu0 0
    %240 = vmatpush1.bf16.msra.mxu0 %v218
    %241 = vmatprep.subr.bf16.mxu0 0
    %242 = vmatpush1.bf16.msra.mxu0 %v219
    %243 = vmatprep.subr.bf16.mxu0 0
    %244 = vmatpush1.bf16.msra.mxu0 %v220
    %245 = vmatprep.subr.bf16.mxu0 0
    %246 = vmatpush1.bf16.msra.mxu0 0
    %247 = vmatprep.subr.bf16.mxu0 0
    %248 = vmatpush1.bf16.msra.mxu0 0
    %249 = vmatprep.subr.bf16.mxu0 0
    %250 = vmatpush1.bf16.msra.mxu0 0
    %251 = vmatprep.subr.bf16.mxu0 0
    %252 = vmatpush1.bf16.msra.mxu0 0
    %253 = vmatprep.subr.bf16.mxu0 0
    %254 = vmatpush1.bf16.msra.mxu0 0
    %255 = vmatprep.subr.bf16.mxu0 0
    %256 = vmatpush1.bf16.msra.mxu0 0
    %257 = vmatprep.subr.bf16.mxu0 0
    %258 = vmatpush1.bf16.msra.mxu0 0
    %259 = vmatprep.subr.bf16.mxu0 0
    %260 = vmatpush1.bf16.msra.mxu0 0
    %261 = vmatprep.mubr.bf16.mxu0 0
    %262 = vmatmul.mubr.bf16.gmra.mrb[0].mxu0 %v160
    %v263 = vpop.f32.mrb[0].mxu0
    %v264 = vadd.f32 %v180, %v263
    %v265 = vpop.f32.mrb[0].mxu0
    %v266 = vpop.f32.mrb[0].mxu0
    %v267 = vpop.f32.mrb[0].mxu0
    %268 = vdwg.mxu0
    %v269 = vpack.c.bf16 %v264, %v264
    %v270 = vld [vmem:[%s5] sm:$0xff]
    %v271 = vld [vmem:[%s5 + $0x8] sm:$0xff]
    %v272 = vld [vmem:[%s5 + $0x10] sm:$0xff]
    %v273 = vld [vmem:[%s5 + $0x18] sm:$0xff]
    %v274 = vld [vmem:[%s5 + $0x20] sm:$0xff]
    %v275 = vld [vmem:[%s5 + $0x28] sm:$0xff]
    %v276 = vld [vmem:[%s5 + $0x30] sm:$0xff]
    %v277 = vld [vmem:[%s5 + $0x38] sm:$0xff]
    %v278 = vld [vmem:[%s5 + $0x40] sm:$0xff]
    %v279 = vld [vmem:[%s5 + $0x48] sm:$0xff]
    %v280 = vld [vmem:[%s5 + $0x50] sm:$0xff]
    %v281 = vld [vmem:[%s5 + $0x58] sm:$0xff]
    %v282 = vld [vmem:[%s5 + $0x60] sm:$0xff]
    %v283 = vld [vmem:[%s5 + $0x68] sm:$0xff]
    %v284 = vld [vmem:[%s5 + $0x70] sm:$0xff]
    %v285 = vld [vmem:[%s5 + $0x78] sm:$0xff]
    %v287 = vlaneseq
    %v288 = vshrl.u32 %v287, 7
    %v289 = vsub.s32 0, %v288
    %v290 = vrot.slane %v129, %v289
    %v291 = vlaneseq
    %v292 = vshrl.u32 %v291, 7
    %v293 = vsub.s32 1, %v292
    %v294 = vrot.slane %v129, %v293
    %v313 = vunpack.c.l.b16 %v270
    %v314 = vunpack.c.h.b16 %v270
    %v315 = vunpack.c.l.b16 %v271
    %v316 = vunpack.c.h.b16 %v271
    %v317 = vunpack.c.l.b16 %v272
    %v318 = vunpack.c.h.b16 %v272
    %v319 = vunpack.c.l.b16 %v273
    %v320 = vunpack.c.h.b16 %v273
    %v321 = vunpack.c.l.b16 %v274
    %v322 = vunpack.c.h.b16 %v274
    %v323 = vunpack.c.l.b16 %v275
    %v324 = vunpack.c.h.b16 %v275
    %v325 = vunpack.c.l.b16 %v276
    %v326 = vunpack.c.h.b16 %v276
    %v327 = vunpack.c.l.b16 %v277
    %v328 = vunpack.c.h.b16 %v277
    %v329 = vunpack.c.l.b16 %v278
    %v330 = vunpack.c.h.b16 %v278
    %v331 = vunpack.c.l.b16 %v279
    %v332 = vunpack.c.h.b16 %v279
    %v333 = vunpack.c.l.b16 %v280
    %v334 = vunpack.c.h.b16 %v280
    %v335 = vunpack.c.l.b16 %v281
    %v336 = vunpack.c.h.b16 %v281
    %v337 = vunpack.c.l.b16 %v282
    %v338 = vunpack.c.h.b16 %v282
    %v339 = vunpack.c.l.b16 %v283
    %v340 = vunpack.c.h.b16 %v283
    %v341 = vunpack.c.l.b16 %v284
    %v342 = vunpack.c.h.b16 %v284
    %v343 = vunpack.c.l.b16 %v285
    %v344 = vunpack.c.h.b16 %v285
    %v345 = vpack.c.b16 %v315, %v313
    %v346 = vpack.c.b16 %v316, %v314
    %v347 = vpack.c.b16 %v319, %v317
    %v348 = vpack.c.b16 %v320, %v318
    %v349 = vpack.c.b16 %v323, %v321
    %v350 = vpack.c.b16 %v324, %v322
    %v351 = vpack.c.b16 %v327, %v325
    %v352 = vpack.c.b16 %v328, %v326
    %v353 = vpack.c.b16 %v331, %v329
    %v354 = vpack.c.b16 %v332, %v330
    %v355 = vpack.c.b16 %v335, %v333
    %v356 = vpack.c.b16 %v336, %v334
    %v357 = vpack.c.b16 %v339, %v337
    %v358 = vpack.c.b16 %v340, %v338
    %v359 = vpack.c.b16 %v343, %v341
    %v360 = vpack.c.b16 %v344, %v342
    %377 = vmatprep.subr.bf16.mxu0 %v346
    %378 = vmatpush1.bf16.msra.mxu0 %v345
    %379 = vmatprep.subr.bf16.mxu0 %v348
    %380 = vmatpush1.bf16.msra.mxu0 %v347
    %381 = vmatprep.subr.bf16.mxu0 %v350
    %382 = vmatpush1.bf16.msra.mxu0 %v349
    %383 = vmatprep.subr.bf16.mxu0 %v352
    %384 = vmatpush1.bf16.msra.mxu0 %v351
    %385 = vmatprep.subr.bf16.mxu0 %v354
    %386 = vmatpush1.bf16.msra.mxu0 %v353
    %387 = vmatprep.subr.bf16.mxu0 %v356
    %388 = vmatpush1.bf16.msra.mxu0 %v355
    %389 = vmatprep.subr.bf16.mxu0 %v358
    %390 = vmatpush1.bf16.msra.mxu0 %v357
    %391 = vmatprep.subr.bf16.mxu0 %v360
    %392 = vmatpush1.bf16.msra.mxu0 %v359
    %393 = vmatprep.subr.bf16.mxu0 0
    %394 = vmatpush1.bf16.msra.mxu0 0
    %395 = vmatprep.subr.bf16.mxu0 0
    %396 = vmatpush1.bf16.msra.mxu0 0
    %397 = vmatprep.subr.bf16.mxu0 0
    %398 = vmatpush1.bf16.msra.mxu0 0
    %399 = vmatprep.subr.bf16.mxu0 0
    %400 = vmatpush1.bf16.msra.mxu0 0
    %401 = vmatprep.subr.bf16.mxu0 0
    %402 = vmatpush1.bf16.msra.mxu0 0
    %403 = vmatprep.subr.bf16.mxu0 0
    %404 = vmatpush1.bf16.msra.mxu0 0
    %405 = vmatprep.subr.bf16.mxu0 0
    %406 = vmatpush1.bf16.msra.mxu0 0
    %407 = vmatprep.subr.bf16.mxu0 0
    %408 = vmatpush1.bf16.msra.mxu0 0
    %409 = vmatprep.mubr.bf16.mxu0 0
    %410 = vmatmul.mubr.bf16.gmra.mrb[0].mxu0 %v269
    %v411 = vpop.f32.mrb[0].mxu0
    %v412 = vadd.f32 %v290, %v411
    %v413 = vpop.f32.mrb[0].mxu0
    %v414 = vadd.f32 %v294, %v413
    %v415 = vpop.f32.mrb[0].mxu0
    %v416 = vpop.f32.mrb[0].mxu0
    %417 = vdwg.mxu0
    %v418 = vld [vmem:[#allocation5] sm:$0xff]
    %v419 = vld [vmem:[#allocation5 + $0x8] sm:$0xff]
    %v420 = vld [vmem:[#allocation5 + $0x10] sm:$0xff]
    %v421 = vld [vmem:[#allocation5 + $0x18] sm:$0xff]
    %v422 = vld [vmem:[#allocation5 + $0x20] sm:$0xff]
    %v423 = vld [vmem:[#allocation5 + $0x28] sm:$0xff]
    %v424 = vld [vmem:[#allocation5 + $0x30] sm:$0xff]
    %v425 = vld [vmem:[#allocation5 + $0x38] sm:$0xff]
    %v426 = vld [vmem:[#allocation5 + $0x40] sm:$0xff]
    %v427 = vld [vmem:[#allocation5 + $0x48] sm:$0xff]
    %v428 = vld [vmem:[#allocation5 + $0x50] sm:$0xff]
    %v429 = vld [vmem:[#allocation5 + $0x58] sm:$0xff]
    %v430 = vld [vmem:[#allocation5 + $0x60] sm:$0xff]
    %v431 = vld [vmem:[#allocation5 + $0x68] sm:$0xff]
    %v432 = vld [vmem:[#allocation5 + $0x70] sm:$0xff]
    %v433 = vld [vmem:[#allocation5 + $0x78] sm:$0xff]
    %v450 = vunpack.c.l.b16 %v418
    %v451 = vunpack.c.h.b16 %v418
    %v452 = vunpack.c.l.b16 %v419
    %v453 = vunpack.c.h.b16 %v419
    %v454 = vunpack.c.l.b16 %v420
    %v455 = vunpack.c.h.b16 %v420
    %v456 = vunpack.c.l.b16 %v421
    %v457 = vunpack.c.h.b16 %v421
    %v458 = vunpack.c.l.b16 %v422
    %v459 = vunpack.c.h.b16 %v422
    %v460 = vunpack.c.l.b16 %v423
    %v461 = vunpack.c.h.b16 %v423
    %v462 = vunpack.c.l.b16 %v424
    %v463 = vunpack.c.h.b16 %v424
    %v464 = vunpack.c.l.b16 %v425
    %v465 = vunpack.c.h.b16 %v425
    %v466 = vunpack.c.l.b16 %v426
    %v467 = vunpack.c.h.b16 %v426
    %v468 = vunpack.c.l.b16 %v427
    %v469 = vunpack.c.h.b16 %v427
    %v470 = vunpack.c.l.b16 %v428
    %v471 = vunpack.c.h.b16 %v428
    %v472 = vunpack.c.l.b16 %v429
    %v473 = vunpack.c.h.b16 %v429
    %v474 = vunpack.c.l.b16 %v430
    %v475 = vunpack.c.h.b16 %v430
    %v476 = vunpack.c.l.b16 %v431
    %v477 = vunpack.c.h.b16 %v431
    %v478 = vunpack.c.l.b16 %v432
    %v479 = vunpack.c.h.b16 %v432
    %v480 = vunpack.c.l.b16 %v433
    %v481 = vunpack.c.h.b16 %v433
    %v482 = vpack.c.b16 %v452, %v450
    %v483 = vpack.c.b16 %v453, %v451
    %v484 = vpack.c.b16 %v456, %v454
    %v485 = vpack.c.b16 %v457, %v455
    %v486 = vpack.c.b16 %v460, %v458
    %v487 = vpack.c.b16 %v461, %v459
    %v488 = vpack.c.b16 %v464, %v462
    %v489 = vpack.c.b16 %v465, %v463
    %v490 = vpack.c.b16 %v468, %v466
    %v491 = vpack.c.b16 %v469, %v467
    %v492 = vpack.c.b16 %v472, %v470
    %v493 = vpack.c.b16 %v473, %v471
    %v494 = vpack.c.b16 %v476, %v474
    %v495 = vpack.c.b16 %v477, %v475
    %v496 = vpack.c.b16 %v480, %v478
    %v497 = vpack.c.b16 %v481, %v479
    %514 = vmatprep.subr.bf16.mxu0 %v483
    %515 = vmatpush1.bf16.msra.mxu0 %v482
    %516 = vmatprep.subr.bf16.mxu0 %v485
    %517 = vmatpush1.bf16.msra.mxu0 %v484
    %518 = vmatprep.subr.bf16.mxu0 %v487
    %519 = vmatpush1.bf16.msra.mxu0 %v486
    %520 = vmatprep.subr.bf16.mxu0 %v489
    %521 = vmatpush1.bf16.msra.mxu0 %v488
    %522 = vmatprep.subr.bf16.mxu0 %v491
    %523 = vmatpush1.bf16.msra.mxu0 %v490
    %524 = vmatprep.subr.bf16.mxu0 %v493
    %525 = vmatpush1.bf16.msra.mxu0 %v492
    %526 = vmatprep.subr.bf16.mxu0 %v495
    %527 = vmatpush1.bf16.msra.mxu0 %v494
    %528 = vmatprep.subr.bf16.mxu0 %v497
    %529 = vmatpush1.bf16.msra.mxu0 %v496
    %530 = vmatprep.subr.bf16.mxu0 0
    %531 = vmatpush1.bf16.msra.mxu0 0
    %532 = vmatprep.subr.bf16.mxu0 0
    %533 = vmatpush1.bf16.msra.mxu0 0
    %534 = vmatprep.subr.bf16.mxu0 0
    %535 = vmatpush1.bf16.msra.mxu0 0
    %536 = vmatprep.subr.bf16.mxu0 0
    %537 = vmatpush1.bf16.msra.mxu0 0
    %538 = vmatprep.subr.bf16.mxu0 0
    %539 = vmatpush1.bf16.msra.mxu0 0
    %540 = vmatprep.subr.bf16.mxu0 0
    %541 = vmatpush1.bf16.msra.mxu0 0
    %542 = vmatprep.subr.bf16.mxu0 0
    %543 = vmatpush1.bf16.msra.mxu0 0
    %544 = vmatprep.subr.bf16.mxu0 0
    %545 = vmatpush1.bf16.msra.mxu0 0
    %546 = vmatprep.mubr.bf16.mxu0 0
    %547 = vmatmul.mubr.bf16.gmra.mrb[0].mxu0 %v269
    %v548 = vpop.f32.mrb[0].mxu0
    %v549 = vadd.f32 0.0, %v548
    %v550 = vpop.f32.mrb[0].mxu0
    %v551 = vadd.f32 0.0, %v550
    %v552 = vpop.f32.mrb[0].mxu0
    %v553 = vpop.f32.mrb[0].mxu0
    %554 = vdwg.mxu0
    %v555 = vld [vmem:[%s1] sm:$0xf]
    %v556 = vlaneseq
    %v557 = vand.u32 %v556, 127
    %558 = vset.pattern.permute.xlu0 0
    %559 = vperm.xlu0 %558, %v143
    %v560 = vpop.permute.xlu0 %559
    %vm561 = vcmp.eq.s32.totalorder %v557, %v560
    %v562 = vsel %vm561, 1, 0
    %v563 = vcvt.s32.f32 %v562
    %vm564 = vcmask 64512
    %v566 = vsel %vm564, %v563, 0
    %568 = vmatprep.subr.mxu0 %v551
    %569 = vmatpush1.msra.mxu0 %v549
    %570 = vmatprep.subr.mxu0 0.0
    %571 = vmatpush1.msra.mxu0 0.0
    %572 = vmatprep.subr.mxu0 0.0
    %573 = vmatpush1.msra.mxu0 0.0
    %574 = vmatprep.subr.mxu0 0.0
    %575 = vmatpush1.msra.mxu0 0.0
    %576 = vmatprep.subr.mxu0 0.0
    %577 = vmatpush1.msra.mxu0 0.0
    %578 = vmatprep.subr.mxu0 0.0
    %579 = vmatpush1.msra.mxu0 0.0
    %580 = vmatprep.subr.mxu0 0.0
    %581 = vmatpush1.msra.mxu0 0.0
    %582 = vmatprep.subr.mxu0 0.0
    %583 = vmatpush1.msra.mxu0 0.0
    %584 = vmatprep.subr.mxu0 0.0
    %585 = vmatpush1.msra.mxu0 0.0
    %586 = vmatprep.subr.mxu0 0.0
    %587 = vmatpush1.msra.mxu0 0.0
    %588 = vmatprep.subr.mxu0 0.0
    %589 = vmatpush1.msra.mxu0 0.0
    %590 = vmatprep.subr.mxu0 0.0
    %591 = vmatpush1.msra.mxu0 0.0
    %592 = vmatprep.subr.mxu0 0.0
    %593 = vmatpush1.msra.mxu0 0.0
    %594 = vmatprep.subr.mxu0 0.0
    %595 = vmatpush1.msra.mxu0 0.0
    %596 = vmatprep.subr.mxu0 0.0
    %597 = vmatpush1.msra.mxu0 0.0
    %598 = vmatprep.subr.mxu0 0.0
    %599 = vmatpush1.msra.mxu0 0.0
    %600 = vmatprep.subr.mxu0 0.0
    %601 = vmatpush1.msra.mxu0 0.0
    %602 = vmatprep.subr.mxu0 0.0
    %603 = vmatpush1.msra.mxu0 0.0
    %604 = vmatprep.subr.mxu0 0.0
    %605 = vmatpush1.msra.mxu0 0.0
    %606 = vmatprep.subr.mxu0 0.0
    %607 = vmatpush1.msra.mxu0 0.0
    %608 = vmatprep.subr.mxu0 0.0
    %609 = vmatpush1.msra.mxu0 0.0
    %610 = vmatprep.subr.mxu0 0.0
    %611 = vmatpush1.msra.mxu0 0.0
    %612 = vmatprep.subr.mxu0 0.0
    %613 = vmatpush1.msra.mxu0 0.0
    %614 = vmatprep.subr.mxu0 0.0
    %615 = vmatpush1.msra.mxu0 0.0
    %616 = vmatprep.subr.mxu0 0.0
    %617 = vmatpush1.msra.mxu0 0.0
    %618 = vmatprep.subr.mxu0 0.0
    %619 = vmatpush1.msra.mxu0 0.0
    %620 = vmatprep.subr.mxu0 0.0
    %621 = vmatpush1.msra.mxu0 0.0
    %622 = vmatprep.subr.mxu0 0.0
    %623 = vmatpush1.msra.mxu0 0.0
    %624 = vmatprep.subr.mxu0 0.0
    %625 = vmatpush1.msra.mxu0 0.0
    %626 = vmatprep.subr.mxu0 0.0
    %627 = vmatpush1.msra.mxu0 0.0
    %628 = vmatprep.subr.mxu0 0.0
    %629 = vmatpush1.msra.mxu0 0.0
    %630 = vmatprep.subr.mxu0 0.0
    %631 = vmatpush1.msra.mxu0 0.0
    %632 = vmatprep.mubr.f32.mxu0 0.0
    %633 = vmatmul.mubr.f32.gmra.mrb[0].mxu0 %v566
    %v634 = vpop.f32.mrb[0].mxu0
    %v635 = vadd.f32 0.0, %v634
    %v636 = vpop.f32.mrb[0].mxu0
    %v637 = vadd.f32 0.0, %v636
    %638 = vdwg.mxu0
    %v639 = vadd.f32 %v412, %v635
    %v640 = vadd.f32 %v414, %v637
    %v657 = vunpack.c.l.b16 %v144
    %v658 = vunpack.c.h.b16 %v144
    %v659 = vunpack.c.l.b16 %v145
    %v660 = vunpack.c.h.b16 %v145
    %v661 = vunpack.c.l.b16 %v146
    %v662 = vunpack.c.h.b16 %v146
    %v663 = vunpack.c.l.b16 %v147
    %v664 = vunpack.c.h.b16 %v147
    %v665 = vunpack.c.l.b16 %v148
    %v666 = vunpack.c.h.b16 %v148
    %v667 = vunpack.c.l.b16 %v149
    %v668 = vunpack.c.h.b16 %v149
    %v669 = vunpack.c.l.b16 %v150
    %v670 = vunpack.c.h.b16 %v150
    %v671 = vunpack.c.l.b16 %v151
    %v672 = vunpack.c.h.b16 %v151
    %v673 = vunpack.c.l.b16 %v152
    %v674 = vunpack.c.h.b16 %v152
    %v675 = vunpack.c.l.b16 %v153
    %v676 = vunpack.c.h.b16 %v153
    %v677 = vunpack.c.l.b16 %v154
    %v678 = vunpack.c.h.b16 %v154
    %v679 = vunpack.c.l.b16 %v155
    %v680 = vunpack.c.h.b16 %v155
    %v681 = vunpack.c.l.b16 %v156
    %v682 = vunpack.c.h.b16 %v156
    %v683 = vunpack.c.l.b16 %v157
    %v684 = vunpack.c.h.b16 %v157
    %v685 = vunpack.c.l.b16 %v158
    %v686 = vunpack.c.h.b16 %v158
    %v687 = vunpack.c.l.b16 %v159
    %v688 = vunpack.c.h.b16 %v159
    %v689 = vpack.c.b16 %v659, %v657
    %v690 = vpack.c.b16 %v660, %v658
    %v691 = vpack.c.b16 %v663, %v661
    %v692 = vpack.c.b16 %v664, %v662
    %v693 = vpack.c.b16 %v667, %v665
    %v694 = vpack.c.b16 %v668, %v666
    %v695 = vpack.c.b16 %v671, %v669
    %v696 = vpack.c.b16 %v672, %v670
    %v697 = vpack.c.b16 %v675, %v673
    %v698 = vpack.c.b16 %v676, %v674
    %v699 = vpack.c.b16 %v679, %v677
    %v700 = vpack.c.b16 %v680, %v678
    %v701 = vpack.c.b16 %v683, %v681
    %v702 = vpack.c.b16 %v684, %v682
    %v703 = vpack.c.b16 %v687, %v685
    %v704 = vpack.c.b16 %v688, %v686
    %721 = vmatprep.subr.bf16.mxu0 %v690
    %722 = vmatpush1.bf16.msra.mxu0 %v689
    %723 = vmatprep.subr.bf16.mxu0 %v692
    %724 = vmatpush1.bf16.msra.mxu0 %v691
    %725 = vmatprep.subr.bf16.mxu0 %v694
    %726 = vmatpush1.bf16.msra.mxu0 %v693
    %727 = vmatprep.subr.bf16.mxu0 %v696
    %728 = vmatpush1.bf16.msra.mxu0 %v695
    %729 = vmatprep.subr.bf16.mxu0 %v698
    %730 = vmatpush1.bf16.msra.mxu0 %v697
    %731 = vmatprep.subr.bf16.mxu0 %v700
    %732 = vmatpush1.bf16.msra.mxu0 %v699
    %733 = vmatprep.subr.bf16.mxu0 %v702
    %734 = vmatpush1.bf16.msra.mxu0 %v701
    %735 = vmatprep.subr.bf16.mxu0 %v704
    %736 = vmatpush1.bf16.msra.mxu0 %v703
    %737 = vmatprep.subr.bf16.mxu0 0
    %738 = vmatpush1.bf16.msra.mxu0 0
    %739 = vmatprep.subr.bf16.mxu0 0
    %740 = vmatpush1.bf16.msra.mxu0 0
    %741 = vmatprep.subr.bf16.mxu0 0
    %742 = vmatpush1.bf16.msra.mxu0 0
    %743 = vmatprep.subr.bf16.mxu0 0
    %744 = vmatpush1.bf16.msra.mxu0 0
    %745 = vmatprep.subr.bf16.mxu0 0
    %746 = vmatpush1.bf16.msra.mxu0 0
    %747 = vmatprep.subr.bf16.mxu0 0
    %748 = vmatpush1.bf16.msra.mxu0 0
    %749 = vmatprep.subr.bf16.mxu0 0
    %750 = vmatpush1.bf16.msra.mxu0 0
    %751 = vmatprep.subr.bf16.mxu0 0
    %752 = vmatpush1.bf16.msra.mxu0 0
    %753 = vmatprep.mubr.bf16.mxu0 0
    %754 = vmatmul.mubr.bf16.gmra.mrb[0].mxu0 %v555
    %v755 = vpop.f32.mrb[0].mxu0
    %v756 = vadd.f32 0.0, %v755
    %v757 = vpop.f32.mrb[0].mxu0
    %v758 = vadd.f32 0.0, %v757
    %v759 = vpop.f32.mrb[0].mxu0
    %v760 = vpop.f32.mrb[0].mxu0
    %761 = vdwg.mxu0
    %v762 = vadd.f32 %v639, %v756
    %v763 = vadd.f32 %v640, %v758
    %v764 = vrot.slane %v762, 4
    %v765 = vadd.f32 %v762, %v764
    %v766 = vrot.slane %v765, 2
    %v767 = vadd.f32 %v765, %v766
    %v768 = vrot.slane %v767, 1
    %v769 = vadd.f32 %v767, %v768
    %v770 = vrot.slane %v763, 4
    %v771 = vadd.f32 %v763, %v770
    %v772 = vrot.slane %v771, 2
    %v773 = vadd.f32 %v771, %v772
    %v774 = vrot.slane %v773, 1
    %v775 = vadd.f32 %v773, %v774
    %v776 = vadd.f32 %v769, 0.0
    %v777 = vadd.f32 %v775, 0.0
    %v778 = vmul.f32 %v762, %v762
    %v779 = vmul.f32 %v763, %v763
    %v780 = vrot.slane %v778, 4
    %v781 = vadd.f32 %v778, %v780
    %v782 = vrot.slane %v781, 2
    %v783 = vadd.f32 %v781, %v782
    %v784 = vrot.slane %v783, 1
    %v785 = vadd.f32 %v783, %v784
    %v786 = vrot.slane %v779, 4
    %v787 = vadd.f32 %v779, %v786
    %v788 = vrot.slane %v787, 2
    %v789 = vadd.f32 %v787, %v788
    %v790 = vrot.slane %v789, 1
    %v791 = vadd.f32 %v789, %v790
    %v792 = vadd.f32 %v785, 0.0
    %v793 = vadd.f32 %v791, 0.0
    %v794 = vld [vmem:[%s1 + $0x4] sm:$0xf]
    %795 = vset.pattern.permute.xlu0 1
    %796 = vperm.xlu0 %795, %v143
    %v797 = vpop.permute.xlu0 %796
    %vm798 = vcmp.eq.s32.totalorder %v557, %v797
    %v799 = vsel %vm798, 1, 0
    %v800 = vcvt.s32.f32 %v799
    %v802 = vsel %vm564, %v800, 0
    %804 = vmatprep.subr.mxu0 %v551
    %805 = vmatpush1.msra.mxu0 %v549
    %806 = vmatprep.subr.mxu0 0.0
    %807 = vmatpush1.msra.mxu0 0.0
    %808 = vmatprep.subr.mxu0 0.0
    %809 = vmatpush1.msra.mxu0 0.0
    %810 = vmatprep.subr.mxu0 0.0
    %811 = vmatpush1.msra.mxu0 0.0
    %812 = vmatprep.subr.mxu0 0.0
    %813 = vmatpush1.msra.mxu0 0.0
    %814 = vmatprep.subr.mxu0 0.0
    %815 = vmatpush1.msra.mxu0 0.0
    %816 = vmatprep.subr.mxu0 0.0
    %817 = vmatpush1.msra.mxu0 0.0
    %818 = vmatprep.subr.mxu0 0.0
    %819 = vmatpush1.msra.mxu0 0.0
    %820 = vmatprep.subr.mxu0 0.0
    %821 = vmatpush1.msra.mxu0 0.0
    %822 = vmatprep.subr.mxu0 0.0
    %823 = vmatpush1.msra.mxu0 0.0
    %824 = vmatprep.subr.mxu0 0.0
    %825 = vmatpush1.msra.mxu0 0.0
    %826 = vmatprep.subr.mxu0 0.0
    %827 = vmatpush1.msra.mxu0 0.0
    %828 = vmatprep.subr.mxu0 0.0
    %829 = vmatpush1.msra.mxu0 0.0
    %830 = vmatprep.subr.mxu0 0.0
    %831 = vmatpush1.msra.mxu0 0.0
    %832 = vmatprep.subr.mxu0 0.0
    %833 = vmatpush1.msra.mxu0 0.0
    %834 = vmatprep.subr.mxu0 0.0
    %835 = vmatpush1.msra.mxu0 0.0
    %836 = vmatprep.subr.mxu0 0.0
    %837 = vmatpush1.msra.mxu0 0.0
    %838 = vmatprep.subr.mxu0 0.0
    %839 = vmatpush1.msra.mxu0 0.0
    %840 = vmatprep.subr.mxu0 0.0
    %841 = vmatpush1.msra.mxu0 0.0
    %842 = vmatprep.subr.mxu0 0.0
    %843 = vmatpush1.msra.mxu0 0.0
    %844 = vmatprep.subr.mxu0 0.0
    %845 = vmatpush1.msra.mxu0 0.0
    %846 = vmatprep.subr.mxu0 0.0
    %847 = vmatpush1.msra.mxu0 0.0
    %848 = vmatprep.subr.mxu0 0.0
    %849 = vmatpush1.msra.mxu0 0.0
    %850 = vmatprep.subr.mxu0 0.0
    %851 = vmatpush1.msra.mxu0 0.0
    %852 = vmatprep.subr.mxu0 0.0
    %853 = vmatpush1.msra.mxu0 0.0
    %854 = vmatprep.subr.mxu0 0.0
    %855 = vmatpush1.msra.mxu0 0.0
    %856 = vmatprep.subr.mxu0 0.0
    %857 = vmatpush1.msra.mxu0 0.0
    %858 = vmatprep.subr.mxu0 0.0
    %859 = vmatpush1.msra.mxu0 0.0
    %860 = vmatprep.subr.mxu0 0.0
    %861 = vmatpush1.msra.mxu0 0.0
    %862 = vmatprep.subr.mxu0 0.0
    %863 = vmatpush1.msra.mxu0 0.0
    %864 = vmatprep.subr.mxu0 0.0
    %865 = vmatpush1.msra.mxu0 0.0
    %866 = vmatprep.subr.mxu0 0.0
    %867 = vmatpush1.msra.mxu0 0.0
    %868 = vmatprep.mubr.f32.mxu0 0.0
    %869 = vmatmul.mubr.f32.gmra.mrb[0].mxu0 %v802
    %v870 = vpop.f32.mrb[0].mxu0
    %v871 = vadd.f32 0.0, %v870
    %v872 = vpop.f32.mrb[0].mxu0
    %v873 = vadd.f32 0.0, %v872
    %874 = vdwg.mxu0
    %v875 = vadd.f32 %v412, %v871
    %v876 = vadd.f32 %v414, %v873
    %877 = vmatprep.subr.bf16.mxu0 %v690
    %878 = vmatpush1.bf16.msra.mxu0 %v689
    %879 = vmatprep.subr.bf16.mxu0 %v692
    %880 = vmatpush1.bf16.msra.mxu0 %v691
    %881 = vmatprep.subr.bf16.mxu0 %v694
    %882 = vmatpush1.bf16.msra.mxu0 %v693
    %883 = vmatprep.subr.bf16.mxu0 %v696
    %884 = vmatpush1.bf16.msra.mxu0 %v695
    %885 = vmatprep.subr.bf16.mxu0 %v698
    %886 = vmatpush1.bf16.msra.mxu0 %v697
    %887 = vmatprep.subr.bf16.mxu0 %v700
    %888 = vmatpush1.bf16.msra.mxu0 %v699
    %889 = vmatprep.subr.bf16.mxu0 %v702
    %890 = vmatpush1.bf16.msra.mxu0 %v701
    %891 = vmatprep.subr.bf16.mxu0 %v704
    %892 = vmatpush1.bf16.msra.mxu0 %v703
    %893 = vmatprep.subr.bf16.mxu0 0
    %894 = vmatpush1.bf16.msra.mxu0 0
    %895 = vmatprep.subr.bf16.mxu0 0
    %896 = vmatpush1.bf16.msra.mxu0 0
    %897 = vmatprep.subr.bf16.mxu0 0
    %898 = vmatpush1.bf16.msra.mxu0 0
    %899 = vmatprep.subr.bf16.mxu0 0
    %900 = vmatpush1.bf16.msra.mxu0 0
    %901 = vmatprep.subr.bf16.mxu0 0
    %902 = vmatpush1.bf16.msra.mxu0 0
    %903 = vmatprep.subr.bf16.mxu0 0
    %904 = vmatpush1.bf16.msra.mxu0 0
    %905 = vmatprep.subr.bf16.mxu0 0
    %906 = vmatpush1.bf16.msra.mxu0 0
    %907 = vmatprep.subr.bf16.mxu0 0
    %908 = vmatpush1.bf16.msra.mxu0 0
    %909 = vmatprep.mubr.bf16.mxu0 0
    %910 = vmatmul.mubr.bf16.gmra.mrb[0].mxu0 %v794
    %v911 = vpop.f32.mrb[0].mxu0
    %v912 = vadd.f32 0.0, %v911
    %v913 = vpop.f32.mrb[0].mxu0
    %v914 = vadd.f32 0.0, %v913
    %v915 = vpop.f32.mrb[0].mxu0
    %v916 = vpop.f32.mrb[0].mxu0
    %917 = vdwg.mxu0
    %v918 = vadd.f32 %v875, %v912
    %v919 = vadd.f32 %v876, %v914
    %v920 = vrot.slane %v918, 4
    %v921 = vadd.f32 %v918, %v920
    %v922 = vrot.slane %v921, 2
    %v923 = vadd.f32 %v921, %v922
    %v924 = vrot.slane %v923, 1
    %v925 = vadd.f32 %v923, %v924
    %v926 = vrot.slane %v919, 4
    %v927 = vadd.f32 %v919, %v926
    %v928 = vrot.slane %v927, 2
    %v929 = vadd.f32 %v927, %v928
    %v930 = vrot.slane %v929, 1
    %v931 = vadd.f32 %v929, %v930
    %v932 = vadd.f32 %v776, %v925
    %v933 = vadd.f32 %v777, %v931
    %v934 = vmul.f32 %v918, %v918
    %v935 = vmul.f32 %v919, %v919
    %v936 = vrot.slane %v934, 4
    %v937 = vadd.f32 %v934, %v936
    %v938 = vrot.slane %v937, 2
    %v939 = vadd.f32 %v937, %v938
    %v940 = vrot.slane %v939, 1
    %v941 = vadd.f32 %v939, %v940
    %v942 = vrot.slane %v935, 4
    %v943 = vadd.f32 %v935, %v942
    %v944 = vrot.slane %v943, 2
    %v945 = vadd.f32 %v943, %v944
    %v946 = vrot.slane %v945, 1
    %v947 = vadd.f32 %v945, %v946
    %v948 = vadd.f32 %v792, %v941
    %v949 = vadd.f32 %v793, %v947
    %v950 = vld [vmem:[%s1 + $0x8] sm:$0xf]
    %951 = vset.pattern.permute.xlu0 2
    %952 = vperm.xlu0 %951, %v143
    %v953 = vpop.permute.xlu0 %952
    %vm954 = vcmp.eq.s32.totalorder %v557, %v953
    %v955 = vsel %vm954, 1, 0
    %v956 = vcvt.s32.f32 %v955
    %v958 = vsel %vm564, %v956, 0
    %960 = vmatprep.subr.mxu0 %v551
    %961 = vmatpush1.msra.mxu0 %v549
    %962 = vmatprep.subr.mxu0 0.0
    %963 = vmatpush1.msra.mxu0 0.0
    %964 = vmatprep.subr.mxu0 0.0
    %965 = vmatpush1.msra.mxu0 0.0
    %966 = vmatprep.subr.mxu0 0.0
    %967 = vmatpush1.msra.mxu0 0.0
    %968 = vmatprep.subr.mxu0 0.0
    %969 = vmatpush1.msra.mxu0 0.0
    %970 = vmatprep.subr.mxu0 0.0
    %971 = vmatpush1.msra.mxu0 0.0
    %972 = vmatprep.subr.mxu0 0.0
    %973 = vmatpush1.msra.mxu0 0.0
    %974 = vmatprep.subr.mxu0 0.0
    %975 = vmatpush1.msra.mxu0 0.0
    %976 = vmatprep.subr.mxu0 0.0
    %977 = vmatpush1.msra.mxu0 0.0
    %978 = vmatprep.subr.mxu0 0.0
    %979 = vmatpush1.msra.mxu0 0.0
    %980 = vmatprep.subr.mxu0 0.0
    %981 = vmatpush1.msra.mxu0 0.0
    %982 = vmatprep.subr.mxu0 0.0
    %983 = vmatpush1.msra.mxu0 0.0
    %984 = vmatprep.subr.mxu0 0.0
    %985 = vmatpush1.msra.mxu0 0.0
    %986 = vmatprep.subr.mxu0 0.0
    %987 = vmatpush1.msra.mxu0 0.0
    %988 = vmatprep.subr.mxu0 0.0
    %989 = vmatpush1.msra.mxu0 0.0
    %990 = vmatprep.subr.mxu0 0.0
    %991 = vmatpush1.msra.mxu0 0.0
    %992 = vmatprep.subr.mxu0 0.0
    %993 = vmatpush1.msra.mxu0 0.0
    %994 = vmatprep.subr.mxu0 0.0
    %995 = vmatpush1.msra.mxu0 0.0
    %996 = vmatprep.subr.mxu0 0.0
    %997 = vmatpush1.msra.mxu0 0.0
    %998 = vmatprep.subr.mxu0 0.0
    %999 = vmatpush1.msra.mxu0 0.0
    %1000 = vmatprep.subr.mxu0 0.0
    %1001 = vmatpush1.msra.mxu0 0.0
    %1002 = vmatprep.subr.mxu0 0.0
    %1003 = vmatpush1.msra.mxu0 0.0
    %1004 = vmatprep.subr.mxu0 0.0
    %1005 = vmatpush1.msra.mxu0 0.0
    %1006 = vmatprep.subr.mxu0 0.0
    %1007 = vmatpush1.msra.mxu0 0.0
    %1008 = vmatprep.subr.mxu0 0.0
    %1009 = vmatpush1.msra.mxu0 0.0
    %1010 = vmatprep.subr.mxu0 0.0
    %1011 = vmatpush1.msra.mxu0 0.0
    %1012 = vmatprep.subr.mxu0 0.0
    %1013 = vmatpush1.msra.mxu0 0.0
    %1014 = vmatprep.subr.mxu0 0.0
    %1015 = vmatpush1.msra.mxu0 0.0
    %1016 = vmatprep.subr.mxu0 0.0
    %1017 = vmatpush1.msra.mxu0 0.0
    %1018 = vmatprep.subr.mxu0 0.0
    %1019 = vmatpush1.msra.mxu0 0.0
    %1020 = vmatprep.subr.mxu0 0.0
    %1021 = vmatpush1.msra.mxu0 0.0
    %1022 = vmatprep.subr.mxu0 0.0
    %1023 = vmatpush1.msra.mxu0 0.0
    %1024 = vmatprep.mubr.f32.mxu0 0.0
    %1025 = vmatmul.mubr.f32.gmra.mrb[0].mxu0 %v958
    %v1026 = vpop.f32.mrb[0].mxu0
    %v1027 = vadd.f32 0.0, %v1026
    %v1028 = vpop.f32.mrb[0].mxu0
    %v1029 = vadd.f32 0.0, %v1028
    %1030 = vdwg.mxu0
    %v1031 = vadd.f32 %v412, %v1027
    %v1032 = vadd.f32 %v414, %v1029
    %1033 = vmatprep.subr.bf16.mxu0 %v690
    %1034 = vmatpush1.bf16.msra.mxu0 %v689
    %1035 = vmatprep.subr.bf16.mxu0 %v692
    %1036 = vmatpush1.bf16.msra.mxu0 %v691
    %1037 = vmatprep.subr.bf16.mxu0 %v694
    %1038 = vmatpush1.bf16.msra.mxu0 %v693
    %1039 = vmatprep.subr.bf16.mxu0 %v696
    %1040 = vmatpush1.bf16.msra.mxu0 %v695
    %1041 = vmatprep.subr.bf16.mxu0 %v698
    %1042 = vmatpush1.bf16.msra.mxu0 %v697
    %1043 = vmatprep.subr.bf16.mxu0 %v700
    %1044 = vmatpush1.bf16.msra.mxu0 %v699
    %1045 = vmatprep.subr.bf16.mxu0 %v702
    %1046 = vmatpush1.bf16.msra.mxu0 %v701
    %1047 = vmatprep.subr.bf16.mxu0 %v704
    %1048 = vmatpush1.bf16.msra.mxu0 %v703
    %1049 = vmatprep.subr.bf16.mxu0 0
    %1050 = vmatpush1.bf16.msra.mxu0 0
    %1051 = vmatprep.subr.bf16.mxu0 0
    %1052 = vmatpush1.bf16.msra.mxu0 0
    %1053 = vmatprep.subr.bf16.mxu0 0
    %1054 = vmatpush1.bf16.msra.mxu0 0
    %1055 = vmatprep.subr.bf16.mxu0 0
    %1056 = vmatpush1.bf16.msra.mxu0 0
    %1057 = vmatprep.subr.bf16.mxu0 0
    %1058 = vmatpush1.bf16.msra.mxu0 0
    %1059 = vmatprep.subr.bf16.mxu0 0
    %1060 = vmatpush1.bf16.msra.mxu0 0
    %1061 = vmatprep.subr.bf16.mxu0 0
    %1062 = vmatpush1.bf16.msra.mxu0 0
    %1063 = vmatprep.subr.bf16.mxu0 0
    %1064 = vmatpush1.bf16.msra.mxu0 0
    %1065 = vmatprep.mubr.bf16.mxu0 0
    %1066 = vmatmul.mubr.bf16.gmra.mrb[0].mxu0 %v950
    %v1067 = vpop.f32.mrb[0].mxu0
    %v1068 = vadd.f32 0.0, %v1067
    %v1069 = vpop.f32.mrb[0].mxu0
    %v1070 = vadd.f32 0.0, %v1069
    %v1071 = vpop.f32.mrb[0].mxu0
    %v1072 = vpop.f32.mrb[0].mxu0
    %1073 = vdwg.mxu0
    %v1074 = vadd.f32 %v1031, %v1068
    %v1075 = vadd.f32 %v1032, %v1070
    %v1076 = vrot.slane %v1074, 4
    %v1077 = vadd.f32 %v1074, %v1076
    %v1078 = vrot.slane %v1077, 2
    %v1079 = vadd.f32 %v1077, %v1078
    %v1080 = vrot.slane %v1079, 1
    %v1081 = vadd.f32 %v1079, %v1080
    %v1082 = vrot.slane %v1075, 4
    %v1083 = vadd.f32 %v1075, %v1082
    %v1084 = vrot.slane %v1083, 2
    %v1085 = vadd.f32 %v1083, %v1084
    %v1086 = vrot.slane %v1085, 1
    %v1087 = vadd.f32 %v1085, %v1086
    %v1088 = vadd.f32 %v932, %v1081
    %v1089 = vadd.f32 %v933, %v1087
    %v1090 = vmul.f32 %v1074, %v1074
    %v1091 = vmul.f32 %v1075, %v1075
    %v1092 = vrot.slane %v1090, 4
    %v1093 = vadd.f32 %v1090, %v1092
    %v1094 = vrot.slane %v1093, 2
    %v1095 = vadd.f32 %v1093, %v1094
    %v1096 = vrot.slane %v1095, 1
    %v1097 = vadd.f32 %v1095, %v1096
    %v1098 = vrot.slane %v1091, 4
    %v1099 = vadd.f32 %v1091, %v1098
    %v1100 = vrot.slane %v1099, 2
    %v1101 = vadd.f32 %v1099, %v1100
    %v1102 = vrot.slane %v1101, 1
    %v1103 = vadd.f32 %v1101, %v1102
    %v1104 = vadd.f32 %v948, %v1097
    %v1105 = vadd.f32 %v949, %v1103
    %v1106 = vld [vmem:[%s1 + $0xc] sm:$0xf]
    %1107 = vset.pattern.permute.xlu0 3
    %1108 = vperm.xlu0 %1107, %v143
    %v1109 = vpop.permute.xlu0 %1108
    %vm1110 = vcmp.eq.s32.totalorder %v557, %v1109
    %v1111 = vsel %vm1110, 1, 0
    %v1112 = vcvt.s32.f32 %v1111
    %v1114 = vsel %vm564, %v1112, 0
    %1116 = vmatprep.subr.mxu0 %v551
    %1117 = vmatpush1.msra.mxu0 %v549
    %1118 = vmatprep.subr.mxu0 0.0
    %1119 = vmatpush1.msra.mxu0 0.0
    %1120 = vmatprep.subr.mxu0 0.0
    %1121 = vmatpush1.msra.mxu0 0.0
    %1122 = vmatprep.subr.mxu0 0.0
    %1123 = vmatpush1.msra.mxu0 0.0
    %1124 = vmatprep.subr.mxu0 0.0
    %1125 = vmatpush1.msra.mxu0 0.0
    %1126 = vmatprep.subr.mxu0 0.0
    %1127 = vmatpush1.msra.mxu0 0.0
    %1128 = vmatprep.subr.mxu0 0.0
    %1129 = vmatpush1.msra.mxu0 0.0
    %1130 = vmatprep.subr.mxu0 0.0
    %1131 = vmatpush1.msra.mxu0 0.0
    %1132 = vmatprep.subr.mxu0 0.0
    %1133 = vmatpush1.msra.mxu0 0.0
    %1134 = vmatprep.subr.mxu0 0.0
    %1135 = vmatpush1.msra.mxu0 0.0
    %1136 = vmatprep.subr.mxu0 0.0
    %1137 = vmatpush1.msra.mxu0 0.0
    %1138 = vmatprep.subr.mxu0 0.0
    %1139 = vmatpush1.msra.mxu0 0.0
    %1140 = vmatprep.subr.mxu0 0.0
    %1141 = vmatpush1.msra.mxu0 0.0
    %1142 = vmatprep.subr.mxu0 0.0
    %1143 = vmatpush1.msra.mxu0 0.0
    %1144 = vmatprep.subr.mxu0 0.0
    %1145 = vmatpush1.msra.mxu0 0.0
    %1146 = vmatprep.subr.mxu0 0.0
    %1147 = vmatpush1.msra.mxu0 0.0
    %1148 = vmatprep.subr.mxu0 0.0
    %1149 = vmatpush1.msra.mxu0 0.0
    %1150 = vmatprep.subr.mxu0 0.0
    %1151 = vmatpush1.msra.mxu0 0.0
    %1152 = vmatprep.subr.mxu0 0.0
    %1153 = vmatpush1.msra.mxu0 0.0
    %1154 = vmatprep.subr.mxu0 0.0
    %1155 = vmatpush1.msra.mxu0 0.0
    %1156 = vmatprep.subr.mxu0 0.0
    %1157 = vmatpush1.msra.mxu0 0.0
    %1158 = vmatprep.subr.mxu0 0.0
    %1159 = vmatpush1.msra.mxu0 0.0
    %1160 = vmatprep.subr.mxu0 0.0
    %1161 = vmatpush1.msra.mxu0 0.0
    %1162 = vmatprep.subr.mxu0 0.0
    %1163 = vmatpush1.msra.mxu0 0.0
    %1164 = vmatprep.subr.mxu0 0.0
    %1165 = vmatpush1.msra.mxu0 0.0
    %1166 = vmatprep.subr.mxu0 0.0
    %1167 = vmatpush1.msra.mxu0 0.0
    %1168 = vmatprep.subr.mxu0 0.0
    %1169 = vmatpush1.msra.mxu0 0.0
    %1170 = vmatprep.subr.mxu0 0.0
    %1171 = vmatpush1.msra.mxu0 0.0
    %1172 = vmatprep.subr.mxu0 0.0
    %1173 = vmatpush1.msra.mxu0 0.0
    %1174 = vmatprep.subr.mxu0 0.0
    %1175 = vmatpush1.msra.mxu0 0.0
    %1176 = vmatprep.subr.mxu0 0.0
    %1177 = vmatpush1.msra.mxu0 0.0
    %1178 = vmatprep.subr.mxu0 0.0
    %1179 = vmatpush1.msra.mxu0 0.0
    %1180 = vmatprep.mubr.f32.mxu0 0.0
    %1181 = vmatmul.mubr.f32.gmra.mrb[0].mxu0 %v1114
    %v1182 = vpop.f32.mrb[0].mxu0
    %v1183 = vadd.f32 0.0, %v1182
    %v1184 = vpop.f32.mrb[0].mxu0
    %v1185 = vadd.f32 0.0, %v1184
    %1186 = vdwg.mxu0
    %v1187 = vadd.f32 %v412, %v1183
    %v1188 = vadd.f32 %v414, %v1185
    %1189 = vmatprep.subr.bf16.mxu0 %v690
    %1190 = vmatpush1.bf16.msra.mxu0 %v689
    %1191 = vmatprep.subr.bf16.mxu0 %v692
    %1192 = vmatpush1.bf16.msra.mxu0 %v691
    %1193 = vmatprep.subr.bf16.mxu0 %v694
    %1194 = vmatpush1.bf16.msra.mxu0 %v693
    %1195 = vmatprep.subr.bf16.mxu0 %v696
    %1196 = vmatpush1.bf16.msra.mxu0 %v695
    %1197 = vmatprep.subr.bf16.mxu0 %v698
    %1198 = vmatpush1.bf16.msra.mxu0 %v697
    %1199 = vmatprep.subr.bf16.mxu0 %v700
    %1200 = vmatpush1.bf16.msra.mxu0 %v699
    %1201 = vmatprep.subr.bf16.mxu0 %v702
    %1202 = vmatpush1.bf16.msra.mxu0 %v701
    %1203 = vmatprep.subr.bf16.mxu0 %v704
    %1204 = vmatpush1.bf16.msra.mxu0 %v703
    %1205 = vmatprep.subr.bf16.mxu0 0
    %1206 = vmatpush1.bf16.msra.mxu0 0
    %1207 = vmatprep.subr.bf16.mxu0 0
    %1208 = vmatpush1.bf16.msra.mxu0 0
    %1209 = vmatprep.subr.bf16.mxu0 0
    %1210 = vmatpush1.bf16.msra.mxu0 0
    %1211 = vmatprep.subr.bf16.mxu0 0
    %1212 = vmatpush1.bf16.msra.mxu0 0
    %1213 = vmatprep.subr.bf16.mxu0 0
    %1214 = vmatpush1.bf16.msra.mxu0 0
    %1215 = vmatprep.subr.bf16.mxu0 0
    %1216 = vmatpush1.bf16.msra.mxu0 0
    %1217 = vmatprep.subr.bf16.mxu0 0
    %1218 = vmatpush1.bf16.msra.mxu0 0
    %1219 = vmatprep.subr.bf16.mxu0 0
    %1220 = vmatpush1.bf16.msra.mxu0 0
    %1221 = vmatprep.mubr.bf16.mxu0 0
    %1222 = vmatmul.mubr.bf16.gmra.mrb[0].mxu0 %v1106
    %v1223 = vpop.f32.mrb[0].mxu0
    %v1224 = vadd.f32 0.0, %v1223
    %v1225 = vpop.f32.mrb[0].mxu0
    %v1226 = vadd.f32 0.0, %v1225
    %v1227 = vpop.f32.mrb[0].mxu0
    %v1228 = vpop.f32.mrb[0].mxu0
    %1229 = vdwg.mxu0
    %v1230 = vadd.f32 %v1187, %v1224
    %v1231 = vadd.f32 %v1188, %v1226
    %v1232 = vrot.slane %v1230, 4
    %v1233 = vadd.f32 %v1230, %v1232
    %v1234 = vrot.slane %v1233, 2
    %v1235 = vadd.f32 %v1233, %v1234
    %v1236 = vrot.slane %v1235, 1
    %v1237 = vadd.f32 %v1235, %v1236
    %v1238 = vrot.slane %v1231, 4
    %v1239 = vadd.f32 %v1231, %v1238
    %v1240 = vrot.slane %v1239, 2
    %v1241 = vadd.f32 %v1239, %v1240
    %v1242 = vrot.slane %v1241, 1
    %v1243 = vadd.f32 %v1241, %v1242
    %v1244 = vadd.f32 %v1088, %v1237
    %v1245 = vadd.f32 %v1089, %v1243
    %v1246 = vmul.f32 %v1230, %v1230
    %v1247 = vmul.f32 %v1231, %v1231
    %v1248 = vrot.slane %v1246, 4
    %v1249 = vadd.f32 %v1246, %v1248
    %v1250 = vrot.slane %v1249, 2
    %v1251 = vadd.f32 %v1249, %v1250
    %v1252 = vrot.slane %v1251, 1
    %v1253 = vadd.f32 %v1251, %v1252
    %v1254 = vrot.slane %v1247, 4
    %v1255 = vadd.f32 %v1247, %v1254
    %v1256 = vrot.slane %v1255, 2
    %v1257 = vadd.f32 %v1255, %v1256
    %v1258 = vrot.slane %v1257, 1
    %v1259 = vadd.f32 %v1257, %v1258
    %v1260 = vadd.f32 %v1104, %v1253
    %v1261 = vadd.f32 %v1105, %v1259
    %v1262 = vrcp.pop 32.0
    %v1263 = vmul.f32 %v1244, %v1262
    %v1264 = vmul.f32 %v1245, %v1262
    %v1265 = vmul.f32 %v1260, %v1262
    %v1266 = vmul.f32 %v1261, %v1262
    %v1267 = vmul.f32 %v1263, %v1263
    %v1268 = vmul.f32 %v1264, %v1264
    %v1269 = vsub.f32 %v1265, %v1267
    %v1270 = vsub.f32 %v1266, %v1268
    %v1271 = vmax.f32 %v1269, 0.0
    %v1272 = vmax.f32 %v1270, 0.0
    %v1273 = vadd.f32 %v1271, 1e-05
    %v1274 = vadd.f32 %v1272, 1e-05
    %v1275 = vrsqrt.pop %v1273
    %v1276 = vrsqrt.pop %v1274
    %v1278 = vlaneseq
    %v1279 = vshrl.u32 %v1278, 7
    %v1280 = vsub.s32 0, %v1279
    %v1281 = vrot.slane %v133, %v1280
    %v1282 = vlaneseq
    %v1283 = vshrl.u32 %v1282, 7
    %v1284 = vsub.s32 1, %v1283
    %v1285 = vrot.slane %v133, %v1284
    %v1288 = vmul.f32 %v1275, %v1281
    %v1289 = vmul.f32 %v1276, %v1285
    %v1290 = vmul.f32 %v1263, %v1288
    %v1291 = vmul.f32 %v1264, %v1289
    %v1294 = vcombine.low %v1290, %v1291
    %v1296 = vunpack.c.l.s4 1966171168
    %v1297 = vunpack.c.0.s8 %v1296
    %v1298 = vlaneseq
    %v1299 = vshrl.u32 %v1298, 7
    %v1300 = vsub.s32 %v1297, %v1299
    %v1301 = vrot.slane %v1294, %v1300
    %v1303 = vunpack.c.l.s4 1966171168
    %v1304 = vunpack.c.0.s8 %v1303
    %v1305 = vlaneseq
    %v1306 = vshrl.u32 %v1305, 7
    %v1307 = vsub.s32 %v1304, %v1306
    %v1308 = vrot.slane %v1301, %v1307
    %v1310 = vsub.f32 %v135, %v1308
    %v1311 = vlaneseq
    %v1312 = vshrl.u32 %v1311, 7
    %v1313 = vsub.s32 0, %v1312
    %v1314 = vrot.slane %v1288, %v1313
    %v1315 = vlaneseq
    %v1316 = vshrl.u32 %v1315, 7
    %v1317 = vsub.s32 0, %v1316
    %v1318 = vrot.slane %v1289, %v1317
    %v1319 = vmul.f32 %v762, %v1314
    %v1320 = vmul.f32 %v763, %v1318
    %v1322 = vlaneseq
    %v1323 = vshrl.u32 %v1322, 7
    %v1324 = vsub.s32 0, %v1323
    %v1325 = vrot.slane %v1310, %v1324
    %v1326 = vlaneseq
    %v1327 = vshrl.u32 %v1326, 7
    %v1328 = vsub.s32 1, %v1327
    %v1329 = vrot.slane %v1310, %v1328
    %v1332 = vadd.f32 %v1319, %v1325
    %v1333 = vadd.f32 %v1320, %v1329
    %v1335 = vlaneseq
    %v1336 = vshrl.u32 %v1335, 7
    %v1337 = vsub.s32 0, %v1336
    %v1338 = vrot.slane %v131, %v1337
    %v1339 = vlaneseq
    %v1340 = vshrl.u32 %v1339, 7
    %v1341 = vsub.s32 1, %v1340
    %v1342 = vrot.slane %v131, %v1341
    %v1345 = vmul.f32 %v1332, %v1338
    %v1346 = vmul.f32 %v1333, %v1342
    %v1347 = vadd.f32 %v1345, %v1346
    %1348 = vadd.xlane.f32.xlu0 %v1347
    %v1349 = vpop.xlane.xlu0 %1348
    %vm1350 = vcmask 7168
    %v1351 = vsel %vm1350, %v1349, 0.0
    %1352 = vadd.xlane.f32.xlu0 %v1351
    %v1353 = vpop.xlane.xlu0 %1352
    %v1354 = vrot.slane %v1353, 4
    %v1355 = vadd.f32 %v1353, %v1354
    %v1356 = vrot.slane %v1355, 2
    %v1357 = vadd.f32 %v1355, %v1356
    %v1358 = vrot.slane %v1357, 1
    %v1359 = vadd.f32 %v1357, %v1358
    %s1360 = vtos %v1359
    %s1361 = sadd.f32 %s1360, 0.0
    %v1362 = vmul.f32 %v1349, %v1349
    %v1363 = vsel %vm1350, %v1362, 0.0
    %1364 = vadd.xlane.f32.xlu0 %v1363
    %v1365 = vpop.xlane.xlu0 %1364
    %v1366 = vrot.slane %v1365, 4
    %v1367 = vadd.f32 %v1365, %v1366
    %v1368 = vrot.slane %v1367, 2
    %v1369 = vadd.f32 %v1367, %v1368
    %v1370 = vrot.slane %v1369, 1
    %v1371 = vadd.f32 %v1369, %v1370
    %s1372 = vtos %v1371
    %s1373 = sadd.f32 %s1372, 0.0
    %v1374 = vmul.f32 %v918, %v1314
    %v1375 = vmul.f32 %v919, %v1318
    %v1376 = vadd.f32 %v1374, %v1325
    %v1377 = vadd.f32 %v1375, %v1329
    %v1378 = vmul.f32 %v1376, %v1338
    %v1379 = vmul.f32 %v1377, %v1342
    %v1380 = vadd.f32 %v1378, %v1379
    %1381 = vadd.xlane.f32.xlu0 %v1380
    %v1382 = vpop.xlane.xlu0 %1381
    %v1383 = vsel %vm1350, %v1382, 0.0
    %1384 = vadd.xlane.f32.xlu0 %v1383
    %v1385 = vpop.xlane.xlu0 %1384
    %v1386 = vrot.slane %v1385, 4
    %v1387 = vadd.f32 %v1385, %v1386
    %v1388 = vrot.slane %v1387, 2
    %v1389 = vadd.f32 %v1387, %v1388
    %v1390 = vrot.slane %v1389, 1
    %v1391 = vadd.f32 %v1389, %v1390
    %s1392 = vtos %v1391
    %s1393 = sadd.f32 %s1361, %s1392
    %v1394 = vmul.f32 %v1382, %v1382
    %v1395 = vsel %vm1350, %v1394, 0.0
    %1396 = vadd.xlane.f32.xlu0 %v1395
    %v1397 = vpop.xlane.xlu0 %1396
    %v1398 = vrot.slane %v1397, 4
    %v1399 = vadd.f32 %v1397, %v1398
    %v1400 = vrot.slane %v1399, 2
    %v1401 = vadd.f32 %v1399, %v1400
    %v1402 = vrot.slane %v1401, 1
    %v1403 = vadd.f32 %v1401, %v1402
    %s1404 = vtos %v1403
    %s1405 = sadd.f32 %s1373, %s1404
    %v1406 = vmul.f32 %v1074, %v1314
    %v1407 = vmul.f32 %v1075, %v1318
    %v1408 = vadd.f32 %v1406, %v1325
    %v1409 = vadd.f32 %v1407, %v1329
    %v1410 = vmul.f32 %v1408, %v1338
    %v1411 = vmul.f32 %v1409, %v1342
    %v1412 = vadd.f32 %v1410, %v1411
    %1413 = vadd.xlane.f32.xlu0 %v1412
    %v1414 = vpop.xlane.xlu0 %1413
    %v1415 = vsel %vm1350, %v1414, 0.0
    %1416 = vadd.xlane.f32.xlu0 %v1415
    %v1417 = vpop.xlane.xlu0 %1416
    %v1418 = vrot.slane %v1417, 4
    %v1419 = vadd.f32 %v1417, %v1418
    %v1420 = vrot.slane %v1419, 2
    %v1421 = vadd.f32 %v1419, %v1420
    %v1422 = vrot.slane %v1421, 1
    %v1423 = vadd.f32 %v1421, %v1422
    %s1424 = vtos %v1423
    %s1425 = sadd.f32 %s1393, %s1424
    %v1426 = vmul.f32 %v1414, %v1414
    %v1427 = vsel %vm1350, %v1426, 0.0
    %1428 = vadd.xlane.f32.xlu0 %v1427
    %v1429 = vpop.xlane.xlu0 %1428
    %v1430 = vrot.slane %v1429, 4
    %v1431 = vadd.f32 %v1429, %v1430
    %v1432 = vrot.slane %v1431, 2
    %v1433 = vadd.f32 %v1431, %v1432
    %v1434 = vrot.slane %v1433, 1
    %v1435 = vadd.f32 %v1433, %v1434
    %s1436 = vtos %v1435
    %s1437 = sadd.f32 %s1405, %s1436
    %v1438 = vmul.f32 %v1230, %v1314
    %v1439 = vmul.f32 %v1231, %v1318
    %v1440 = vadd.f32 %v1438, %v1325
    %v1441 = vadd.f32 %v1439, %v1329
    %v1442 = vmul.f32 %v1440, %v1338
    %v1443 = vmul.f32 %v1441, %v1342
    %v1444 = vadd.f32 %v1442, %v1443
    %1445 = vadd.xlane.f32.xlu0 %v1444
    %v1446 = vpop.xlane.xlu0 %1445
    %v1447 = vsel %vm1350, %v1446, 0.0
    %1448 = vadd.xlane.f32.xlu0 %v1447
    %v1449 = vpop.xlane.xlu0 %1448
    %v1450 = vrot.slane %v1449, 4
    %v1451 = vadd.f32 %v1449, %v1450
    %v1452 = vrot.slane %v1451, 2
    %v1453 = vadd.f32 %v1451, %v1452
    %v1454 = vrot.slane %v1453, 1
    %v1455 = vadd.f32 %v1453, %v1454
    %s1456 = vtos %v1455
    %s1457 = sadd.f32 %s1425, %s1456
    %v1458 = vmul.f32 %v1446, %v1446
    %v1459 = vsel %vm1350, %v1458, 0.0
    %1460 = vadd.xlane.f32.xlu0 %v1459
    %v1461 = vpop.xlane.xlu0 %1460
    %v1462 = vrot.slane %v1461, 4
    %v1463 = vadd.f32 %v1461, %v1462
    %v1464 = vrot.slane %v1463, 2
    %v1465 = vadd.f32 %v1463, %v1464
    %v1466 = vrot.slane %v1465, 1
    %v1467 = vadd.f32 %v1465, %v1466
    %s1468 = vtos %v1467
    %s1469 = sadd.f32 %s1437, %s1468
    %v1470 = vsel %vm1350, %v1349, %v1382
    %vm1471 = vcmask 15360
    %v1472 = vsel %vm1471, %v1470, %v1414
    %vm1473 = vcmask 23552
    %v1474 = vsel %vm1473, %v1472, %v1446
    %v1475 = vrcp.pop 32.0
    %s1476 = vtos %v1475
    %s1477 = smul.f32 %s1457, %s1476
    %v1478 = vrcp.pop 32.0
    %s1479 = vtos %v1478
    %s1480 = smul.f32 %s1469, %s1479
    %s1481 = smul.f32 %s1477, %s1477
    %s1482 = ssub.f32 %s1480, %s1481
    %s1483 = smax.f32 %s1482, 0.0
    %v1484 = vstv %s1477
    %v1485 = vsub.f32 %v1474, %v1484
    %s1486 = sadd.f32 %s1483, 1e-05
    %v1487 = vstv %s1486
    %v1488 = vrsqrt.pop %v1487
    %s1489 = vtos %v1488
    %s1490 = smul.f32 %s1489, %s140
    %v1491 = vstv %s1490
    %v1492 = vmul.f32 %v1485, %v1491
    %v1493 = vstv %s141
    %v1494 = vadd.f32 %v1492, %v1493
    %vm1495 = vcmp.gt.f32.partialorder %v1494, 0.0
    %v1496 = vmul.f32 %v1494, 0.01
    %v1497 = vsel %vm1495, %v1494, %v1496
    %vm1498 = vcmask 31744
    %v1499 = vsel %vm1498, %v1497, -inf
    %1500 = vmax.xlane.f32.xlu0 %v1499
    %v1501 = vpop.xlane.xlu0 %1500
    %v1502 = vsub.f32 %v1497, %v1501
    %v1503 = vmul.f32 %v1502, 1.442695
    %v1504 = vpow.pop %v1503
    %v1505 = vsel %vm1498, %v1504, 0.0
    %1506 = vadd.xlane.f32.xlu0 %v1505
    %v1507 = vpop.xlane.xlu0 %1506
    %v1508 = vrcp.pop %v1507
    %v1509 = vmul.f32 %v1504, %v1508
    %1510 = vmatprep.subr.mxu0 0.0
    %1511 = vmatpush1.msra.mxu0 %v549
    %1512 = vmatprep.subr.mxu0 0.0
    %1513 = vmatpush1.msra.mxu0 0.0
    %1514 = vmatprep.subr.mxu0 0.0
    %1515 = vmatpush1.msra.mxu0 0.0
    %1516 = vmatprep.subr.mxu0 0.0
    %1517 = vmatpush1.msra.mxu0 0.0
    %1518 = vmatprep.subr.mxu0 0.0
    %1519 = vmatpush1.msra.mxu0 0.0
    %1520 = vmatprep.subr.mxu0 0.0
    %1521 = vmatpush1.msra.mxu0 0.0
    %1522 = vmatprep.subr.mxu0 0.0
    %1523 = vmatpush1.msra.mxu0 0.0
    %1524 = vmatprep.subr.mxu0 0.0
    %1525 = vmatpush1.msra.mxu0 0.0
    %1526 = vmatprep.subr.mxu0 0.0
    %1527 = vmatpush1.msra.mxu0 0.0
    %1528 = vmatprep.subr.mxu0 0.0
    %1529 = vmatpush1.msra.mxu0 0.0
    %1530 = vmatprep.subr.mxu0 0.0
    %1531 = vmatpush1.msra.mxu0 0.0
    %1532 = vmatprep.subr.mxu0 0.0
    %1533 = vmatpush1.msra.mxu0 0.0
    %1534 = vmatprep.subr.mxu0 0.0
    %1535 = vmatpush1.msra.mxu0 0.0
    %1536 = vmatprep.subr.mxu0 0.0
    %1537 = vmatpush1.msra.mxu0 0.0
    %1538 = vmatprep.subr.mxu0 0.0
    %1539 = vmatpush1.msra.mxu0 0.0
    %1540 = vmatprep.subr.mxu0 0.0
    %1541 = vmatpush1.msra.mxu0 0.0
    %1542 = vmatprep.subr.mxu0 0.0
    %1543 = vmatpush1.msra.mxu0 0.0
    %1544 = vmatprep.subr.mxu0 0.0
    %1545 = vmatpush1.msra.mxu0 0.0
    %1546 = vmatprep.subr.mxu0 0.0
    %1547 = vmatpush1.msra.mxu0 0.0
    %1548 = vmatprep.subr.mxu0 0.0
    %1549 = vmatpush1.msra.mxu0 0.0
    %1550 = vmatprep.subr.mxu0 0.0
    %1551 = vmatpush1.msra.mxu0 0.0
    %1552 = vmatprep.subr.mxu0 0.0
    %1553 = vmatpush1.msra.mxu0 0.0
    %1554 = vmatprep.subr.mxu0 0.0
    %1555 = vmatpush1.msra.mxu0 0.0
    %1556 = vmatprep.subr.mxu0 0.0
    %1557 = vmatpush1.msra.mxu0 0.0
    %1558 = vmatprep.subr.mxu0 0.0
    %1559 = vmatpush1.msra.mxu0 0.0
    %1560 = vmatprep.subr.mxu0 0.0
    %1561 = vmatpush1.msra.mxu0 0.0
    %1562 = vmatprep.subr.mxu0 0.0
    %1563 = vmatpush1.msra.mxu0 0.0
    %1564 = vmatprep.subr.mxu0 0.0
    %1565 = vmatpush1.msra.mxu0 0.0
    %1566 = vmatprep.subr.mxu0 0.0
    %1567 = vmatpush1.msra.mxu0 0.0
    %1568 = vmatprep.subr.mxu0 0.0
    %1569 = vmatpush1.msra.mxu0 0.0
    %1570 = vmatprep.subr.mxu0 0.0
    %1571 = vmatpush1.msra.mxu0 0.0
    %1572 = vmatprep.subr.mxu0 0.0
    %1573 = vmatpush1.msra.mxu0 0.0
    %1574 = vmatprep.mubr.f32.mxu0 0.0
    %1575 = vmatmul.mubr.f32.gmra.mrb[0].mxu0 %v566
    %v1576 = vpop.f32.mrb[0].mxu0
    %v1577 = vadd.f32 0.0, %v1576
    %v1578 = vpop.f32.mrb[0].mxu0
    %1579 = vdwg.mxu0
    %v1580 = vadd.f32 %v412, %v1577
    %1581 = vmatprep.subr.bf16.mxu0 0
    %1582 = vmatpush1.bf16.msra.mxu0 %v689
    %1583 = vmatprep.subr.bf16.mxu0 0
    %1584 = vmatpush1.bf16.msra.mxu0 %v691
    %1585 = vmatprep.subr.bf16.mxu0 0
    %1586 = vmatpush1.bf16.msra.mxu0 %v693
    %1587 = vmatprep.subr.bf16.mxu0 0
    %1588 = vmatpush1.bf16.msra.mxu0 %v695
    %1589 = vmatprep.subr.bf16.mxu0 0
    %1590 = vmatpush1.bf16.msra.mxu0 %v697
    %1591 = vmatprep.subr.bf16.mxu0 0
    %1592 = vmatpush1.bf16.msra.mxu0 %v699
    %1593 = vmatprep.subr.bf16.mxu0 0
    %1594 = vmatpush1.bf16.msra.mxu0 %v701
    %1595 = vmatprep.subr.bf16.mxu0 0
    %1596 = vmatpush1.bf16.msra.mxu0 %v703
    %1597 = vmatprep.subr.bf16.mxu0 0
    %1598 = vmatpush1.bf16.msra.mxu0 0
    %1599 = vmatprep.subr.bf16.mxu0 0
    %1600 = vmatpush1.bf16.msra.mxu0 0
    %1601 = vmatprep.subr.bf16.mxu0 0
    %1602 = vmatpush1.bf16.msra.mxu0 0
    %1603 = vmatprep.subr.bf16.mxu0 0
    %1604 = vmatpush1.bf16.msra.mxu0 0
    %1605 = vmatprep.subr.bf16.mxu0 0
    %1606 = vmatpush1.bf16.msra.mxu0 0
    %1607 = vmatprep.subr.bf16.mxu0 0
    %1608 = vmatpush1.bf16.msra.mxu0 0
    %1609 = vmatprep.subr.bf16.mxu0 0
    %1610 = vmatpush1.bf16.msra.mxu0 0
    %1611 = vmatprep.subr.bf16.mxu0 0
    %1612 = vmatpush1.bf16.msra.mxu0 0
    %1613 = vmatprep.mubr.bf16.mxu0 0
    %1614 = vmatmul.mubr.bf16.gmra.mrb[0].mxu0 %v555
    %v1615 = vpop.f32.mrb[0].mxu0
    %v1616 = vadd.f32 0.0, %v1615
    %v1617 = vpop.f32.mrb[0].mxu0
    %v1618 = vpop.f32.mrb[0].mxu0
    %v1619 = vpop.f32.mrb[0].mxu0
    %1620 = vdwg.mxu0
    %v1621 = vadd.f32 %v1580, %v1616
    %v1622 = vmul.f32 %v1621, %v1314
    %v1623 = vadd.f32 %v1622, %v1325
    %1625 = vset.pattern.permute.xlu0 0
    %1626 = vperm.xlu0 %1625, %v1509
    %v1627 = vpop.permute.xlu0 %1626
    %v1629 = vmul.f32 %v1627, %v1623
    %v1630 = vadd.f32 %v1629, 0.0
    %1631 = vmatprep.subr.mxu0 0.0
    %1632 = vmatpush1.msra.mxu0 %v549
    %1633 = vmatprep.subr.mxu0 0.0
    %1634 = vmatpush1.msra.mxu0 0.0
    %1635 = vmatprep.subr.mxu0 0.0
    %1636 = vmatpush1.msra.mxu0 0.0
    %1637 = vmatprep.subr.mxu0 0.0
    %1638 = vmatpush1.msra.mxu0 0.0
    %1639 = vmatprep.subr.mxu0 0.0
    %1640 = vmatpush1.msra.mxu0 0.0
    %1641 = vmatprep.subr.mxu0 0.0
    %1642 = vmatpush1.msra.mxu0 0.0
    %1643 = vmatprep.subr.mxu0 0.0
    %1644 = vmatpush1.msra.mxu0 0.0
    %1645 = vmatprep.subr.mxu0 0.0
    %1646 = vmatpush1.msra.mxu0 0.0
    %1647 = vmatprep.subr.mxu0 0.0
    %1648 = vmatpush1.msra.mxu0 0.0
    %1649 = vmatprep.subr.mxu0 0.0
    %1650 = vmatpush1.msra.mxu0 0.0
    %1651 = vmatprep.subr.mxu0 0.0
    %1652 = vmatpush1.msra.mxu0 0.0
    %1653 = vmatprep.subr.mxu0 0.0
    %1654 = vmatpush1.msra.mxu0 0.0
    %1655 = vmatprep.subr.mxu0 0.0
    %1656 = vmatpush1.msra.mxu0 0.0
    %1657 = vmatprep.subr.mxu0 0.0
    %1658 = vmatpush1.msra.mxu0 0.0
    %1659 = vmatprep.subr.mxu0 0.0
    %1660 = vmatpush1.msra.mxu0 0.0
    %1661 = vmatprep.subr.mxu0 0.0
    %1662 = vmatpush1.msra.mxu0 0.0
    %1663 = vmatprep.subr.mxu0 0.0
    %1664 = vmatpush1.msra.mxu0 0.0
    %1665 = vmatprep.subr.mxu0 0.0
    %1666 = vmatpush1.msra.mxu0 0.0
    %1667 = vmatprep.subr.mxu0 0.0
    %1668 = vmatpush1.msra.mxu0 0.0
    %1669 = vmatprep.subr.mxu0 0.0
    %1670 = vmatpush1.msra.mxu0 0.0
    %1671 = vmatprep.subr.mxu0 0.0
    %1672 = vmatpush1.msra.mxu0 0.0
    %1673 = vmatprep.subr.mxu0 0.0
    %1674 = vmatpush1.msra.mxu0 0.0
    %1675 = vmatprep.subr.mxu0 0.0
    %1676 = vmatpush1.msra.mxu0 0.0
    %1677 = vmatprep.subr.mxu0 0.0
    %1678 = vmatpush1.msra.mxu0 0.0
    %1679 = vmatprep.subr.mxu0 0.0
    %1680 = vmatpush1.msra.mxu0 0.0
    %1681 = vmatprep.subr.mxu0 0.0
    %1682 = vmatpush1.msra.mxu0 0.0
    %1683 = vmatprep.subr.mxu0 0.0
    %1684 = vmatpush1.msra.mxu0 0.0
    %1685 = vmatprep.subr.mxu0 0.0
    %1686 = vmatpush1.msra.mxu0 0.0
    %1687 = vmatprep.subr.mxu0 0.0
    %1688 = vmatpush1.msra.mxu0 0.0
    %1689 = vmatprep.subr.mxu0 0.0
    %1690 = vmatpush1.msra.mxu0 0.0
    %1691 = vmatprep.subr.mxu0 0.0
    %1692 = vmatpush1.msra.mxu0 0.0
    %1693 = vmatprep.subr.mxu0 0.0
    %1694 = vmatpush1.msra.mxu0 0.0
    %1695 = vmatprep.mubr.f32.mxu0 0.0
    %1696 = vmatmul.mubr.f32.gmra.mrb[0].mxu0 %v802
    %v1697 = vpop.f32.mrb[0].mxu0
    %v1698 = vadd.f32 0.0, %v1697
    %v1699 = vpop.f32.mrb[0].mxu0
    %1700 = vdwg.mxu0
    %v1701 = vadd.f32 %v412, %v1698
    %1702 = vmatprep.subr.bf16.mxu0 0
    %1703 = vmatpush1.bf16.msra.mxu0 %v689
    %1704 = vmatprep.subr.bf16.mxu0 0
    %1705 = vmatpush1.bf16.msra.mxu0 %v691
    %1706 = vmatprep.subr.bf16.mxu0 0
    %1707 = vmatpush1.bf16.msra.mxu0 %v693
    %1708 = vmatprep.subr.bf16.mxu0 0
    %1709 = vmatpush1.bf16.msra.mxu0 %v695
    %1710 = vmatprep.subr.bf16.mxu0 0
    %1711 = vmatpush1.bf16.msra.mxu0 %v697
    %1712 = vmatprep.subr.bf16.mxu0 0
    %1713 = vmatpush1.bf16.msra.mxu0 %v699
    %1714 = vmatprep.subr.bf16.mxu0 0
    %1715 = vmatpush1.bf16.msra.mxu0 %v701
    %1716 = vmatprep.subr.bf16.mxu0 0
    %1717 = vmatpush1.bf16.msra.mxu0 %v703
    %1718 = vmatprep.subr.bf16.mxu0 0
    %1719 = vmatpush1.bf16.msra.mxu0 0
    %1720 = vmatprep.subr.bf16.mxu0 0
    %1721 = vmatpush1.bf16.msra.mxu0 0
    %1722 = vmatprep.subr.bf16.mxu0 0
    %1723 = vmatpush1.bf16.msra.mxu0 0
    %1724 = vmatprep.subr.bf16.mxu0 0
    %1725 = vmatpush1.bf16.msra.mxu0 0
    %1726 = vmatprep.subr.bf16.mxu0 0
    %1727 = vmatpush1.bf16.msra.mxu0 0
    %1728 = vmatprep.subr.bf16.mxu0 0
    %1729 = vmatpush1.bf16.msra.mxu0 0
    %1730 = vmatprep.subr.bf16.mxu0 0
    %1731 = vmatpush1.bf16.msra.mxu0 0
    %1732 = vmatprep.subr.bf16.mxu0 0
    %1733 = vmatpush1.bf16.msra.mxu0 0
    %1734 = vmatprep.mubr.bf16.mxu0 0
    %1735 = vmatmul.mubr.bf16.gmra.mrb[0].mxu0 %v794
    %v1736 = vpop.f32.mrb[0].mxu0
    %v1737 = vadd.f32 0.0, %v1736
    %v1738 = vpop.f32.mrb[0].mxu0
    %v1739 = vpop.f32.mrb[0].mxu0
    %v1740 = vpop.f32.mrb[0].mxu0
    %1741 = vdwg.mxu0
    %v1742 = vadd.f32 %v1701, %v1737
    %v1743 = vmul.f32 %v1742, %v1314
    %v1744 = vadd.f32 %v1743, %v1325
    %1745 = vset.pattern.permute.xlu0 1
    %1746 = vperm.xlu0 %1745, %v1509
    %v1747 = vpop.permute.xlu0 %1746
    %v1749 = vmul.f32 %v1747, %v1744
    %v1750 = vadd.f32 %v1630, %v1749
    %1751 = vmatprep.subr.mxu0 0.0
    %1752 = vmatpush1.msra.mxu0 %v549
    %1753 = vmatprep.subr.mxu0 0.0
    %1754 = vmatpush1.msra.mxu0 0.0
    %1755 = vmatprep.subr.mxu0 0.0
    %1756 = vmatpush1.msra.mxu0 0.0
    %1757 = vmatprep.subr.mxu0 0.0
    %1758 = vmatpush1.msra.mxu0 0.0
    %1759 = vmatprep.subr.mxu0 0.0
    %1760 = vmatpush1.msra.mxu0 0.0
    %1761 = vmatprep.subr.mxu0 0.0
    %1762 = vmatpush1.msra.mxu0 0.0
    %1763 = vmatprep.subr.mxu0 0.0
    %1764 = vmatpush1.msra.mxu0 0.0
    %1765 = vmatprep.subr.mxu0 0.0
    %1766 = vmatpush1.msra.mxu0 0.0
    %1767 = vmatprep.subr.mxu0 0.0
    %1768 = vmatpush1.msra.mxu0 0.0
    %1769 = vmatprep.subr.mxu0 0.0
    %1770 = vmatpush1.msra.mxu0 0.0
    %1771 = vmatprep.subr.mxu0 0.0
    %1772 = vmatpush1.msra.mxu0 0.0
    %1773 = vmatprep.subr.mxu0 0.0
    %1774 = vmatpush1.msra.mxu0 0.0
    %1775 = vmatprep.subr.mxu0 0.0
    %1776 = vmatpush1.msra.mxu0 0.0
    %1777 = vmatprep.subr.mxu0 0.0
    %1778 = vmatpush1.msra.mxu0 0.0
    %1779 = vmatprep.subr.mxu0 0.0
    %1780 = vmatpush1.msra.mxu0 0.0
    %1781 = vmatprep.subr.mxu0 0.0
    %1782 = vmatpush1.msra.mxu0 0.0
    %1783 = vmatprep.subr.mxu0 0.0
    %1784 = vmatpush1.msra.mxu0 0.0
    %1785 = vmatprep.subr.mxu0 0.0
    %1786 = vmatpush1.msra.mxu0 0.0
    %1787 = vmatprep.subr.mxu0 0.0
    %1788 = vmatpush1.msra.mxu0 0.0
    %1789 = vmatprep.subr.mxu0 0.0
    %1790 = vmatpush1.msra.mxu0 0.0
    %1791 = vmatprep.subr.mxu0 0.0
    %1792 = vmatpush1.msra.mxu0 0.0
    %1793 = vmatprep.subr.mxu0 0.0
    %1794 = vmatpush1.msra.mxu0 0.0
    %1795 = vmatprep.subr.mxu0 0.0
    %1796 = vmatpush1.msra.mxu0 0.0
    %1797 = vmatprep.subr.mxu0 0.0
    %1798 = vmatpush1.msra.mxu0 0.0
    %1799 = vmatprep.subr.mxu0 0.0
    %1800 = vmatpush1.msra.mxu0 0.0
    %1801 = vmatprep.subr.mxu0 0.0
    %1802 = vmatpush1.msra.mxu0 0.0
    %1803 = vmatprep.subr.mxu0 0.0
    %1804 = vmatpush1.msra.mxu0 0.0
    %1805 = vmatprep.subr.mxu0 0.0
    %1806 = vmatpush1.msra.mxu0 0.0
    %1807 = vmatprep.subr.mxu0 0.0
    %1808 = vmatpush1.msra.mxu0 0.0
    %1809 = vmatprep.subr.mxu0 0.0
    %1810 = vmatpush1.msra.mxu0 0.0
    %1811 = vmatprep.subr.mxu0 0.0
    %1812 = vmatpush1.msra.mxu0 0.0
    %1813 = vmatprep.subr.mxu0 0.0
    %1814 = vmatpush1.msra.mxu0 0.0
    %1815 = vmatprep.mubr.f32.mxu0 0.0
    %1816 = vmatmul.mubr.f32.gmra.mrb[0].mxu0 %v958
    %v1817 = vpop.f32.mrb[0].mxu0
    %v1818 = vadd.f32 0.0, %v1817
    %v1819 = vpop.f32.mrb[0].mxu0
    %1820 = vdwg.mxu0
    %v1821 = vadd.f32 %v412, %v1818
    %1822 = vmatprep.subr.bf16.mxu0 0
    %1823 = vmatpush1.bf16.msra.mxu0 %v689
    %1824 = vmatprep.subr.bf16.mxu0 0
    %1825 = vmatpush1.bf16.msra.mxu0 %v691
    %1826 = vmatprep.subr.bf16.mxu0 0
    %1827 = vmatpush1.bf16.msra.mxu0 %v693
    %1828 = vmatprep.subr.bf16.mxu0 0
    %1829 = vmatpush1.bf16.msra.mxu0 %v695
    %1830 = vmatprep.subr.bf16.mxu0 0
    %1831 = vmatpush1.bf16.msra.mxu0 %v697
    %1832 = vmatprep.subr.bf16.mxu0 0
    %1833 = vmatpush1.bf16.msra.mxu0 %v699
    %1834 = vmatprep.subr.bf16.mxu0 0
    %1835 = vmatpush1.bf16.msra.mxu0 %v701
    %1836 = vmatprep.subr.bf16.mxu0 0
    %1837 = vmatpush1.bf16.msra.mxu0 %v703
    %1838 = vmatprep.subr.bf16.mxu0 0
    %1839 = vmatpush1.bf16.msra.mxu0 0
    %1840 = vmatprep.subr.bf16.mxu0 0
    %1841 = vmatpush1.bf16.msra.mxu0 0
    %1842 = vmatprep.subr.bf16.mxu0 0
    %1843 = vmatpush1.bf16.msra.mxu0 0
    %1844 = vmatprep.subr.bf16.mxu0 0
    %1845 = vmatpush1.bf16.msra.mxu0 0
    %1846 = vmatprep.subr.bf16.mxu0 0
    %1847 = vmatpush1.bf16.msra.mxu0 0
    %1848 = vmatprep.subr.bf16.mxu0 0
    %1849 = vmatpush1.bf16.msra.mxu0 0
    %1850 = vmatprep.subr.bf16.mxu0 0
    %1851 = vmatpush1.bf16.msra.mxu0 0
    %1852 = vmatprep.subr.bf16.mxu0 0
    %1853 = vmatpush1.bf16.msra.mxu0 0
    %1854 = vmatprep.mubr.bf16.mxu0 0
    %1855 = vmatmul.mubr.bf16.gmra.mrb[0].mxu0 %v950
    %v1856 = vpop.f32.mrb[0].mxu0
    %v1857 = vadd.f32 0.0, %v1856
    %v1858 = vpop.f32.mrb[0].mxu0
    %v1859 = vpop.f32.mrb[0].mxu0
    %v1860 = vpop.f32.mrb[0].mxu0
    %1861 = vdwg.mxu0
    %v1862 = vadd.f32 %v1821, %v1857
    %v1863 = vmul.f32 %v1862, %v1314
    %v1864 = vadd.f32 %v1863, %v1325
    %1865 = vset.pattern.permute.xlu0 2
    %1866 = vperm.xlu0 %1865, %v1509
    %v1867 = vpop.permute.xlu0 %1866
    %v1869 = vmul.f32 %v1867, %v1864
    %v1870 = vadd.f32 %v1750, %v1869
    %1871 = vmatprep.subr.mxu0 0.0
    %1872 = vmatpush1.msra.mxu0 %v549
    %1873 = vmatprep.subr.mxu0 0.0
    %1874 = vmatpush1.msra.mxu0 0.0
    %1875 = vmatprep.subr.mxu0 0.0
    %1876 = vmatpush1.msra.mxu0 0.0
    %1877 = vmatprep.subr.mxu0 0.0
    %1878 = vmatpush1.msra.mxu0 0.0
    %1879 = vmatprep.subr.mxu0 0.0
    %1880 = vmatpush1.msra.mxu0 0.0
    %1881 = vmatprep.subr.mxu0 0.0
    %1882 = vmatpush1.msra.mxu0 0.0
    %1883 = vmatprep.subr.mxu0 0.0
    %1884 = vmatpush1.msra.mxu0 0.0
    %1885 = vmatprep.subr.mxu0 0.0
    %1886 = vmatpush1.msra.mxu0 0.0
    %1887 = vmatprep.subr.mxu0 0.0
    %1888 = vmatpush1.msra.mxu0 0.0
    %1889 = vmatprep.subr.mxu0 0.0
    %1890 = vmatpush1.msra.mxu0 0.0
    %1891 = vmatprep.subr.mxu0 0.0
    %1892 = vmatpush1.msra.mxu0 0.0
    %1893 = vmatprep.subr.mxu0 0.0
    %1894 = vmatpush1.msra.mxu0 0.0
    %1895 = vmatprep.subr.mxu0 0.0
    %1896 = vmatpush1.msra.mxu0 0.0
    %1897 = vmatprep.subr.mxu0 0.0
    %1898 = vmatpush1.msra.mxu0 0.0
    %1899 = vmatprep.subr.mxu0 0.0
    %1900 = vmatpush1.msra.mxu0 0.0
    %1901 = vmatprep.subr.mxu0 0.0
    %1902 = vmatpush1.msra.mxu0 0.0
    %1903 = vmatprep.subr.mxu0 0.0
    %1904 = vmatpush1.msra.mxu0 0.0
    %1905 = vmatprep.subr.mxu0 0.0
    %1906 = vmatpush1.msra.mxu0 0.0
    %1907 = vmatprep.subr.mxu0 0.0
    %1908 = vmatpush1.msra.mxu0 0.0
    %1909 = vmatprep.subr.mxu0 0.0
    %1910 = vmatpush1.msra.mxu0 0.0
    %1911 = vmatprep.subr.mxu0 0.0
    %1912 = vmatpush1.msra.mxu0 0.0
    %1913 = vmatprep.subr.mxu0 0.0
    %1914 = vmatpush1.msra.mxu0 0.0
    %1915 = vmatprep.subr.mxu0 0.0
    %1916 = vmatpush1.msra.mxu0 0.0
    %1917 = vmatprep.subr.mxu0 0.0
    %1918 = vmatpush1.msra.mxu0 0.0
    %1919 = vmatprep.subr.mxu0 0.0
    %1920 = vmatpush1.msra.mxu0 0.0
    %1921 = vmatprep.subr.mxu0 0.0
    %1922 = vmatpush1.msra.mxu0 0.0
    %1923 = vmatprep.subr.mxu0 0.0
    %1924 = vmatpush1.msra.mxu0 0.0
    %1925 = vmatprep.subr.mxu0 0.0
    %1926 = vmatpush1.msra.mxu0 0.0
    %1927 = vmatprep.subr.mxu0 0.0
    %1928 = vmatpush1.msra.mxu0 0.0
    %1929 = vmatprep.subr.mxu0 0.0
    %1930 = vmatpush1.msra.mxu0 0.0
    %1931 = vmatprep.subr.mxu0 0.0
    %1932 = vmatpush1.msra.mxu0 0.0
    %1933 = vmatprep.subr.mxu0 0.0
    %1934 = vmatpush1.msra.mxu0 0.0
    %1935 = vmatprep.mubr.f32.mxu0 0.0
    %1936 = vmatmul.mubr.f32.gmra.mrb[0].mxu0 %v1114
    %v1937 = vpop.f32.mrb[0].mxu0
    %v1938 = vadd.f32 0.0, %v1937
    %v1939 = vpop.f32.mrb[0].mxu0
    %1940 = vdwg.mxu0
    %v1941 = vadd.f32 %v412, %v1938
    %1942 = vmatprep.subr.bf16.mxu0 0
    %1943 = vmatpush1.bf16.msra.mxu0 %v689
    %1944 = vmatprep.subr.bf16.mxu0 0
    %1945 = vmatpush1.bf16.msra.mxu0 %v691
    %1946 = vmatprep.subr.bf16.mxu0 0
    %1947 = vmatpush1.bf16.msra.mxu0 %v693
    %1948 = vmatprep.subr.bf16.mxu0 0
    %1949 = vmatpush1.bf16.msra.mxu0 %v695
    %1950 = vmatprep.subr.bf16.mxu0 0
    %1951 = vmatpush1.bf16.msra.mxu0 %v697
    %1952 = vmatprep.subr.bf16.mxu0 0
    %1953 = vmatpush1.bf16.msra.mxu0 %v699
    %1954 = vmatprep.subr.bf16.mxu0 0
    %1955 = vmatpush1.bf16.msra.mxu0 %v701
    %1956 = vmatprep.subr.bf16.mxu0 0
    %1957 = vmatpush1.bf16.msra.mxu0 %v703
    %1958 = vmatprep.subr.bf16.mxu0 0
    %1959 = vmatpush1.bf16.msra.mxu0 0
    %1960 = vmatprep.subr.bf16.mxu0 0
    %1961 = vmatpush1.bf16.msra.mxu0 0
    %1962 = vmatprep.subr.bf16.mxu0 0
    %1963 = vmatpush1.bf16.msra.mxu0 0
    %1964 = vmatprep.subr.bf16.mxu0 0
    %1965 = vmatpush1.bf16.msra.mxu0 0
    %1966 = vmatprep.subr.bf16.mxu0 0
    %1967 = vmatpush1.bf16.msra.mxu0 0
    %1968 = vmatprep.subr.bf16.mxu0 0
    %1969 = vmatpush1.bf16.msra.mxu0 0
    %1970 = vmatprep.subr.bf16.mxu0 0
    %1971 = vmatpush1.bf16.msra.mxu0 0
    %1972 = vmatprep.subr.bf16.mxu0 0
    %1973 = vmatpush1.bf16.msra.mxu0 0
    %1974 = vmatprep.mubr.bf16.mxu0 0
    %1975 = vmatmul.mubr.bf16.gmra.mrb[0].mxu0 %v1106
    %v1976 = vpop.f32.mrb[0].mxu0
    %v1977 = vadd.f32 0.0, %v1976
    %v1978 = vpop.f32.mrb[0].mxu0
    %v1979 = vpop.f32.mrb[0].mxu0
    %v1980 = vpop.f32.mrb[0].mxu0
    %1981 = vdwg.mxu0
    %v1982 = vadd.f32 %v1941, %v1977
    %v1983 = vmul.f32 %v1982, %v1314
    %v1984 = vadd.f32 %v1983, %v1325
    %1985 = vset.pattern.permute.xlu0 3
    %1986 = vperm.xlu0 %1985, %v1509
    %v1987 = vpop.permute.xlu0 %1986
    %v1989 = vmul.f32 %v1987, %v1984
    %v1990 = vadd.f32 %v1870, %v1989
    %v1991 = vrot.slane %v1990, 4
    %v1992 = vadd.f32 %v1990, %v1991
    %v1993 = vrot.slane %v1992, 2
    %v1994 = vadd.f32 %v1992, %v1993
    %v1995 = vrot.slane %v1994, 1
    %v1996 = vadd.f32 %v1994, %v1995
    %v1997 = vrcp.pop 8.0
    %v1998 = vmul.f32 %v1996, %v1997
    %v1999 = vmul.f32 %v1990, %v1990
    %v2000 = vrot.slane %v1999, 4
    %v2001 = vadd.f32 %v1999, %v2000
    %v2002 = vrot.slane %v2001, 2
    %v2003 = vadd.f32 %v2001, %v2002
    %v2004 = vrot.slane %v2003, 1
    %v2005 = vadd.f32 %v2003, %v2004
    %v2006 = vmul.f32 %v2005, %v1997
    %v2007 = vmul.f32 %v1998, %v1998
    %v2008 = vsub.f32 %v2006, %v2007
    %v2009 = vmax.f32 %v2008, 0.0
    %v2010 = vsub.f32 %v1990, %v1998
    %v2011 = vadd.f32 %v2009, 1e-05
    %v2012 = vrsqrt.pop %v2011
    %v2013 = vmul.f32 %v2010, %v2012
    %v2014 = vlaneseq
    %v2015 = vshrl.u32 %v2014, 7
    %v2016 = vsub.s32 0, %v2015
    %v2017 = vrot.slane %v137, %v2016
    %v2018 = vmul.f32 %v2013, %v2017
    %v2019 = vlaneseq
    %v2020 = vshrl.u32 %v2019, 7
    %v2021 = vsub.s32 0, %v2020
    %v2022 = vrot.slane %v138, %v2021
    %v2023 = vadd.f32 %v2018, %v2022
    %v2024 = vsub.f32 0.0, %v2023
    %v2025 = vmul.f32 %v2024, 1.442695
    %v2026 = vpow.pop %v2025
    %v2027 = vadd.f32 %v2026, 1.0
    %v2028 = vrcp.pop %v2027
    %v2029 = vmul.f32 1.0, %v2028
    %v2030 = vld [vmem:[%s3] sm:$0x1]
    %v2031 = vpack.c.bf16 %v2029, %v2029
    %v2033 = vsel %vm564, %v2030, 0
    %vm2035 = vcmask 1043456
    %v2037 = vsel %vm2035, %v2031, 0
    %2039 = vmatprep.subr.bf16.mxu0 0
    %2040 = vmatpush1.bf16.msra.mxu0 %v2037
    %2041 = vmatprep.subr.bf16.mxu0 0
    %2042 = vmatpush1.bf16.msra.mxu0 0
    %2043 = vmatprep.subr.bf16.mxu0 0
    %2044 = vmatpush1.bf16.msra.mxu0 0
    %2045 = vmatprep.subr.bf16.mxu0 0
    %2046 = vmatpush1.bf16.msra.mxu0 0
    %2047 = vmatprep.subr.bf16.mxu0 0
    %2048 = vmatpush1.bf16.msra.mxu0 0
    %2049 = vmatprep.subr.bf16.mxu0 0
    %2050 = vmatpush1.bf16.msra.mxu0 0
    %2051 = vmatprep.subr.bf16.mxu0 0
    %2052 = vmatpush1.bf16.msra.mxu0 0
    %2053 = vmatprep.subr.bf16.mxu0 0
    %2054 = vmatpush1.bf16.msra.mxu0 0
    %2055 = vmatprep.subr.bf16.mxu0 0
    %2056 = vmatpush1.bf16.msra.mxu0 0
    %2057 = vmatprep.subr.bf16.mxu0 0
    %2058 = vmatpush1.bf16.msra.mxu0 0
    %2059 = vmatprep.subr.bf16.mxu0 0
    %2060 = vmatpush1.bf16.msra.mxu0 0
    %2061 = vmatprep.subr.bf16.mxu0 0
    %2062 = vmatpush1.bf16.msra.mxu0 0
    %2063 = vmatprep.subr.bf16.mxu0 0
    %2064 = vmatpush1.bf16.msra.mxu0 0
    %2065 = vmatprep.subr.bf16.mxu0 0
    %2066 = vmatpush1.bf16.msra.mxu0 0
    %2067 = vmatprep.subr.bf16.mxu0 0
    %2068 = vmatpush1.bf16.msra.mxu0 0
    %2069 = vmatprep.subr.bf16.mxu0 0
    %2070 = vmatpush1.bf16.msra.mxu0 0
    %2071 = vmatprep.mubr.bf16.mxu0 0
    %2072 = vmatmul.mubr.bf16.gmra.mrb[0].mxu0 %v2033
    %v2073 = vpop.f32.mrb[0].mxu0
    %v2074 = vadd.f32 0.0, %v2073
    %v2075 = vpop.f32.mrb[0].mxu0
    %v2076 = vpop.f32.mrb[0].mxu0
    %v2077 = vpop.f32.mrb[0].mxu0
    %2078 = vdwg.mxu0
    %v2079 = vmax.f32 %v2074, 0.0
    %v2080 = vand.u32 2147483647, %v2074
    %v2081 = vsub.f32 0.0, %v2080
    %v2082 = vmul.f32 %v2081, 1.442695
    %v2083 = vpow.pop %v2082
    %v2084 = vadd.f32 %v2083, 1.0
    %v2085 = vlog2.pop %v2084
    %v2086 = vmul.f32 %v2085, 0.6931472
    %v2087 = vadd.f32 %v2079, %v2086
    %v2088 = vpack.c.bf16 %v2087, %v2087
    %v2089 = vld [vmem:[#allocation8] sm:$0xf]
    %v2090 = vld [vmem:[#allocation8 + $0x4] sm:$0xf]
    %v2091 = vld [vmem:[#allocation8 + $0x8] sm:$0xf]
    %v2092 = vld [vmem:[#allocation8 + $0xc] sm:$0xf]
    %v2093 = vld [vmem:[#allocation8 + $0x10] sm:$0xf]
    %v2094 = vld [vmem:[#allocation8 + $0x14] sm:$0xf]
    %v2095 = vld [vmem:[#allocation8 + $0x18] sm:$0xf]
    %v2096 = vld [vmem:[#allocation8 + $0x1c] sm:$0xf]
    %v2097 = vld [vmem:[#allocation8 + $0x20] sm:$0xf]
    %v2098 = vld [vmem:[#allocation8 + $0x24] sm:$0xf]
    %v2099 = vld [vmem:[#allocation8 + $0x28] sm:$0xf]
    %v2100 = vld [vmem:[#allocation8 + $0x2c] sm:$0xf]
    %v2101 = vld [vmem:[#allocation8 + $0x30] sm:$0xf]
    %v2102 = vld [vmem:[#allocation8 + $0x34] sm:$0xf]
    %v2103 = vld [vmem:[#allocation8 + $0x38] sm:$0xf]
    %v2104 = vld [vmem:[#allocation8 + $0x3c] sm:$0xf]
    %v2106 = vlaneseq
    %v2107 = vshrl.u32 %v2106, 7
    %v2108 = vsub.s32 0, %v2107
    %v2109 = vrot.slane %v139, %v2108
    %v2127 = vunpack.c.l.b16 %v2089
    %v2128 = vunpack.c.l.b16 %v2090
    %v2129 = vunpack.c.l.b16 %v2091
    %v2130 = vunpack.c.l.b16 %v2092
    %v2131 = vunpack.c.l.b16 %v2093
    %v2132 = vunpack.c.l.b16 %v2094
    %v2133 = vunpack.c.l.b16 %v2095
    %v2134 = vunpack.c.l.b16 %v2096
    %v2135 = vunpack.c.l.b16 %v2097
    %v2136 = vunpack.c.l.b16 %v2098
    %v2137 = vunpack.c.l.b16 %v2099
    %v2138 = vunpack.c.l.b16 %v2100
    %v2139 = vunpack.c.l.b16 %v2101
    %v2140 = vunpack.c.l.b16 %v2102
    %v2141 = vunpack.c.l.b16 %v2103
    %v2142 = vunpack.c.l.b16 %v2104
    %v2143 = vpack.c.b16 %v2128, %v2127
    %v2144 = vpack.c.b16 %v2130, %v2129
    %v2145 = vpack.c.b16 %v2132, %v2131
    %v2146 = vpack.c.b16 %v2134, %v2133
    %v2147 = vpack.c.b16 %v2136, %v2135
    %v2148 = vpack.c.b16 %v2138, %v2137
    %v2149 = vpack.c.b16 %v2140, %v2139
    %v2150 = vpack.c.b16 %v2142, %v2141
    %2159 = vmatprep.subr.bf16.mxu0 0
    %2160 = vmatpush1.bf16.msra.mxu0 %v2143
    %2161 = vmatprep.subr.bf16.mxu0 0
    %2162 = vmatpush1.bf16.msra.mxu0 %v2144
    %2163 = vmatprep.subr.bf16.mxu0 0
    %2164 = vmatpush1.bf16.msra.mxu0 %v2145
    %2165 = vmatprep.subr.bf16.mxu0 0
    %2166 = vmatpush1.bf16.msra.mxu0 %v2146
    %2167 = vmatprep.subr.bf16.mxu0 0
    %2168 = vmatpush1.bf16.msra.mxu0 %v2147
    %2169 = vmatprep.subr.bf16.mxu0 0
    %2170 = vmatpush1.bf16.msra.mxu0 %v2148
    %2171 = vmatprep.subr.bf16.mxu0 0
    %2172 = vmatpush1.bf16.msra.mxu0 %v2149
    %2173 = vmatprep.subr.bf16.mxu0 0
    %2174 = vmatpush1.bf16.msra.mxu0 %v2150
    %2175 = vmatprep.subr.bf16.mxu0 0
    %2176 = vmatpush1.bf16.msra.mxu0 0
    %2177 = vmatprep.subr.bf16.mxu0 0
    %2178 = vmatpush1.bf16.msra.mxu0 0
    %2179 = vmatprep.subr.bf16.mxu0 0
    %2180 = vmatpush1.bf16.msra.mxu0 0
    %2181 = vmatprep.subr.bf16.mxu0 0
    %2182 = vmatpush1.bf16.msra.mxu0 0
    %2183 = vmatprep.subr.bf16.mxu0 0
    %2184 = vmatpush1.bf16.msra.mxu0 0
    %2185 = vmatprep.subr.bf16.mxu0 0
    %2186 = vmatpush1.bf16.msra.mxu0 0
    %2187 = vmatprep.subr.bf16.mxu0 0
    %2188 = vmatpush1.bf16.msra.mxu0 0
    %2189 = vmatprep.subr.bf16.mxu0 0
    %2190 = vmatpush1.bf16.msra.mxu0 0
    %2191 = vmatprep.mubr.bf16.mxu0 0
    %2192 = vmatmul.mubr.bf16.gmra.mrb[0].mxu0 %v2088
    %v2193 = vpop.f32.mrb[0].mxu0
    %v2194 = vadd.f32 %v2109, %v2193
    %v2195 = vpop.f32.mrb[0].mxu0
    %v2196 = vpop.f32.mrb[0].mxu0
    %v2197 = vpop.f32.mrb[0].mxu0
    %2198 = vdwg.mxu0
    %v2199 = vmax.f32 %v2194, 0.0
    %v2200 = vand.u32 2147483647, %v2194
    %v2201 = vsub.f32 0.0, %v2200
    %v2202 = vmul.f32 %v2201, 1.442695
    %v2203 = vpow.pop %v2202
    %v2204 = vadd.f32 %v2203, 1.0
    %v2205 = vlog2.pop %v2204
    %v2206 = vmul.f32 %v2205, 0.6931472
    %v2207 = vadd.f32 %v2199, %v2206
    %v2208 = vpack.c.bf16 %v2207, %v2207
    %v2209 = vld [vmem:[#allocation10] sm:$0xf]
    %v2210 = vld [vmem:[#allocation10 + $0x4] sm:$0xf]
    %v2211 = vld [vmem:[#allocation10 + $0x8] sm:$0xf]
    %v2212 = vld [vmem:[#allocation10 + $0xc] sm:$0xf]
    %v2213 = vld [vmem:[#allocation10 + $0x10] sm:$0xf]
    %v2214 = vld [vmem:[#allocation10 + $0x14] sm:$0xf]
    %v2215 = vld [vmem:[#allocation10 + $0x18] sm:$0xf]
    %v2216 = vld [vmem:[#allocation10 + $0x1c] sm:$0xf]
    %v2217 = vld [vmem:[#allocation10 + $0x20] sm:$0xf]
    %v2218 = vld [vmem:[#allocation10 + $0x24] sm:$0xf]
    %v2219 = vld [vmem:[#allocation10 + $0x28] sm:$0xf]
    %v2220 = vld [vmem:[#allocation10 + $0x2c] sm:$0xf]
    %v2221 = vld [vmem:[#allocation10 + $0x30] sm:$0xf]
    %v2222 = vld [vmem:[#allocation10 + $0x34] sm:$0xf]
    %v2223 = vld [vmem:[#allocation10 + $0x38] sm:$0xf]
    %v2224 = vld [vmem:[#allocation10 + $0x3c] sm:$0xf]
    %v2225 = vstv %s142
    %v2242 = vunpack.c.l.b16 %v2209
    %v2243 = vunpack.c.l.b16 %v2210
    %v2244 = vunpack.c.l.b16 %v2211
    %v2245 = vunpack.c.l.b16 %v2212
    %v2246 = vunpack.c.l.b16 %v2213
    %v2247 = vunpack.c.l.b16 %v2214
    %v2248 = vunpack.c.l.b16 %v2215
    %v2249 = vunpack.c.l.b16 %v2216
    %v2250 = vunpack.c.l.b16 %v2217
    %v2251 = vunpack.c.l.b16 %v2218
    %v2252 = vunpack.c.l.b16 %v2219
    %v2253 = vunpack.c.l.b16 %v2220
    %v2254 = vunpack.c.l.b16 %v2221
    %v2255 = vunpack.c.l.b16 %v2222
    %v2256 = vunpack.c.l.b16 %v2223
    %v2257 = vunpack.c.l.b16 %v2224
    %v2258 = vpack.c.b16 %v2243, %v2242
    %v2259 = vpack.c.b16 %v2245, %v2244
    %v2260 = vpack.c.b16 %v2247, %v2246
    %v2261 = vpack.c.b16 %v2249, %v2248
    %v2262 = vpack.c.b16 %v2251, %v2250
    %v2263 = vpack.c.b16 %v2253, %v2252
    %v2264 = vpack.c.b16 %v2255, %v2254
    %v2265 = vpack.c.b16 %v2257, %v2256
    %2274 = vmatprep.subr.bf16.mxu0 0
    %2275 = vmatpush1.bf16.msra.mxu0 %v2258
    %2276 = vmatprep.subr.bf16.mxu0 0
    %2277 = vmatpush1.bf16.msra.mxu0 %v2259
    %2278 = vmatprep.subr.bf16.mxu0 0
    %2279 = vmatpush1.bf16.msra.mxu0 %v2260
    %2280 = vmatprep.subr.bf16.mxu0 0
    %2281 = vmatpush1.bf16.msra.mxu0 %v2261
    %2282 = vmatprep.subr.bf16.mxu0 0
    %2283 = vmatpush1.bf16.msra.mxu0 %v2262
    %2284 = vmatprep.subr.bf16.mxu0 0
    %2285 = vmatpush1.bf16.msra.mxu0 %v2263
    %2286 = vmatprep.subr.bf16.mxu0 0
    %2287 = vmatpush1.bf16.msra.mxu0 %v2264
    %2288 = vmatprep.subr.bf16.mxu0 0
    %2289 = vmatpush1.bf16.msra.mxu0 %v2265
    %2290 = vmatprep.subr.bf16.mxu0 0
    %2291 = vmatpush1.bf16.msra.mxu0 0
    %2292 = vmatprep.subr.bf16.mxu0 0
    %2293 = vmatpush1.bf16.msra.mxu0 0
    %2294 = vmatprep.subr.bf16.mxu0 0
    %2295 = vmatpush1.bf16.msra.mxu0 0
    %2296 = vmatprep.subr.bf16.mxu0 0
    %2297 = vmatpush1.bf16.msra.mxu0 0
    %2298 = vmatprep.subr.bf16.mxu0 0
    %2299 = vmatpush1.bf16.msra.mxu0 0
    %2300 = vmatprep.subr.bf16.mxu0 0
    %2301 = vmatpush1.bf16.msra.mxu0 0
    %2302 = vmatprep.subr.bf16.mxu0 0
    %2303 = vmatpush1.bf16.msra.mxu0 0
    %2304 = vmatprep.subr.bf16.mxu0 0
    %2305 = vmatpush1.bf16.msra.mxu0 0
    %2306 = vmatprep.mubr.bf16.mxu0 0
    %2307 = vmatmul.mubr.bf16.gmra.mrb[0].mxu0 %v2208
    %v2308 = vpop.f32.mrb[0].mxu0
    %v2309 = vadd.f32 %v2225, %v2308
    %v2310 = vpop.f32.mrb[0].mxu0
    %v2311 = vpop.f32.mrb[0].mxu0
    %v2312 = vpop.f32.mrb[0].mxu0
    %2313 = vdwg.mxu0
    %2314 = vst [vmem:[%s14] sm:$0x3] %v2309
    // Predicated region
    $region82: #{_cgcnn_forward_jit.1} parent=1 // pred_check
      _
    $region83: #{_cgcnn_forward_jit.1} parent=1 // pred_check_branch
      %2316 = sbr.rel (0) target = $region85
    $region84: #{_cgcnn_forward_jit.1} parent=1 // pred_region
      _
    $region85: #{_cgcnn_forward_jit.1} parent=1 // pred_fallthru
      _
    // Predicated region
    $region86: #{_cgcnn_forward_jit.1} parent=1 // pred_check
      _
    $region87: #{_cgcnn_forward_jit.1} parent=1 // pred_check_branch
      %2318 = sbr.rel (0) target = $region89
    $region88: #{_cgcnn_forward_jit.1} parent=1 // pred_region
      _
    $region89: #{_cgcnn_forward_jit.1} parent=1 // pred_fallthru
      _
    %2319 = vsyncpa [#allocation3], 1
    %2320 = vsyncpa [#allocation6], 1
    %2321 = vsyncpa [#allocation9], 1
    %2322 = vsyncpa [#allocation4], 1

</llo_original>
